<compile_context>
chip_gen: v6e
topology: v6e:2x2x1
jax: 0.10.0
libtpu: 0.0.40
codegen_flags: <defaults>
</compile_context>

<pallas_src>
import functools

import jax
import jax.numpy as jnp
from jax.experimental import pallas as pl
from jax.experimental.pallas import tpu as pltpu  # noqa: F401  (not required here)

# ----------------------------- configuration --------------------------------
B = 2                 # batch_size
S = 8                 # seq_len
CAT_CARDS = [5, 7]    # cat_cardinalities
N_CONT = 2            # continious features
EMB_HIDDEN = 8        # embeddings_hidden
NUM_EMB_HIDDEN = 8    # num_embeddings_hidden
D_MODEL = len(CAT_CARDS) * EMB_HIDDEN + N_CONT * NUM_EMB_HIDDEN   # 32 (emb_size)
D_QK = 16             # hidden_size (per-head q/k/v dim in MixtureOfHeads)
D_FF = 16             # dim_feedforward = hidden_size
N_HEADS = 4           # sampled from num_heads_* = [1,2,4,8]
OUTPUT_SIZE = 4       # output_size -> decoder_input_len = 4
DEC_LEN = OUTPUT_SIZE
N_ENC_LAYERS = 1      # sampled from num_layers_encoder
N_DEC_LAYERS = 1      # sampled from num_layers_decoder
LN_EPS = 1e-5
HD = N_HEADS * D_QK   # 64
NEG_BIAS = -1e9       # additive mask for cross-batch attention
PACK_WIDTH = 3 * HD   # 192 lanes: widest packed tensor (fused QKV weight)


# --------------------------- in-kernel helpers -------------------------------
def _layernorm(z, g, b):
    mu = jnp.mean(z, axis=-1, keepdims=True)
    var = jnp.mean((z - mu) ** 2, axis=-1, keepdims=True)
    return (z - mu) * jax.lax.rsqrt(var + LN_EPS) * g + b


def _fiota(shape, dim):
    # int iota -> f32 (safe Mosaic lowering path)
    return jax.lax.broadcasted_iota(jnp.int32, shape, dim).astype(jnp.float32)


# ------------------------------ fused kernel ---------------------------------
def _fused_kernel(x_ref, blob_ref, out_ref, *, layout,
                  n_enc, n_dec, n_heads, d_head, b, s, dec_len):
    """One kernel for the whole transformer body.

    x_ref    : (B*S, D)  stem output + time encoding, batch folded into rows
    blob_ref : (R, 192)  all packed parameters; recovered via static slices
    out_ref  : (B, OUTPUT_SIZE)
    """
    hd = n_heads * d_head

    def get(name):
        r0, nr, nc = layout[name]
        return blob_ref[r0:r0 + nr, 0:nc]          # static slice -> lazy load

    def block_bias(rows, cols, qg, kg):
        # 0 where query row and key col belong to the same batch element.
        ri = jnp.floor(_fiota((rows, cols), 0) * (1.0 / qg))
        ci = jnp.floor(_fiota((rows, cols), 1) * (1.0 / kg))
        return jnp.where(ri == ci, 0.0, NEG_BIAS).astype(jnp.float32)

    def mha(qp, kp, vp, wo, bo, bias):
        """qp:(M,H*dh) kp/vp:(N,H*dh) wo:(H*dh,D) bias:(M,N)."""
        scale = 1.0 / (d_head ** 0.5)
        ctx_parts = []
        for h in range(n_heads):
            sl = slice(h * d_head, (h + 1) * d_head)
            # contract on the last axes: no explicit K transpose
            sc = jax.lax.dot_general(
                qp[:, sl], kp[:, sl],
                dimension_numbers=(((1,), (1,)), ((), ())),
                preferred_element_type=jnp.float32) * scale
            sc = sc + bias
            m = jnp.max(sc, axis=-1, keepdims=True)
            e = jnp.exp(sc - m)
            p = e * pl.reciprocal(jnp.sum(e, axis=-1, keepdims=True), approx=True)
            ctx_parts.append(jnp.dot(p, vp[:, sl],
                                     preferred_element_type=jnp.float32))
        ctx = jnp.concatenate(ctx_parts, axis=-1)        # (M, H*dh): one vreg row wide
        return jnp.dot(ctx, wo, preferred_element_type=jnp.float32) + bo

    # cross-batch masks, generated in-kernel (no operand DMAs)
    m_es = block_bias(b * s, b * s, s, s)
    m_ds = block_bias(b * dec_len, b * dec_len, dec_len, dec_len)
    m_dc = block_bias(b * dec_len, b * s, dec_len, s)

    x = x_ref[...]                                       # (B*S, D)

    # ---------------- encoder: post-LN MHA layers ----------------
    for i in range(n_enc):
        p = f"enc{i}_"
        qkv = jnp.dot(x, get(p + "wqkv"),
                      preferred_element_type=jnp.float32) + get(p + "bqkv")
        att = mha(qkv[:, :hd], qkv[:, hd:2 * hd], qkv[:, 2 * hd:],
                  get(p + "wo"), get(p + "bo"), m_es)
        x = _layernorm(x + att, get(p + "ln1_g"), get(p + "ln1_b"))
        h1 = jnp.maximum(jnp.dot(x, get(p + "ffn_w1"),
                                 preferred_element_type=jnp.float32)
                         + get(p + "ffn_b1"), 0.0)
        y = jnp.dot(h1, get(p + "ffn_w2"),
                    preferred_element_type=jnp.float32) + get(p + "ffn_b2")
        x = _layernorm(x + y, get(p + "ln2_g"), get(p + "ln2_b"))

    # learnable decoder query, broadcast over batch in-kernel
    query = get("query")                                 # (DEC_LEN, D)
    q = jnp.concatenate([query] * b, axis=0)             # (B*DEC_LEN, D)

    # ---------------- decoder: self-att + cross-att + FFN ----------------
    for i in range(n_dec):
        p = f"dec{i}_"
        qkv = jnp.dot(q, get(p + "s_wqkv"),
                      preferred_element_type=jnp.float32) + get(p + "s_bqkv")
        att = mha(qkv[:, :hd], qkv[:, hd:2 * hd], qkv[:, 2 * hd:],
                  get(p + "s_wo"), get(p + "s_bo"), m_ds)
        q = _layernorm(q + att, get(p + "ln1_g"), get(p + "ln1_b"))

        qp = jnp.dot(q, get(p + "c_wq"),
                     preferred_element_type=jnp.float32) + get(p + "c_bq")
        kv = jnp.dot(x, get(p + "c_wkv"),
                     preferred_element_type=jnp.float32) + get(p + "c_bkv")
        att = mha(qp, kv[:, :hd], kv[:, hd:],
                  get(p + "c_wo"), get(p + "c_bo"), m_dc)
        q = _layernorm(q + att, get(p + "ln2_g"), get(p + "ln2_b"))

        h1 = jnp.maximum(jnp.dot(q, get(p + "ffn_w1"),
                                 preferred_element_type=jnp.float32)
                         + get(p + "ffn_b1"), 0.0)
        y = jnp.dot(h1, get(p + "ffn_w2"),
                    preferred_element_type=jnp.float32) + get(p + "ffn_b2")
        q = _layernorm(q + y, get(p + "ln3_g"), get(p + "ln3_b"))

    # ---------------- head: per-batch mean pool + linear ----------------
    ri = _fiota((b, b * dec_len), 0)
    ci = jnp.floor(_fiota((b, b * dec_len), 1) * (1.0 / dec_len))
    pool = jnp.where(ri == ci, 1.0 / dec_len, 0.0).astype(jnp.float32)  # (B, B*DEC_LEN)
    pooled = jnp.dot(pool, q, preferred_element_type=jnp.float32)        # (B, D)
    out = jnp.dot(pooled, get("head_w"),
                  preferred_element_type=jnp.float32) + get("head_b")
    out_ref[...] = out.astype(out_ref.dtype)


# ------------------------------ parameters -----------------------------------
def _round_up(n, m):
    return ((n + m - 1) // m) * m


def _pack_params(named, width=PACK_WIDTH, align=8):
    """Concatenate all params into one (R, width) f32 blob, 8-row aligned."""
    layout = {}
    blocks = []
    r = 0
    for name, arr in named:
        arr = jnp.asarray(arr, jnp.float32)
        if arr.ndim == 1:
            arr = arr.reshape(1, -1)
        nr, nc = arr.shape
        pr = _round_up(nr, align)
        block = jnp.zeros((pr, width), jnp.float32).at[:nr, :nc].set(arr)
        layout[name] = (r, nr, nc)
        blocks.append(block)
        r += pr
    return jnp.concatenate(blocks, axis=0), layout


def init_params(key):
    keys = jax.random.split(key, 6)

    # --- stem / time-encoding params (stay on the JAX side) ---
    stem_keys = jax.random.split(keys[0], len(CAT_CARDS) + 1)
    half = D_MODEL // 2
    stem = {
        "emb": [jax.random.normal(stem_keys[i], (card, EMB_HIDDEN), jnp.float32) * 0.05
                for i, card in enumerate(CAT_CARDS)],
        "w_cont": jax.random.normal(stem_keys[-1], (N_CONT, NUM_EMB_HIDDEN),
                                    jnp.float32) * 0.05,
        "b_cont": jnp.zeros((N_CONT, NUM_EMB_HIDDEN), jnp.float32),
        "inv_freq": (1.0 / (10000.0 ** (jnp.arange(half, dtype=jnp.float32) / half))
                     ).reshape(1, half),
    }

    def dense(k, din, dout, scale=0.05):
        return (jax.random.normal(k, (din, dout), jnp.float32) * scale,
                jnp.zeros((1, dout), jnp.float32))

    ones = jnp.ones((1, D_MODEL), jnp.float32)
    zeros = jnp.zeros((1, D_MODEL), jnp.float32)

    named = [("query", jax.random.normal(keys[1], (DEC_LEN, D_MODEL), jnp.float32))]

    for i, k in enumerate(jax.random.split(keys[2], N_ENC_LAYERS)):
        k1, k2, k3, k4 = jax.random.split(k, 4)
        wqkv, bqkv = dense(k1, D_MODEL, 3 * HD)       # fused Q|K|V
        wo, bo = dense(k2, HD, D_MODEL)
        w1, b1 = dense(k3, D_MODEL, D_FF)
        w2, b2 = dense(k4, D_FF, D_MODEL)
        named += [
            (f"enc{i}_wqkv", wqkv), (f"enc{i}_bqkv", bqkv),
            (f"enc{i}_wo", wo), (f"enc{i}_bo", bo),
            (f"enc{i}_ln1_g", ones), (f"enc{i}_ln1_b", zeros),
            (f"enc{i}_ffn_w1", w1), (f"enc{i}_ffn_b1", b1),
            (f"enc{i}_ffn_w2", w2), (f"enc{i}_ffn_b2", b2),
            (f"enc{i}_ln2_g", ones), (f"enc{i}_ln2_b", zeros),
        ]

    for i, k in enumerate(jax.random.split(keys[3], N_DEC_LAYERS)):
        ks = jax.random.split(k, 7)
        s_wqkv, s_bqkv = dense(ks[0], D_MODEL, 3 * HD)   # self-att fused Q|K|V
        s_wo, s_bo = dense(ks[1], HD, D_MODEL)
        c_wq, c_bq = dense(ks[2], D_MODEL, HD)           # cross-att Q (from query)
        c_wkv, c_bkv = dense(ks[3], D_MODEL, 2 * HD)     # cross-att fused K|V
        c_wo, c_bo = dense(ks[4], HD, D_MODEL)
        w1, b1 = dense(ks[5], D_MODEL, D_FF)
        w2, b2 = dense(ks[6], D_FF, D_MODEL)
        named += [
            (f"dec{i}_s_wqkv", s_wqkv), (f"dec{i}_s_bqkv", s_bqkv),
            (f"dec{i}_s_wo", s_wo), (f"dec{i}_s_bo", s_bo),
            (f"dec{i}_ln1_g", ones), (f"dec{i}_ln1_b", zeros),
            (f"dec{i}_c_wq", c_wq), (f"dec{i}_c_bq", c_bq),
            (f"dec{i}_c_wkv", c_wkv), (f"dec{i}_c_bkv", c_bkv),
            (f"dec{i}_c_wo", c_wo), (f"dec{i}_c_bo", c_bo),
            (f"dec{i}_ln2_g", ones), (f"dec{i}_ln2_b", zeros),
            (f"dec{i}_ffn_w1", w1), (f"dec{i}_ffn_b1", b1),
            (f"dec{i}_ffn_w2", w2), (f"dec{i}_ffn_b2", b2),
            (f"dec{i}_ln3_g", ones), (f"dec{i}_ln3_b", zeros),
        ]

    wh, bh = dense(keys[4], D_MODEL, OUTPUT_SIZE)
    named += [("head_w", wh), ("head_b", bh)]

    blob, layout = _pack_params(named)
    return stem, blob, layout


# ------------------------------ forward pass ----------------------------------
def build_forward(layout):
    kernel = functools.partial(
        _fused_kernel, layout=layout,
        n_enc=N_ENC_LAYERS, n_dec=N_DEC_LAYERS,
        n_heads=N_HEADS, d_head=D_QK, b=B, s=S, dec_len=DEC_LEN)

    # No grid: all operands (<1 MiB total) are whole arrays resident in VMEM.
    fused = pl.pallas_call(
        kernel,
        out_shape=jax.ShapeDtypeStruct((B, OUTPUT_SIZE), jnp.float32),
    )

    @jax.jit
    def forward(blob, stem, cat_inputs, cont_inputs, time):
        # --- Stem (embedding gathers + continuous projection: JAX glue) ---
        embs = [jnp.take(tbl, cat_inputs[i], axis=0)                 # (B,S,EMB_HIDDEN)
                for i, tbl in enumerate(stem["emb"])]
        cont_emb = (cont_inputs[..., :, None] * stem["w_cont"][None, None]
                    + stem["b_cont"][None, None])                    # (B,S,N_CONT,H)
        cont_emb = cont_emb.reshape(B, S, N_CONT * NUM_EMB_HIDDEN)
        x = jnp.concatenate(embs + [cont_emb], axis=-1)              # (B,S,D_MODEL)

        # --- SinTimeEncoding (sin/cos kept outside the kernel; fused by XLA
        #     into the x operand construction) ---
        ang = time[..., None].astype(jnp.float32) * stem["inv_freq"][None]  # (B,S,half)
        pe = jnp.concatenate([jnp.sin(ang), jnp.cos(ang)], axis=-1)         # (B,S,D)

        # fold batch into the sublane axis; everything else in ONE kernel
        x_flat = (x + pe).reshape(B * S, D_MODEL).astype(jnp.float32)       # (16,32)
        return fused(x_flat, blob)

    return forward


# ---------------------------------- main --------------------------------------
if __name__ == "__main__":
    root = jax.random.PRNGKey(0)
    k_param, k_c0, k_c1, k_cont = jax.random.split(root, 4)

    stem, blob, layout = init_params(k_param)
    forward = build_forward(layout)

    cat_inputs = [
        jax.random.randint(k_c0, (B, S), 0, CAT_CARDS[0]),
        jax.random.randint(k_c1, (B, S), 0, CAT_CARDS[1]),
    ]
    cont_inputs = jax.random.normal(k_cont, (B, S, N_CONT), jnp.float32)
    time = jnp.broadcast_to(jnp.arange(S, dtype=jnp.float32), (B, S))

    out = forward(blob, stem, cat_inputs, cont_inputs, time)
    jax.block_until_ready(out)
    assert out.shape == (B, OUTPUT_SIZE), out.shape
    print("KERNEL_OK")
</pallas_src>

<mosaic_0001>
module attributes {stable_mosaic.version = 11 : i64} {
  func.func @_fused_kernel(%arg0: memref<16x32xf32, #tpu.memory_space<vmem>>, %arg1: memref<632x192xf32, #tpu.memory_space<vmem>>, %arg2: memref<2x4xf32, #tpu.memory_space<vmem>>) attributes {dimension_semantics = [], scalar_prefetch = 0 : i64, scratch_operands = 0 : i64, tpu.core_type = #tpu.core_type<tc>} {
    %0 = tpu.iota {dimensions = array<i32: 0>} : vector<16x16xi32>
    %1 = arith.sitofp %0 : vector<16x16xi32> to vector<16x16xf32>
    %cst = arith.constant 1.250000e-01 : f32
    %2 = vector.broadcast %cst : f32 to vector<16x16xf32>
    %3 = arith.mulf %1, %2 : vector<16x16xf32>
    %4 = math.floor %3 : vector<16x16xf32>
    %5 = tpu.iota {dimensions = array<i32: 1>} : vector<16x16xi32>
    %6 = arith.sitofp %5 : vector<16x16xi32> to vector<16x16xf32>
    %cst_0 = arith.constant 1.250000e-01 : f32
    %7 = vector.broadcast %cst_0 : f32 to vector<16x16xf32>
    %8 = arith.mulf %6, %7 : vector<16x16xf32>
    %9 = math.floor %8 : vector<16x16xf32>
    %10 = arith.cmpf oeq, %4, %9 : vector<16x16xf32>
    %cst_1 = arith.constant 0.000000e+00 : f32
    %cst_2 = arith.constant -1.000000e+09 : f32
    %11 = vector.broadcast %cst_1 : f32 to vector<16x16xf32>
    %12 = vector.broadcast %cst_2 : f32 to vector<16x16xf32>
    %13 = arith.select %10, %11, %12 : vector<16x16xi1>, vector<16x16xf32>
    %14 = tpu.iota {dimensions = array<i32: 0>} : vector<8x8xi32>
    %15 = arith.sitofp %14 : vector<8x8xi32> to vector<8x8xf32>
    %cst_3 = arith.constant 2.500000e-01 : f32
    %16 = vector.broadcast %cst_3 : f32 to vector<8x8xf32>
    %17 = arith.mulf %15, %16 : vector<8x8xf32>
    %18 = math.floor %17 : vector<8x8xf32>
    %19 = tpu.iota {dimensions = array<i32: 1>} : vector<8x8xi32>
    %20 = arith.sitofp %19 : vector<8x8xi32> to vector<8x8xf32>
    %cst_4 = arith.constant 2.500000e-01 : f32
    %21 = vector.broadcast %cst_4 : f32 to vector<8x8xf32>
    %22 = arith.mulf %20, %21 : vector<8x8xf32>
    %23 = math.floor %22 : vector<8x8xf32>
    %24 = arith.cmpf oeq, %18, %23 : vector<8x8xf32>
    %cst_5 = arith.constant 0.000000e+00 : f32
    %cst_6 = arith.constant -1.000000e+09 : f32
    %25 = vector.broadcast %cst_5 : f32 to vector<8x8xf32>
    %26 = vector.broadcast %cst_6 : f32 to vector<8x8xf32>
    %27 = arith.select %24, %25, %26 : vector<8x8xi1>, vector<8x8xf32>
    %28 = tpu.iota {dimensions = array<i32: 0>} : vector<8x16xi32>
    %29 = arith.sitofp %28 : vector<8x16xi32> to vector<8x16xf32>
    %cst_7 = arith.constant 2.500000e-01 : f32
    %30 = vector.broadcast %cst_7 : f32 to vector<8x16xf32>
    %31 = arith.mulf %29, %30 : vector<8x16xf32>
    %32 = math.floor %31 : vector<8x16xf32>
    %33 = tpu.iota {dimensions = array<i32: 1>} : vector<8x16xi32>
    %34 = arith.sitofp %33 : vector<8x16xi32> to vector<8x16xf32>
    %cst_8 = arith.constant 1.250000e-01 : f32
    %35 = vector.broadcast %cst_8 : f32 to vector<8x16xf32>
    %36 = arith.mulf %34, %35 : vector<8x16xf32>
    %37 = math.floor %36 : vector<8x16xf32>
    %38 = arith.cmpf oeq, %32, %37 : vector<8x16xf32>
    %cst_9 = arith.constant 0.000000e+00 : f32
    %cst_10 = arith.constant -1.000000e+09 : f32
    %39 = vector.broadcast %cst_9 : f32 to vector<8x16xf32>
    %40 = vector.broadcast %cst_10 : f32 to vector<8x16xf32>
    %41 = arith.select %38, %39, %40 : vector<8x16xi1>, vector<8x16xf32>
    %c0 = arith.constant 0 : index
    %c0_11 = arith.constant 0 : index
    %42 = vector.load %arg0[%c0, %c0_11] : memref<16x32xf32, #tpu.memory_space<vmem>>, vector<16x32xf32>
    %c8 = arith.constant 8 : index
    %c0_12 = arith.constant 0 : index
    %43 = vector.load %arg1[%c8, %c0_12] : memref<632x192xf32, #tpu.memory_space<vmem>>, vector<32x192xf32>
    %cst_13 = arith.constant dense<0.000000e+00> : vector<16x192xf32>
    %44 = tpu.matmul %42, %43, %cst_13 {dimension_numbers = #tpu.dot_dimension_numbers<[1], [0], [0], [1], [0, 0, 1, 1], [], []>} : vector<16x32xf32>, vector<32x192xf32>, vector<16x192xf32> -> vector<16x192xf32>
    %c40 = arith.constant 40 : index
    %c0_14 = arith.constant 0 : index
    %45 = vector.load %arg1[%c40, %c0_14] : memref<632x192xf32, #tpu.memory_space<vmem>>, vector<1x192xf32>
    %46 = vector.broadcast %45 : vector<1x192xf32> to vector<16x192xf32>
    %47 = arith.addf %44, %46 : vector<16x192xf32>
    %48 = vector.extract_strided_slice %47 {offsets = [0, 0], sizes = [16, 64], strides = [1, 1]} : vector<16x192xf32> to vector<16x64xf32>
    %49 = vector.extract_strided_slice %47 {offsets = [0, 64], sizes = [16, 64], strides = [1, 1]} : vector<16x192xf32> to vector<16x64xf32>
    %50 = vector.extract_strided_slice %47 {offsets = [0, 128], sizes = [16, 64], strides = [1, 1]} : vector<16x192xf32> to vector<16x64xf32>
    %c48 = arith.constant 48 : index
    %c0_15 = arith.constant 0 : index
    %51 = vector.load %arg1[%c48, %c0_15] : memref<632x192xf32, #tpu.memory_space<vmem>>, vector<64x32xf32>
    %c112 = arith.constant 112 : index
    %c0_16 = arith.constant 0 : index
    %52 = vector.load %arg1[%c112, %c0_16] : memref<632x192xf32, #tpu.memory_space<vmem>>, vector<1x32xf32>
    %53 = vector.extract_strided_slice %48 {offsets = [0, 0], sizes = [16, 16], strides = [1, 1]} : vector<16x64xf32> to vector<16x16xf32>
    %54 = vector.extract_strided_slice %49 {offsets = [0, 0], sizes = [16, 16], strides = [1, 1]} : vector<16x64xf32> to vector<16x16xf32>
    %cst_17 = arith.constant dense<0.000000e+00> : vector<16x16xf32>
    %55 = tpu.matmul %53, %54, %cst_17 {dimension_numbers = #tpu.dot_dimension_numbers<[1], [1], [0], [0], [0, 0, 1, 0], [], []>} : vector<16x16xf32>, vector<16x16xf32>, vector<16x16xf32> -> vector<16x16xf32>
    %cst_18 = arith.constant 2.500000e-01 : f32
    %56 = vector.broadcast %cst_18 : f32 to vector<16x16xf32>
    %57 = arith.mulf %55, %56 : vector<16x16xf32>
    %58 = arith.addf %57, %13 : vector<16x16xf32>
    %cst_19 = arith.constant dense<0xFF800000> : vector<16xf32>
    %59 = vector.multi_reduction <maximumf>, %58, %cst_19 [1] : vector<16x16xf32> to vector<16xf32>
    %60 = vector.shape_cast %59 : vector<16xf32> to vector<16x1xf32>
    %61 = vector.broadcast %60 : vector<16x1xf32> to vector<16x16xf32>
    %62 = arith.subf %58, %61 : vector<16x16xf32>
    %63 = math.exp %62 : vector<16x16xf32>
    %cst_20 = arith.constant dense<0.000000e+00> : vector<16xf32>
    %64 = vector.multi_reduction <add>, %63, %cst_20 [1] : vector<16x16xf32> to vector<16xf32>
    %65 = vector.shape_cast %64 : vector<16xf32> to vector<16x1xf32>
    %66 = tpu.reciprocal %65 {approx = true} : vector<16x1xf32> -> vector<16x1xf32>
    %67 = vector.broadcast %66 : vector<16x1xf32> to vector<16x16xf32>
    %68 = arith.mulf %63, %67 : vector<16x16xf32>
    %69 = vector.extract_strided_slice %50 {offsets = [0, 0], sizes = [16, 16], strides = [1, 1]} : vector<16x64xf32> to vector<16x16xf32>
    %cst_21 = arith.constant dense<0.000000e+00> : vector<16x16xf32>
    %70 = tpu.matmul %68, %69, %cst_21 {dimension_numbers = #tpu.dot_dimension_numbers<[1], [0], [0], [1], [0, 0, 1, 1], [], []>} : vector<16x16xf32>, vector<16x16xf32>, vector<16x16xf32> -> vector<16x16xf32>
    %71 = vector.extract_strided_slice %48 {offsets = [0, 16], sizes = [16, 16], strides = [1, 1]} : vector<16x64xf32> to vector<16x16xf32>
    %72 = vector.extract_strided_slice %49 {offsets = [0, 16], sizes = [16, 16], strides = [1, 1]} : vector<16x64xf32> to vector<16x16xf32>
    %cst_22 = arith.constant dense<0.000000e+00> : vector<16x16xf32>
    %73 = tpu.matmul %71, %72, %cst_22 {dimension_numbers = #tpu.dot_dimension_numbers<[1], [1], [0], [0], [0, 0, 1, 0], [], []>} : vector<16x16xf32>, vector<16x16xf32>, vector<16x16xf32> -> vector<16x16xf32>
    %cst_23 = arith.constant 2.500000e-01 : f32
    %74 = vector.broadcast %cst_23 : f32 to vector<16x16xf32>
    %75 = arith.mulf %73, %74 : vector<16x16xf32>
    %76 = arith.addf %75, %13 : vector<16x16xf32>
    %cst_24 = arith.constant dense<0xFF800000> : vector<16xf32>
    %77 = vector.multi_reduction <maximumf>, %76, %cst_24 [1] : vector<16x16xf32> to vector<16xf32>
    %78 = vector.shape_cast %77 : vector<16xf32> to vector<16x1xf32>
    %79 = vector.broadcast %78 : vector<16x1xf32> to vector<16x16xf32>
    %80 = arith.subf %76, %79 : vector<16x16xf32>
    %81 = math.exp %80 : vector<16x16xf32>
    %cst_25 = arith.constant dense<0.000000e+00> : vector<16xf32>
    %82 = vector.multi_reduction <add>, %81, %cst_25 [1] : vector<16x16xf32> to vector<16xf32>
    %83 = vector.shape_cast %82 : vector<16xf32> to vector<16x1xf32>
    %84 = tpu.reciprocal %83 {approx = true} : vector<16x1xf32> -> vector<16x1xf32>
    %85 = vector.broadcast %84 : vector<16x1xf32> to vector<16x16xf32>
    %86 = arith.mulf %81, %85 : vector<16x16xf32>
    %87 = vector.extract_strided_slice %50 {offsets = [0, 16], sizes = [16, 16], strides = [1, 1]} : vector<16x64xf32> to vector<16x16xf32>
    %cst_26 = arith.constant dense<0.000000e+00> : vector<16x16xf32>
    %88 = tpu.matmul %86, %87, %cst_26 {dimension_numbers = #tpu.dot_dimension_numbers<[1], [0], [0], [1], [0, 0, 1, 1], [], []>} : vector<16x16xf32>, vector<16x16xf32>, vector<16x16xf32> -> vector<16x16xf32>
    %89 = vector.extract_strided_slice %48 {offsets = [0, 32], sizes = [16, 16], strides = [1, 1]} : vector<16x64xf32> to vector<16x16xf32>
    %90 = vector.extract_strided_slice %49 {offsets = [0, 32], sizes = [16, 16], strides = [1, 1]} : vector<16x64xf32> to vector<16x16xf32>
    %cst_27 = arith.constant dense<0.000000e+00> : vector<16x16xf32>
    %91 = tpu.matmul %89, %90, %cst_27 {dimension_numbers = #tpu.dot_dimension_numbers<[1], [1], [0], [0], [0, 0, 1, 0], [], []>} : vector<16x16xf32>, vector<16x16xf32>, vector<16x16xf32> -> vector<16x16xf32>
    %cst_28 = arith.constant 2.500000e-01 : f32
    %92 = vector.broadcast %cst_28 : f32 to vector<16x16xf32>
    %93 = arith.mulf %91, %92 : vector<16x16xf32>
    %94 = arith.addf %93, %13 : vector<16x16xf32>
    %cst_29 = arith.constant dense<0xFF800000> : vector<16xf32>
    %95 = vector.multi_reduction <maximumf>, %94, %cst_29 [1] : vector<16x16xf32> to vector<16xf32>
    %96 = vector.shape_cast %95 : vector<16xf32> to vector<16x1xf32>
    %97 = vector.broadcast %96 : vector<16x1xf32> to vector<16x16xf32>
    %98 = arith.subf %94, %97 : vector<16x16xf32>
    %99 = math.exp %98 : vector<16x16xf32>
    %cst_30 = arith.constant dense<0.000000e+00> : vector<16xf32>
    %100 = vector.multi_reduction <add>, %99, %cst_30 [1] : vector<16x16xf32> to vector<16xf32>
    %101 = vector.shape_cast %100 : vector<16xf32> to vector<16x1xf32>
    %102 = tpu.reciprocal %101 {approx = true} : vector<16x1xf32> -> vector<16x1xf32>
    %103 = vector.broadcast %102 : vector<16x1xf32> to vector<16x16xf32>
    %104 = arith.mulf %99, %103 : vector<16x16xf32>
    %105 = vector.extract_strided_slice %50 {offsets = [0, 32], sizes = [16, 16], strides = [1, 1]} : vector<16x64xf32> to vector<16x16xf32>
    %cst_31 = arith.constant dense<0.000000e+00> : vector<16x16xf32>
    %106 = tpu.matmul %104, %105, %cst_31 {dimension_numbers = #tpu.dot_dimension_numbers<[1], [0], [0], [1], [0, 0, 1, 1], [], []>} : vector<16x16xf32>, vector<16x16xf32>, vector<16x16xf32> -> vector<16x16xf32>
    %107 = vector.extract_strided_slice %48 {offsets = [0, 48], sizes = [16, 16], strides = [1, 1]} : vector<16x64xf32> to vector<16x16xf32>
    %108 = vector.extract_strided_slice %49 {offsets = [0, 48], sizes = [16, 16], strides = [1, 1]} : vector<16x64xf32> to vector<16x16xf32>
    %cst_32 = arith.constant dense<0.000000e+00> : vector<16x16xf32>
    %109 = tpu.matmul %107, %108, %cst_32 {dimension_numbers = #tpu.dot_dimension_numbers<[1], [1], [0], [0], [0, 0, 1, 0], [], []>} : vector<16x16xf32>, vector<16x16xf32>, vector<16x16xf32> -> vector<16x16xf32>
    %cst_33 = arith.constant 2.500000e-01 : f32
    %110 = vector.broadcast %cst_33 : f32 to vector<16x16xf32>
    %111 = arith.mulf %109, %110 : vector<16x16xf32>
    %112 = arith.addf %111, %13 : vector<16x16xf32>
    %cst_34 = arith.constant dense<0xFF800000> : vector<16xf32>
    %113 = vector.multi_reduction <maximumf>, %112, %cst_34 [1] : vector<16x16xf32> to vector<16xf32>
    %114 = vector.shape_cast %113 : vector<16xf32> to vector<16x1xf32>
    %115 = vector.broadcast %114 : vector<16x1xf32> to vector<16x16xf32>
    %116 = arith.subf %112, %115 : vector<16x16xf32>
    %117 = math.exp %116 : vector<16x16xf32>
    %cst_35 = arith.constant dense<0.000000e+00> : vector<16xf32>
    %118 = vector.multi_reduction <add>, %117, %cst_35 [1] : vector<16x16xf32> to vector<16xf32>
    %119 = vector.shape_cast %118 : vector<16xf32> to vector<16x1xf32>
    %120 = tpu.reciprocal %119 {approx = true} : vector<16x1xf32> -> vector<16x1xf32>
    %121 = vector.broadcast %120 : vector<16x1xf32> to vector<16x16xf32>
    %122 = arith.mulf %117, %121 : vector<16x16xf32>
    %123 = vector.extract_strided_slice %50 {offsets = [0, 48], sizes = [16, 16], strides = [1, 1]} : vector<16x64xf32> to vector<16x16xf32>
    %cst_36 = arith.constant dense<0.000000e+00> : vector<16x16xf32>
    %124 = tpu.matmul %122, %123, %cst_36 {dimension_numbers = #tpu.dot_dimension_numbers<[1], [0], [0], [1], [0, 0, 1, 1], [], []>} : vector<16x16xf32>, vector<16x16xf32>, vector<16x16xf32> -> vector<16x16xf32>
    %125 = tpu.concatenate %70, %88, %106, %124 in 1 : vector<16x16xf32>, vector<16x16xf32>, vector<16x16xf32>, vector<16x16xf32> -> vector<16x64xf32>
    %cst_37 = arith.constant dense<0.000000e+00> : vector<16x32xf32>
    %126 = tpu.matmul %125, %51, %cst_37 {dimension_numbers = #tpu.dot_dimension_numbers<[1], [0], [0], [1], [0, 0, 1, 1], [], []>} : vector<16x64xf32>, vector<64x32xf32>, vector<16x32xf32> -> vector<16x32xf32>
    %127 = vector.broadcast %52 : vector<1x32xf32> to vector<16x32xf32>
    %128 = arith.addf %126, %127 : vector<16x32xf32>
    %129 = arith.addf %42, %128 : vector<16x32xf32>
    %c120 = arith.constant 120 : index
    %c0_38 = arith.constant 0 : index
    %130 = vector.load %arg1[%c120, %c0_38] : memref<632x192xf32, #tpu.memory_space<vmem>>, vector<1x32xf32>
    %c128 = arith.constant 128 : index
    %c0_39 = arith.constant 0 : index
    %131 = vector.load %arg1[%c128, %c0_39] : memref<632x192xf32, #tpu.memory_space<vmem>>, vector<1x32xf32>
    %cst_40 = arith.constant dense<0.000000e+00> : vector<16xf32>
    %132 = vector.multi_reduction <add>, %129, %cst_40 [1] : vector<16x32xf32> to vector<16xf32>
    %133 = vector.shape_cast %132 : vector<16xf32> to vector<16x1xf32>
    %cst_41 = arith.constant 3.200000e+01 : f32
    %134 = vector.broadcast %cst_41 : f32 to vector<16x1xf32>
    %135 = arith.divf %133, %134 : vector<16x1xf32>
    %136 = vector.broadcast %135 : vector<16x1xf32> to vector<16x32xf32>
    %137 = arith.subf %129, %136 : vector<16x32xf32>
    %138 = arith.mulf %137, %137 : vector<16x32xf32>
    %cst_42 = arith.constant dense<0.000000e+00> : vector<16xf32>
    %139 = vector.multi_reduction <add>, %138, %cst_42 [1] : vector<16x32xf32> to vector<16xf32>
    %140 = vector.shape_cast %139 : vector<16xf32> to vector<16x1xf32>
    %cst_43 = arith.constant 3.200000e+01 : f32
    %141 = vector.broadcast %cst_43 : f32 to vector<16x1xf32>
    %142 = arith.divf %140, %141 : vector<16x1xf32>
    %143 = vector.broadcast %135 : vector<16x1xf32> to vector<16x32xf32>
    %144 = arith.subf %129, %143 : vector<16x32xf32>
    %cst_44 = arith.constant 9.99999974E-6 : f32
    %145 = vector.broadcast %cst_44 : f32 to vector<16x1xf32>
    %146 = arith.addf %142, %145 : vector<16x1xf32>
    %147 = math.rsqrt %146 : vector<16x1xf32>
    %148 = vector.broadcast %147 : vector<16x1xf32> to vector<16x32xf32>
    %149 = arith.mulf %144, %148 : vector<16x32xf32>
    %150 = vector.broadcast %130 : vector<1x32xf32> to vector<16x32xf32>
    %151 = arith.mulf %149, %150 : vector<16x32xf32>
    %152 = vector.broadcast %131 : vector<1x32xf32> to vector<16x32xf32>
    %153 = arith.addf %151, %152 : vector<16x32xf32>
    %c136 = arith.constant 136 : index
    %c0_45 = arith.constant 0 : index
    %154 = vector.load %arg1[%c136, %c0_45] : memref<632x192xf32, #tpu.memory_space<vmem>>, vector<32x16xf32>
    %cst_46 = arith.constant dense<0.000000e+00> : vector<16x16xf32>
    %155 = tpu.matmul %153, %154, %cst_46 {dimension_numbers = #tpu.dot_dimension_numbers<[1], [0], [0], [1], [0, 0, 1, 1], [], []>} : vector<16x32xf32>, vector<32x16xf32>, vector<16x16xf32> -> vector<16x16xf32>
    %c168 = arith.constant 168 : index
    %c0_47 = arith.constant 0 : index
    %156 = vector.load %arg1[%c168, %c0_47] : memref<632x192xf32, #tpu.memory_space<vmem>>, vector<1x16xf32>
    %157 = vector.broadcast %156 : vector<1x16xf32> to vector<16x16xf32>
    %158 = arith.addf %155, %157 : vector<16x16xf32>
    %cst_48 = arith.constant 0.000000e+00 : f32
    %159 = vector.broadcast %cst_48 : f32 to vector<16x16xf32>
    %160 = arith.maximumf %158, %159 : vector<16x16xf32>
    %c176 = arith.constant 176 : index
    %c0_49 = arith.constant 0 : index
    %161 = vector.load %arg1[%c176, %c0_49] : memref<632x192xf32, #tpu.memory_space<vmem>>, vector<16x32xf32>
    %cst_50 = arith.constant dense<0.000000e+00> : vector<16x32xf32>
    %162 = tpu.matmul %160, %161, %cst_50 {dimension_numbers = #tpu.dot_dimension_numbers<[1], [0], [0], [1], [0, 0, 1, 1], [], []>} : vector<16x16xf32>, vector<16x32xf32>, vector<16x32xf32> -> vector<16x32xf32>
    %c192 = arith.constant 192 : index
    %c0_51 = arith.constant 0 : index
    %163 = vector.load %arg1[%c192, %c0_51] : memref<632x192xf32, #tpu.memory_space<vmem>>, vector<1x32xf32>
    %164 = vector.broadcast %163 : vector<1x32xf32> to vector<16x32xf32>
    %165 = arith.addf %162, %164 : vector<16x32xf32>
    %166 = arith.addf %153, %165 : vector<16x32xf32>
    %c200 = arith.constant 200 : index
    %c0_52 = arith.constant 0 : index
    %167 = vector.load %arg1[%c200, %c0_52] : memref<632x192xf32, #tpu.memory_space<vmem>>, vector<1x32xf32>
    %c208 = arith.constant 208 : index
    %c0_53 = arith.constant 0 : index
    %168 = vector.load %arg1[%c208, %c0_53] : memref<632x192xf32, #tpu.memory_space<vmem>>, vector<1x32xf32>
    %cst_54 = arith.constant dense<0.000000e+00> : vector<16xf32>
    %169 = vector.multi_reduction <add>, %166, %cst_54 [1] : vector<16x32xf32> to vector<16xf32>
    %170 = vector.shape_cast %169 : vector<16xf32> to vector<16x1xf32>
    %cst_55 = arith.constant 3.200000e+01 : f32
    %171 = vector.broadcast %cst_55 : f32 to vector<16x1xf32>
    %172 = arith.divf %170, %171 : vector<16x1xf32>
    %173 = vector.broadcast %172 : vector<16x1xf32> to vector<16x32xf32>
    %174 = arith.subf %166, %173 : vector<16x32xf32>
    %175 = arith.mulf %174, %174 : vector<16x32xf32>
    %cst_56 = arith.constant dense<0.000000e+00> : vector<16xf32>
    %176 = vector.multi_reduction <add>, %175, %cst_56 [1] : vector<16x32xf32> to vector<16xf32>
    %177 = vector.shape_cast %176 : vector<16xf32> to vector<16x1xf32>
    %cst_57 = arith.constant 3.200000e+01 : f32
    %178 = vector.broadcast %cst_57 : f32 to vector<16x1xf32>
    %179 = arith.divf %177, %178 : vector<16x1xf32>
    %180 = vector.broadcast %172 : vector<16x1xf32> to vector<16x32xf32>
    %181 = arith.subf %166, %180 : vector<16x32xf32>
    %cst_58 = arith.constant 9.99999974E-6 : f32
    %182 = vector.broadcast %cst_58 : f32 to vector<16x1xf32>
    %183 = arith.addf %179, %182 : vector<16x1xf32>
    %184 = math.rsqrt %183 : vector<16x1xf32>
    %185 = vector.broadcast %184 : vector<16x1xf32> to vector<16x32xf32>
    %186 = arith.mulf %181, %185 : vector<16x32xf32>
    %187 = vector.broadcast %167 : vector<1x32xf32> to vector<16x32xf32>
    %188 = arith.mulf %186, %187 : vector<16x32xf32>
    %189 = vector.broadcast %168 : vector<1x32xf32> to vector<16x32xf32>
    %190 = arith.addf %188, %189 : vector<16x32xf32>
    %c0_59 = arith.constant 0 : index
    %c0_60 = arith.constant 0 : index
    %191 = vector.load %arg1[%c0_59, %c0_60] : memref<632x192xf32, #tpu.memory_space<vmem>>, vector<4x32xf32>
    %192 = tpu.concatenate %191, %191 in 0 : vector<4x32xf32>, vector<4x32xf32> -> vector<8x32xf32>
    %c216 = arith.constant 216 : index
    %c0_61 = arith.constant 0 : index
    %193 = vector.load %arg1[%c216, %c0_61] : memref<632x192xf32, #tpu.memory_space<vmem>>, vector<32x192xf32>
    %cst_62 = arith.constant dense<0.000000e+00> : vector<8x192xf32>
    %194 = tpu.matmul %192, %193, %cst_62 {dimension_numbers = #tpu.dot_dimension_numbers<[1], [0], [0], [1], [0, 0, 1, 1], [], []>} : vector<8x32xf32>, vector<32x192xf32>, vector<8x192xf32> -> vector<8x192xf32>
    %c248 = arith.constant 248 : index
    %c0_63 = arith.constant 0 : index
    %195 = vector.load %arg1[%c248, %c0_63] : memref<632x192xf32, #tpu.memory_space<vmem>>, vector<1x192xf32>
    %196 = vector.broadcast %195 : vector<1x192xf32> to vector<8x192xf32>
    %197 = arith.addf %194, %196 : vector<8x192xf32>
    %198 = vector.extract_strided_slice %197 {offsets = [0, 0], sizes = [8, 64], strides = [1, 1]} : vector<8x192xf32> to vector<8x64xf32>
    %199 = vector.extract_strided_slice %197 {offsets = [0, 64], sizes = [8, 64], strides = [1, 1]} : vector<8x192xf32> to vector<8x64xf32>
    %200 = vector.extract_strided_slice %197 {offsets = [0, 128], sizes = [8, 64], strides = [1, 1]} : vector<8x192xf32> to vector<8x64xf32>
    %c256 = arith.constant 256 : index
    %c0_64 = arith.constant 0 : index
    %201 = vector.load %arg1[%c256, %c0_64] : memref<632x192xf32, #tpu.memory_space<vmem>>, vector<64x32xf32>
    %c320 = arith.constant 320 : index
    %c0_65 = arith.constant 0 : index
    %202 = vector.load %arg1[%c320, %c0_65] : memref<632x192xf32, #tpu.memory_space<vmem>>, vector<1x32xf32>
    %203 = vector.extract_strided_slice %198 {offsets = [0, 0], sizes = [8, 16], strides = [1, 1]} : vector<8x64xf32> to vector<8x16xf32>
    %204 = vector.extract_strided_slice %199 {offsets = [0, 0], sizes = [8, 16], strides = [1, 1]} : vector<8x64xf32> to vector<8x16xf32>
    %cst_66 = arith.constant dense<0.000000e+00> : vector<8x8xf32>
    %205 = tpu.matmul %203, %204, %cst_66 {dimension_numbers = #tpu.dot_dimension_numbers<[1], [1], [0], [0], [0, 0, 1, 0], [], []>} : vector<8x16xf32>, vector<8x16xf32>, vector<8x8xf32> -> vector<8x8xf32>
    %cst_67 = arith.constant 2.500000e-01 : f32
    %206 = vector.broadcast %cst_67 : f32 to vector<8x8xf32>
    %207 = arith.mulf %205, %206 : vector<8x8xf32>
    %208 = arith.addf %207, %27 : vector<8x8xf32>
    %cst_68 = arith.constant dense<0xFF800000> : vector<8xf32>
    %209 = vector.multi_reduction <maximumf>, %208, %cst_68 [1] : vector<8x8xf32> to vector<8xf32>
    %210 = vector.shape_cast %209 : vector<8xf32> to vector<8x1xf32>
    %211 = vector.broadcast %210 : vector<8x1xf32> to vector<8x8xf32>
    %212 = arith.subf %208, %211 : vector<8x8xf32>
    %213 = math.exp %212 : vector<8x8xf32>
    %cst_69 = arith.constant dense<0.000000e+00> : vector<8xf32>
    %214 = vector.multi_reduction <add>, %213, %cst_69 [1] : vector<8x8xf32> to vector<8xf32>
    %215 = vector.shape_cast %214 : vector<8xf32> to vector<8x1xf32>
    %216 = tpu.reciprocal %215 {approx = true} : vector<8x1xf32> -> vector<8x1xf32>
    %217 = vector.broadcast %216 : vector<8x1xf32> to vector<8x8xf32>
    %218 = arith.mulf %213, %217 : vector<8x8xf32>
    %219 = vector.extract_strided_slice %200 {offsets = [0, 0], sizes = [8, 16], strides = [1, 1]} : vector<8x64xf32> to vector<8x16xf32>
    %cst_70 = arith.constant dense<0.000000e+00> : vector<8x16xf32>
    %220 = tpu.matmul %218, %219, %cst_70 {dimension_numbers = #tpu.dot_dimension_numbers<[1], [0], [0], [1], [0, 0, 1, 1], [], []>} : vector<8x8xf32>, vector<8x16xf32>, vector<8x16xf32> -> vector<8x16xf32>
    %221 = vector.extract_strided_slice %198 {offsets = [0, 16], sizes = [8, 16], strides = [1, 1]} : vector<8x64xf32> to vector<8x16xf32>
    %222 = vector.extract_strided_slice %199 {offsets = [0, 16], sizes = [8, 16], strides = [1, 1]} : vector<8x64xf32> to vector<8x16xf32>
    %cst_71 = arith.constant dense<0.000000e+00> : vector<8x8xf32>
    %223 = tpu.matmul %221, %222, %cst_71 {dimension_numbers = #tpu.dot_dimension_numbers<[1], [1], [0], [0], [0, 0, 1, 0], [], []>} : vector<8x16xf32>, vector<8x16xf32>, vector<8x8xf32> -> vector<8x8xf32>
    %cst_72 = arith.constant 2.500000e-01 : f32
    %224 = vector.broadcast %cst_72 : f32 to vector<8x8xf32>
    %225 = arith.mulf %223, %224 : vector<8x8xf32>
    %226 = arith.addf %225, %27 : vector<8x8xf32>
    %cst_73 = arith.constant dense<0xFF800000> : vector<8xf32>
    %227 = vector.multi_reduction <maximumf>, %226, %cst_73 [1] : vector<8x8xf32> to vector<8xf32>
    %228 = vector.shape_cast %227 : vector<8xf32> to vector<8x1xf32>
    %229 = vector.broadcast %228 : vector<8x1xf32> to vector<8x8xf32>
    %230 = arith.subf %226, %229 : vector<8x8xf32>
    %231 = math.exp %230 : vector<8x8xf32>
    %cst_74 = arith.constant dense<0.000000e+00> : vector<8xf32>
    %232 = vector.multi_reduction <add>, %231, %cst_74 [1] : vector<8x8xf32> to vector<8xf32>
    %233 = vector.shape_cast %232 : vector<8xf32> to vector<8x1xf32>
    %234 = tpu.reciprocal %233 {approx = true} : vector<8x1xf32> -> vector<8x1xf32>
    %235 = vector.broadcast %234 : vector<8x1xf32> to vector<8x8xf32>
    %236 = arith.mulf %231, %235 : vector<8x8xf32>
    %237 = vector.extract_strided_slice %200 {offsets = [0, 16], sizes = [8, 16], strides = [1, 1]} : vector<8x64xf32> to vector<8x16xf32>
    %cst_75 = arith.constant dense<0.000000e+00> : vector<8x16xf32>
    %238 = tpu.matmul %236, %237, %cst_75 {dimension_numbers = #tpu.dot_dimension_numbers<[1], [0], [0], [1], [0, 0, 1, 1], [], []>} : vector<8x8xf32>, vector<8x16xf32>, vector<8x16xf32> -> vector<8x16xf32>
    %239 = vector.extract_strided_slice %198 {offsets = [0, 32], sizes = [8, 16], strides = [1, 1]} : vector<8x64xf32> to vector<8x16xf32>
    %240 = vector.extract_strided_slice %199 {offsets = [0, 32], sizes = [8, 16], strides = [1, 1]} : vector<8x64xf32> to vector<8x16xf32>
    %cst_76 = arith.constant dense<0.000000e+00> : vector<8x8xf32>
    %241 = tpu.matmul %239, %240, %cst_76 {dimension_numbers = #tpu.dot_dimension_numbers<[1], [1], [0], [0], [0, 0, 1, 0], [], []>} : vector<8x16xf32>, vector<8x16xf32>, vector<8x8xf32> -> vector<8x8xf32>
    %cst_77 = arith.constant 2.500000e-01 : f32
    %242 = vector.broadcast %cst_77 : f32 to vector<8x8xf32>
    %243 = arith.mulf %241, %242 : vector<8x8xf32>
    %244 = arith.addf %243, %27 : vector<8x8xf32>
    %cst_78 = arith.constant dense<0xFF800000> : vector<8xf32>
    %245 = vector.multi_reduction <maximumf>, %244, %cst_78 [1] : vector<8x8xf32> to vector<8xf32>
    %246 = vector.shape_cast %245 : vector<8xf32> to vector<8x1xf32>
    %247 = vector.broadcast %246 : vector<8x1xf32> to vector<8x8xf32>
    %248 = arith.subf %244, %247 : vector<8x8xf32>
    %249 = math.exp %248 : vector<8x8xf32>
    %cst_79 = arith.constant dense<0.000000e+00> : vector<8xf32>
    %250 = vector.multi_reduction <add>, %249, %cst_79 [1] : vector<8x8xf32> to vector<8xf32>
    %251 = vector.shape_cast %250 : vector<8xf32> to vector<8x1xf32>
    %252 = tpu.reciprocal %251 {approx = true} : vector<8x1xf32> -> vector<8x1xf32>
    %253 = vector.broadcast %252 : vector<8x1xf32> to vector<8x8xf32>
    %254 = arith.mulf %249, %253 : vector<8x8xf32>
    %255 = vector.extract_strided_slice %200 {offsets = [0, 32], sizes = [8, 16], strides = [1, 1]} : vector<8x64xf32> to vector<8x16xf32>
    %cst_80 = arith.constant dense<0.000000e+00> : vector<8x16xf32>
    %256 = tpu.matmul %254, %255, %cst_80 {dimension_numbers = #tpu.dot_dimension_numbers<[1], [0], [0], [1], [0, 0, 1, 1], [], []>} : vector<8x8xf32>, vector<8x16xf32>, vector<8x16xf32> -> vector<8x16xf32>
    %257 = vector.extract_strided_slice %198 {offsets = [0, 48], sizes = [8, 16], strides = [1, 1]} : vector<8x64xf32> to vector<8x16xf32>
    %258 = vector.extract_strided_slice %199 {offsets = [0, 48], sizes = [8, 16], strides = [1, 1]} : vector<8x64xf32> to vector<8x16xf32>
    %cst_81 = arith.constant dense<0.000000e+00> : vector<8x8xf32>
    %259 = tpu.matmul %257, %258, %cst_81 {dimension_numbers = #tpu.dot_dimension_numbers<[1], [1], [0], [0], [0, 0, 1, 0], [], []>} : vector<8x16xf32>, vector<8x16xf32>, vector<8x8xf32> -> vector<8x8xf32>
    %cst_82 = arith.constant 2.500000e-01 : f32
    %260 = vector.broadcast %cst_82 : f32 to vector<8x8xf32>
    %261 = arith.mulf %259, %260 : vector<8x8xf32>
    %262 = arith.addf %261, %27 : vector<8x8xf32>
    %cst_83 = arith.constant dense<0xFF800000> : vector<8xf32>
    %263 = vector.multi_reduction <maximumf>, %262, %cst_83 [1] : vector<8x8xf32> to vector<8xf32>
    %264 = vector.shape_cast %263 : vector<8xf32> to vector<8x1xf32>
    %265 = vector.broadcast %264 : vector<8x1xf32> to vector<8x8xf32>
    %266 = arith.subf %262, %265 : vector<8x8xf32>
    %267 = math.exp %266 : vector<8x8xf32>
    %cst_84 = arith.constant dense<0.000000e+00> : vector<8xf32>
    %268 = vector.multi_reduction <add>, %267, %cst_84 [1] : vector<8x8xf32> to vector<8xf32>
    %269 = vector.shape_cast %268 : vector<8xf32> to vector<8x1xf32>
    %270 = tpu.reciprocal %269 {approx = true} : vector<8x1xf32> -> vector<8x1xf32>
    %271 = vector.broadcast %270 : vector<8x1xf32> to vector<8x8xf32>
    %272 = arith.mulf %267, %271 : vector<8x8xf32>
    %273 = vector.extract_strided_slice %200 {offsets = [0, 48], sizes = [8, 16], strides = [1, 1]} : vector<8x64xf32> to vector<8x16xf32>
    %cst_85 = arith.constant dense<0.000000e+00> : vector<8x16xf32>
    %274 = tpu.matmul %272, %273, %cst_85 {dimension_numbers = #tpu.dot_dimension_numbers<[1], [0], [0], [1], [0, 0, 1, 1], [], []>} : vector<8x8xf32>, vector<8x16xf32>, vector<8x16xf32> -> vector<8x16xf32>
    %275 = tpu.concatenate %220, %238, %256, %274 in 1 : vector<8x16xf32>, vector<8x16xf32>, vector<8x16xf32>, vector<8x16xf32> -> vector<8x64xf32>
    %cst_86 = arith.constant dense<0.000000e+00> : vector<8x32xf32>
    %276 = tpu.matmul %275, %201, %cst_86 {dimension_numbers = #tpu.dot_dimension_numbers<[1], [0], [0], [1], [0, 0, 1, 1], [], []>} : vector<8x64xf32>, vector<64x32xf32>, vector<8x32xf32> -> vector<8x32xf32>
    %277 = vector.broadcast %202 : vector<1x32xf32> to vector<8x32xf32>
    %278 = arith.addf %276, %277 : vector<8x32xf32>
    %279 = arith.addf %192, %278 : vector<8x32xf32>
    %c328 = arith.constant 328 : index
    %c0_87 = arith.constant 0 : index
    %280 = vector.load %arg1[%c328, %c0_87] : memref<632x192xf32, #tpu.memory_space<vmem>>, vector<1x32xf32>
    %c336 = arith.constant 336 : index
    %c0_88 = arith.constant 0 : index
    %281 = vector.load %arg1[%c336, %c0_88] : memref<632x192xf32, #tpu.memory_space<vmem>>, vector<1x32xf32>
    %cst_89 = arith.constant dense<0.000000e+00> : vector<8xf32>
    %282 = vector.multi_reduction <add>, %279, %cst_89 [1] : vector<8x32xf32> to vector<8xf32>
    %283 = vector.shape_cast %282 : vector<8xf32> to vector<8x1xf32>
    %cst_90 = arith.constant 3.200000e+01 : f32
    %284 = vector.broadcast %cst_90 : f32 to vector<8x1xf32>
    %285 = arith.divf %283, %284 : vector<8x1xf32>
    %286 = vector.broadcast %285 : vector<8x1xf32> to vector<8x32xf32>
    %287 = arith.subf %279, %286 : vector<8x32xf32>
    %288 = arith.mulf %287, %287 : vector<8x32xf32>
    %cst_91 = arith.constant dense<0.000000e+00> : vector<8xf32>
    %289 = vector.multi_reduction <add>, %288, %cst_91 [1] : vector<8x32xf32> to vector<8xf32>
    %290 = vector.shape_cast %289 : vector<8xf32> to vector<8x1xf32>
    %cst_92 = arith.constant 3.200000e+01 : f32
    %291 = vector.broadcast %cst_92 : f32 to vector<8x1xf32>
    %292 = arith.divf %290, %291 : vector<8x1xf32>
    %293 = vector.broadcast %285 : vector<8x1xf32> to vector<8x32xf32>
    %294 = arith.subf %279, %293 : vector<8x32xf32>
    %cst_93 = arith.constant 9.99999974E-6 : f32
    %295 = vector.broadcast %cst_93 : f32 to vector<8x1xf32>
    %296 = arith.addf %292, %295 : vector<8x1xf32>
    %297 = math.rsqrt %296 : vector<8x1xf32>
    %298 = vector.broadcast %297 : vector<8x1xf32> to vector<8x32xf32>
    %299 = arith.mulf %294, %298 : vector<8x32xf32>
    %300 = vector.broadcast %280 : vector<1x32xf32> to vector<8x32xf32>
    %301 = arith.mulf %299, %300 : vector<8x32xf32>
    %302 = vector.broadcast %281 : vector<1x32xf32> to vector<8x32xf32>
    %303 = arith.addf %301, %302 : vector<8x32xf32>
    %c344 = arith.constant 344 : index
    %c0_94 = arith.constant 0 : index
    %304 = vector.load %arg1[%c344, %c0_94] : memref<632x192xf32, #tpu.memory_space<vmem>>, vector<32x64xf32>
    %cst_95 = arith.constant dense<0.000000e+00> : vector<8x64xf32>
    %305 = tpu.matmul %303, %304, %cst_95 {dimension_numbers = #tpu.dot_dimension_numbers<[1], [0], [0], [1], [0, 0, 1, 1], [], []>} : vector<8x32xf32>, vector<32x64xf32>, vector<8x64xf32> -> vector<8x64xf32>
    %c376 = arith.constant 376 : index
    %c0_96 = arith.constant 0 : index
    %306 = vector.load %arg1[%c376, %c0_96] : memref<632x192xf32, #tpu.memory_space<vmem>>, vector<1x64xf32>
    %307 = vector.broadcast %306 : vector<1x64xf32> to vector<8x64xf32>
    %308 = arith.addf %305, %307 : vector<8x64xf32>
    %c384 = arith.constant 384 : index
    %c0_97 = arith.constant 0 : index
    %309 = vector.load %arg1[%c384, %c0_97] : memref<632x192xf32, #tpu.memory_space<vmem>>, vector<32x128xf32>
    %cst_98 = arith.constant dense<0.000000e+00> : vector<16x128xf32>
    %310 = tpu.matmul %190, %309, %cst_98 {dimension_numbers = #tpu.dot_dimension_numbers<[1], [0], [0], [1], [0, 0, 1, 1], [], []>} : vector<16x32xf32>, vector<32x128xf32>, vector<16x128xf32> -> vector<16x128xf32>
    %c416 = arith.constant 416 : index
    %c0_99 = arith.constant 0 : index
    %311 = vector.load %arg1[%c416, %c0_99] : memref<632x192xf32, #tpu.memory_space<vmem>>, vector<1x128xf32>
    %312 = vector.broadcast %311 : vector<1x128xf32> to vector<16x128xf32>
    %313 = arith.addf %310, %312 : vector<16x128xf32>
    %314 = vector.extract_strided_slice %313 {offsets = [0, 0], sizes = [16, 64], strides = [1, 1]} : vector<16x128xf32> to vector<16x64xf32>
    %315 = vector.extract_strided_slice %313 {offsets = [0, 64], sizes = [16, 64], strides = [1, 1]} : vector<16x128xf32> to vector<16x64xf32>
    %c424 = arith.constant 424 : index
    %c0_100 = arith.constant 0 : index
    %316 = vector.load %arg1[%c424, %c0_100] : memref<632x192xf32, #tpu.memory_space<vmem>>, vector<64x32xf32>
    %c488 = arith.constant 488 : index
    %c0_101 = arith.constant 0 : index
    %317 = vector.load %arg1[%c488, %c0_101] : memref<632x192xf32, #tpu.memory_space<vmem>>, vector<1x32xf32>
    %318 = vector.extract_strided_slice %308 {offsets = [0, 0], sizes = [8, 16], strides = [1, 1]} : vector<8x64xf32> to vector<8x16xf32>
    %319 = vector.extract_strided_slice %314 {offsets = [0, 0], sizes = [16, 16], strides = [1, 1]} : vector<16x64xf32> to vector<16x16xf32>
    %cst_102 = arith.constant dense<0.000000e+00> : vector<8x16xf32>
    %320 = tpu.matmul %318, %319, %cst_102 {dimension_numbers = #tpu.dot_dimension_numbers<[1], [1], [0], [0], [0, 0, 1, 0], [], []>} : vector<8x16xf32>, vector<16x16xf32>, vector<8x16xf32> -> vector<8x16xf32>
    %cst_103 = arith.constant 2.500000e-01 : f32
    %321 = vector.broadcast %cst_103 : f32 to vector<8x16xf32>
    %322 = arith.mulf %320, %321 : vector<8x16xf32>
    %323 = arith.addf %322, %41 : vector<8x16xf32>
    %cst_104 = arith.constant dense<0xFF800000> : vector<8xf32>
    %324 = vector.multi_reduction <maximumf>, %323, %cst_104 [1] : vector<8x16xf32> to vector<8xf32>
    %325 = vector.shape_cast %324 : vector<8xf32> to vector<8x1xf32>
    %326 = vector.broadcast %325 : vector<8x1xf32> to vector<8x16xf32>
    %327 = arith.subf %323, %326 : vector<8x16xf32>
    %328 = math.exp %327 : vector<8x16xf32>
    %cst_105 = arith.constant dense<0.000000e+00> : vector<8xf32>
    %329 = vector.multi_reduction <add>, %328, %cst_105 [1] : vector<8x16xf32> to vector<8xf32>
    %330 = vector.shape_cast %329 : vector<8xf32> to vector<8x1xf32>
    %331 = tpu.reciprocal %330 {approx = true} : vector<8x1xf32> -> vector<8x1xf32>
    %332 = vector.broadcast %331 : vector<8x1xf32> to vector<8x16xf32>
    %333 = arith.mulf %328, %332 : vector<8x16xf32>
    %334 = vector.extract_strided_slice %315 {offsets = [0, 0], sizes = [16, 16], strides = [1, 1]} : vector<16x64xf32> to vector<16x16xf32>
    %cst_106 = arith.constant dense<0.000000e+00> : vector<8x16xf32>
    %335 = tpu.matmul %333, %334, %cst_106 {dimension_numbers = #tpu.dot_dimension_numbers<[1], [0], [0], [1], [0, 0, 1, 1], [], []>} : vector<8x16xf32>, vector<16x16xf32>, vector<8x16xf32> -> vector<8x16xf32>
    %336 = vector.extract_strided_slice %308 {offsets = [0, 16], sizes = [8, 16], strides = [1, 1]} : vector<8x64xf32> to vector<8x16xf32>
    %337 = vector.extract_strided_slice %314 {offsets = [0, 16], sizes = [16, 16], strides = [1, 1]} : vector<16x64xf32> to vector<16x16xf32>
    %cst_107 = arith.constant dense<0.000000e+00> : vector<8x16xf32>
    %338 = tpu.matmul %336, %337, %cst_107 {dimension_numbers = #tpu.dot_dimension_numbers<[1], [1], [0], [0], [0, 0, 1, 0], [], []>} : vector<8x16xf32>, vector<16x16xf32>, vector<8x16xf32> -> vector<8x16xf32>
    %cst_108 = arith.constant 2.500000e-01 : f32
    %339 = vector.broadcast %cst_108 : f32 to vector<8x16xf32>
    %340 = arith.mulf %338, %339 : vector<8x16xf32>
    %341 = arith.addf %340, %41 : vector<8x16xf32>
    %cst_109 = arith.constant dense<0xFF800000> : vector<8xf32>
    %342 = vector.multi_reduction <maximumf>, %341, %cst_109 [1] : vector<8x16xf32> to vector<8xf32>
    %343 = vector.shape_cast %342 : vector<8xf32> to vector<8x1xf32>
    %344 = vector.broadcast %343 : vector<8x1xf32> to vector<8x16xf32>
    %345 = arith.subf %341, %344 : vector<8x16xf32>
    %346 = math.exp %345 : vector<8x16xf32>
    %cst_110 = arith.constant dense<0.000000e+00> : vector<8xf32>
    %347 = vector.multi_reduction <add>, %346, %cst_110 [1] : vector<8x16xf32> to vector<8xf32>
    %348 = vector.shape_cast %347 : vector<8xf32> to vector<8x1xf32>
    %349 = tpu.reciprocal %348 {approx = true} : vector<8x1xf32> -> vector<8x1xf32>
    %350 = vector.broadcast %349 : vector<8x1xf32> to vector<8x16xf32>
    %351 = arith.mulf %346, %350 : vector<8x16xf32>
    %352 = vector.extract_strided_slice %315 {offsets = [0, 16], sizes = [16, 16], strides = [1, 1]} : vector<16x64xf32> to vector<16x16xf32>
    %cst_111 = arith.constant dense<0.000000e+00> : vector<8x16xf32>
    %353 = tpu.matmul %351, %352, %cst_111 {dimension_numbers = #tpu.dot_dimension_numbers<[1], [0], [0], [1], [0, 0, 1, 1], [], []>} : vector<8x16xf32>, vector<16x16xf32>, vector<8x16xf32> -> vector<8x16xf32>
    %354 = vector.extract_strided_slice %308 {offsets = [0, 32], sizes = [8, 16], strides = [1, 1]} : vector<8x64xf32> to vector<8x16xf32>
    %355 = vector.extract_strided_slice %314 {offsets = [0, 32], sizes = [16, 16], strides = [1, 1]} : vector<16x64xf32> to vector<16x16xf32>
    %cst_112 = arith.constant dense<0.000000e+00> : vector<8x16xf32>
    %356 = tpu.matmul %354, %355, %cst_112 {dimension_numbers = #tpu.dot_dimension_numbers<[1], [1], [0], [0], [0, 0, 1, 0], [], []>} : vector<8x16xf32>, vector<16x16xf32>, vector<8x16xf32> -> vector<8x16xf32>
    %cst_113 = arith.constant 2.500000e-01 : f32
    %357 = vector.broadcast %cst_113 : f32 to vector<8x16xf32>
    %358 = arith.mulf %356, %357 : vector<8x16xf32>
    %359 = arith.addf %358, %41 : vector<8x16xf32>
    %cst_114 = arith.constant dense<0xFF800000> : vector<8xf32>
    %360 = vector.multi_reduction <maximumf>, %359, %cst_114 [1] : vector<8x16xf32> to vector<8xf32>
    %361 = vector.shape_cast %360 : vector<8xf32> to vector<8x1xf32>
    %362 = vector.broadcast %361 : vector<8x1xf32> to vector<8x16xf32>
    %363 = arith.subf %359, %362 : vector<8x16xf32>
    %364 = math.exp %363 : vector<8x16xf32>
    %cst_115 = arith.constant dense<0.000000e+00> : vector<8xf32>
    %365 = vector.multi_reduction <add>, %364, %cst_115 [1] : vector<8x16xf32> to vector<8xf32>
    %366 = vector.shape_cast %365 : vector<8xf32> to vector<8x1xf32>
    %367 = tpu.reciprocal %366 {approx = true} : vector<8x1xf32> -> vector<8x1xf32>
    %368 = vector.broadcast %367 : vector<8x1xf32> to vector<8x16xf32>
    %369 = arith.mulf %364, %368 : vector<8x16xf32>
    %370 = vector.extract_strided_slice %315 {offsets = [0, 32], sizes = [16, 16], strides = [1, 1]} : vector<16x64xf32> to vector<16x16xf32>
    %cst_116 = arith.constant dense<0.000000e+00> : vector<8x16xf32>
    %371 = tpu.matmul %369, %370, %cst_116 {dimension_numbers = #tpu.dot_dimension_numbers<[1], [0], [0], [1], [0, 0, 1, 1], [], []>} : vector<8x16xf32>, vector<16x16xf32>, vector<8x16xf32> -> vector<8x16xf32>
    %372 = vector.extract_strided_slice %308 {offsets = [0, 48], sizes = [8, 16], strides = [1, 1]} : vector<8x64xf32> to vector<8x16xf32>
    %373 = vector.extract_strided_slice %314 {offsets = [0, 48], sizes = [16, 16], strides = [1, 1]} : vector<16x64xf32> to vector<16x16xf32>
    %cst_117 = arith.constant dense<0.000000e+00> : vector<8x16xf32>
    %374 = tpu.matmul %372, %373, %cst_117 {dimension_numbers = #tpu.dot_dimension_numbers<[1], [1], [0], [0], [0, 0, 1, 0], [], []>} : vector<8x16xf32>, vector<16x16xf32>, vector<8x16xf32> -> vector<8x16xf32>
    %cst_118 = arith.constant 2.500000e-01 : f32
    %375 = vector.broadcast %cst_118 : f32 to vector<8x16xf32>
    %376 = arith.mulf %374, %375 : vector<8x16xf32>
    %377 = arith.addf %376, %41 : vector<8x16xf32>
    %cst_119 = arith.constant dense<0xFF800000> : vector<8xf32>
    %378 = vector.multi_reduction <maximumf>, %377, %cst_119 [1] : vector<8x16xf32> to vector<8xf32>
    %379 = vector.shape_cast %378 : vector<8xf32> to vector<8x1xf32>
    %380 = vector.broadcast %379 : vector<8x1xf32> to vector<8x16xf32>
    %381 = arith.subf %377, %380 : vector<8x16xf32>
    %382 = math.exp %381 : vector<8x16xf32>
    %cst_120 = arith.constant dense<0.000000e+00> : vector<8xf32>
    %383 = vector.multi_reduction <add>, %382, %cst_120 [1] : vector<8x16xf32> to vector<8xf32>
    %384 = vector.shape_cast %383 : vector<8xf32> to vector<8x1xf32>
    %385 = tpu.reciprocal %384 {approx = true} : vector<8x1xf32> -> vector<8x1xf32>
    %386 = vector.broadcast %385 : vector<8x1xf32> to vector<8x16xf32>
    %387 = arith.mulf %382, %386 : vector<8x16xf32>
    %388 = vector.extract_strided_slice %315 {offsets = [0, 48], sizes = [16, 16], strides = [1, 1]} : vector<16x64xf32> to vector<16x16xf32>
    %cst_121 = arith.constant dense<0.000000e+00> : vector<8x16xf32>
    %389 = tpu.matmul %387, %388, %cst_121 {dimension_numbers = #tpu.dot_dimension_numbers<[1], [0], [0], [1], [0, 0, 1, 1], [], []>} : vector<8x16xf32>, vector<16x16xf32>, vector<8x16xf32> -> vector<8x16xf32>
    %390 = tpu.concatenate %335, %353, %371, %389 in 1 : vector<8x16xf32>, vector<8x16xf32>, vector<8x16xf32>, vector<8x16xf32> -> vector<8x64xf32>
    %cst_122 = arith.constant dense<0.000000e+00> : vector<8x32xf32>
    %391 = tpu.matmul %390, %316, %cst_122 {dimension_numbers = #tpu.dot_dimension_numbers<[1], [0], [0], [1], [0, 0, 1, 1], [], []>} : vector<8x64xf32>, vector<64x32xf32>, vector<8x32xf32> -> vector<8x32xf32>
    %392 = vector.broadcast %317 : vector<1x32xf32> to vector<8x32xf32>
    %393 = arith.addf %391, %392 : vector<8x32xf32>
    %394 = arith.addf %303, %393 : vector<8x32xf32>
    %c496 = arith.constant 496 : index
    %c0_123 = arith.constant 0 : index
    %395 = vector.load %arg1[%c496, %c0_123] : memref<632x192xf32, #tpu.memory_space<vmem>>, vector<1x32xf32>
    %c504 = arith.constant 504 : index
    %c0_124 = arith.constant 0 : index
    %396 = vector.load %arg1[%c504, %c0_124] : memref<632x192xf32, #tpu.memory_space<vmem>>, vector<1x32xf32>
    %cst_125 = arith.constant dense<0.000000e+00> : vector<8xf32>
    %397 = vector.multi_reduction <add>, %394, %cst_125 [1] : vector<8x32xf32> to vector<8xf32>
    %398 = vector.shape_cast %397 : vector<8xf32> to vector<8x1xf32>
    %cst_126 = arith.constant 3.200000e+01 : f32
    %399 = vector.broadcast %cst_126 : f32 to vector<8x1xf32>
    %400 = arith.divf %398, %399 : vector<8x1xf32>
    %401 = vector.broadcast %400 : vector<8x1xf32> to vector<8x32xf32>
    %402 = arith.subf %394, %401 : vector<8x32xf32>
    %403 = arith.mulf %402, %402 : vector<8x32xf32>
    %cst_127 = arith.constant dense<0.000000e+00> : vector<8xf32>
    %404 = vector.multi_reduction <add>, %403, %cst_127 [1] : vector<8x32xf32> to vector<8xf32>
    %405 = vector.shape_cast %404 : vector<8xf32> to vector<8x1xf32>
    %cst_128 = arith.constant 3.200000e+01 : f32
    %406 = vector.broadcast %cst_128 : f32 to vector<8x1xf32>
    %407 = arith.divf %405, %406 : vector<8x1xf32>
    %408 = vector.broadcast %400 : vector<8x1xf32> to vector<8x32xf32>
    %409 = arith.subf %394, %408 : vector<8x32xf32>
    %cst_129 = arith.constant 9.99999974E-6 : f32
    %410 = vector.broadcast %cst_129 : f32 to vector<8x1xf32>
    %411 = arith.addf %407, %410 : vector<8x1xf32>
    %412 = math.rsqrt %411 : vector<8x1xf32>
    %413 = vector.broadcast %412 : vector<8x1xf32> to vector<8x32xf32>
    %414 = arith.mulf %409, %413 : vector<8x32xf32>
    %415 = vector.broadcast %395 : vector<1x32xf32> to vector<8x32xf32>
    %416 = arith.mulf %414, %415 : vector<8x32xf32>
    %417 = vector.broadcast %396 : vector<1x32xf32> to vector<8x32xf32>
    %418 = arith.addf %416, %417 : vector<8x32xf32>
    %c512 = arith.constant 512 : index
    %c0_130 = arith.constant 0 : index
    %419 = vector.load %arg1[%c512, %c0_130] : memref<632x192xf32, #tpu.memory_space<vmem>>, vector<32x16xf32>
    %cst_131 = arith.constant dense<0.000000e+00> : vector<8x16xf32>
    %420 = tpu.matmul %418, %419, %cst_131 {dimension_numbers = #tpu.dot_dimension_numbers<[1], [0], [0], [1], [0, 0, 1, 1], [], []>} : vector<8x32xf32>, vector<32x16xf32>, vector<8x16xf32> -> vector<8x16xf32>
    %c544 = arith.constant 544 : index
    %c0_132 = arith.constant 0 : index
    %421 = vector.load %arg1[%c544, %c0_132] : memref<632x192xf32, #tpu.memory_space<vmem>>, vector<1x16xf32>
    %422 = vector.broadcast %421 : vector<1x16xf32> to vector<8x16xf32>
    %423 = arith.addf %420, %422 : vector<8x16xf32>
    %cst_133 = arith.constant 0.000000e+00 : f32
    %424 = vector.broadcast %cst_133 : f32 to vector<8x16xf32>
    %425 = arith.maximumf %423, %424 : vector<8x16xf32>
    %c552 = arith.constant 552 : index
    %c0_134 = arith.constant 0 : index
    %426 = vector.load %arg1[%c552, %c0_134] : memref<632x192xf32, #tpu.memory_space<vmem>>, vector<16x32xf32>
    %cst_135 = arith.constant dense<0.000000e+00> : vector<8x32xf32>
    %427 = tpu.matmul %425, %426, %cst_135 {dimension_numbers = #tpu.dot_dimension_numbers<[1], [0], [0], [1], [0, 0, 1, 1], [], []>} : vector<8x16xf32>, vector<16x32xf32>, vector<8x32xf32> -> vector<8x32xf32>
    %c568 = arith.constant 568 : index
    %c0_136 = arith.constant 0 : index
    %428 = vector.load %arg1[%c568, %c0_136] : memref<632x192xf32, #tpu.memory_space<vmem>>, vector<1x32xf32>
    %429 = vector.broadcast %428 : vector<1x32xf32> to vector<8x32xf32>
    %430 = arith.addf %427, %429 : vector<8x32xf32>
    %431 = arith.addf %418, %430 : vector<8x32xf32>
    %c576 = arith.constant 576 : index
    %c0_137 = arith.constant 0 : index
    %432 = vector.load %arg1[%c576, %c0_137] : memref<632x192xf32, #tpu.memory_space<vmem>>, vector<1x32xf32>
    %c584 = arith.constant 584 : index
    %c0_138 = arith.constant 0 : index
    %433 = vector.load %arg1[%c584, %c0_138] : memref<632x192xf32, #tpu.memory_space<vmem>>, vector<1x32xf32>
    %cst_139 = arith.constant dense<0.000000e+00> : vector<8xf32>
    %434 = vector.multi_reduction <add>, %431, %cst_139 [1] : vector<8x32xf32> to vector<8xf32>
    %435 = vector.shape_cast %434 : vector<8xf32> to vector<8x1xf32>
    %cst_140 = arith.constant 3.200000e+01 : f32
    %436 = vector.broadcast %cst_140 : f32 to vector<8x1xf32>
    %437 = arith.divf %435, %436 : vector<8x1xf32>
    %438 = vector.broadcast %437 : vector<8x1xf32> to vector<8x32xf32>
    %439 = arith.subf %431, %438 : vector<8x32xf32>
    %440 = arith.mulf %439, %439 : vector<8x32xf32>
    %cst_141 = arith.constant dense<0.000000e+00> : vector<8xf32>
    %441 = vector.multi_reduction <add>, %440, %cst_141 [1] : vector<8x32xf32> to vector<8xf32>
    %442 = vector.shape_cast %441 : vector<8xf32> to vector<8x1xf32>
    %cst_142 = arith.constant 3.200000e+01 : f32
    %443 = vector.broadcast %cst_142 : f32 to vector<8x1xf32>
    %444 = arith.divf %442, %443 : vector<8x1xf32>
    %445 = vector.broadcast %437 : vector<8x1xf32> to vector<8x32xf32>
    %446 = arith.subf %431, %445 : vector<8x32xf32>
    %cst_143 = arith.constant 9.99999974E-6 : f32
    %447 = vector.broadcast %cst_143 : f32 to vector<8x1xf32>
    %448 = arith.addf %444, %447 : vector<8x1xf32>
    %449 = math.rsqrt %448 : vector<8x1xf32>
    %450 = vector.broadcast %449 : vector<8x1xf32> to vector<8x32xf32>
    %451 = arith.mulf %446, %450 : vector<8x32xf32>
    %452 = vector.broadcast %432 : vector<1x32xf32> to vector<8x32xf32>
    %453 = arith.mulf %451, %452 : vector<8x32xf32>
    %454 = vector.broadcast %433 : vector<1x32xf32> to vector<8x32xf32>
    %455 = arith.addf %453, %454 : vector<8x32xf32>
    %456 = tpu.iota {dimensions = array<i32: 0>} : vector<2x8xi32>
    %457 = arith.sitofp %456 : vector<2x8xi32> to vector<2x8xf32>
    %458 = tpu.iota {dimensions = array<i32: 1>} : vector<2x8xi32>
    %459 = arith.sitofp %458 : vector<2x8xi32> to vector<2x8xf32>
    %cst_144 = arith.constant 2.500000e-01 : f32
    %460 = vector.broadcast %cst_144 : f32 to vector<2x8xf32>
    %461 = arith.mulf %459, %460 : vector<2x8xf32>
    %462 = math.floor %461 : vector<2x8xf32>
    %463 = arith.cmpf oeq, %457, %462 : vector<2x8xf32>
    %cst_145 = arith.constant 2.500000e-01 : f32
    %cst_146 = arith.constant 0.000000e+00 : f32
    %464 = vector.broadcast %cst_145 : f32 to vector<2x8xf32>
    %465 = vector.broadcast %cst_146 : f32 to vector<2x8xf32>
    %466 = arith.select %463, %464, %465 : vector<2x8xi1>, vector<2x8xf32>
    %cst_147 = arith.constant dense<0.000000e+00> : vector<2x32xf32>
    %467 = tpu.matmul %466, %455, %cst_147 {dimension_numbers = #tpu.dot_dimension_numbers<[1], [0], [0], [1], [0, 0, 1, 1], [], []>} : vector<2x8xf32>, vector<8x32xf32>, vector<2x32xf32> -> vector<2x32xf32>
    %c592 = arith.constant 592 : index
    %c0_148 = arith.constant 0 : index
    %468 = vector.load %arg1[%c592, %c0_148] : memref<632x192xf32, #tpu.memory_space<vmem>>, vector<32x4xf32>
    %cst_149 = arith.constant dense<0.000000e+00> : vector<2x4xf32>
    %469 = tpu.matmul %467, %468, %cst_149 {dimension_numbers = #tpu.dot_dimension_numbers<[1], [0], [0], [1], [0, 0, 1, 1], [], []>} : vector<2x32xf32>, vector<32x4xf32>, vector<2x4xf32> -> vector<2x4xf32>
    %c624 = arith.constant 624 : index
    %c0_150 = arith.constant 0 : index
    %470 = vector.load %arg1[%c624, %c0_150] : memref<632x192xf32, #tpu.memory_space<vmem>>, vector<1x4xf32>
    %471 = vector.broadcast %470 : vector<1x4xf32> to vector<2x4xf32>
    %472 = arith.addf %469, %471 : vector<2x4xf32>
    %c0_151 = arith.constant 0 : index
    %c0_152 = arith.constant 0 : index
    %473 = vector.load %arg2[%c0_151, %c0_152] : memref<2x4xf32, #tpu.memory_space<vmem>>, vector<2x4xf32>
    tpu.vector_store %arg2[%c0_151, %c0_152], %472 {strides = array<i32>} : memref<2x4xf32, #tpu.memory_space<vmem>>, vector<2x4xf32>,
    return
  }
}

</mosaic_0001>

<llo_original>
// kernel: forward.1
$region0: #{forward.1}
  #allocation0 [shape = 'u32[]', space=smem, size = 0x4, offset = 0x4, fixed_abs, tag = 'smem constant byte address 0x4 - core index']
  #allocation1 [shape = 'u32[144,128]{1,0:T(1,128)}', space=vmem, size = 0x12000, scoped, tag = 'internal scratch']
  %s0 = inlined_call_operand.vmem [shape: f32[16,32], index: 0, kind: input, shape index: {}]
  %s1 = inlined_call_operand.vmem [shape: f32[632,192], index: 1, kind: input, shape index: {}]
  %s2 = inlined_call_operand.hbm [shape: f32[2,4], index: 2, kind: output, shape index: {}]
  %s3 = sld [smem:[#allocation0]]
  $region18: #{forward.1} parent=0
    _
  %s5 = ssub.s32 1, %s3
  %s6 = scalar_select 0, %s5, %s3
  $region1: #{forward.1} parent=0
    #allocation2 [shape = 'u8[1024]{0}', space=vmem, size = 0x400, scoped, tag = 'output window, operand 0, single buffered']
    #allocation3 [shape = 's32[1]{0}', space=sflag, size = 0x4, scoped, tag = 'scoped memory for forward.1']
    %7 = vsyncpa [#allocation3], 0
    // Predicated region
    $region2: #{forward.1} parent=1 // pred_check
      _
    $region3: #{forward.1} parent=1 // pred_check_branch
      %9 = sbr.rel (0) target = $region5
    $region4: #{forward.1} parent=1 // pred_region
      _
    $region5: #{forward.1} parent=1 // pred_fallthru
      _
    // Predicated region
    $region6: #{forward.1} parent=1 // pred_check
      _
    $region7: #{forward.1} parent=1 // pred_check_branch
      %11 = sbr.rel (0) target = $region9
    $region8: #{forward.1} parent=1 // pred_region
      _
    $region9: #{forward.1} parent=1 // pred_fallthru
      _
    %v12 = vlaneseq
    %v13 = vshrl.u32 %v12, 7
    %v14 = vadd.s32 %v13, 8
    %v15 = vcvt.s32.f32 %v13
    %v16 = vcvt.s32.f32 %v14
    %v17 = vmul.f32 %v15, 0.125
    %v18 = vmul.f32 %v16, 0.125
    %v19 = vfloor.f32 %v17
    %v20 = vfloor.f32 %v18
    %v21 = vlaneseq
    %v22 = vand.u32 %v21, 127
    %v23 = vcvt.s32.f32 %v22
    %v24 = vmul.f32 %v23, 0.125
    %v25 = vfloor.f32 %v24
    %vm26 = vcmp.eq.f32.partialorder %v19, %v25
    %vm27 = vcmp.eq.f32.partialorder %v20, %v25
    %v28 = vsel %vm26, 0.0, -1e+09
    %v29 = vsel %vm27, 0.0, -1e+09
    %v30 = vmul.f32 %v15, 0.25
    %v31 = vfloor.f32 %v30
    %v32 = vmul.f32 %v23, 0.25
    %v33 = vfloor.f32 %v32
    %vm34 = vcmp.eq.f32.partialorder %v31, %v33
    %v35 = vsel %vm34, 0.0, -1e+09
    %vm36 = vcmp.eq.f32.partialorder %v31, %v25
    %v37 = vsel %vm36, 0.0, -1e+09
    %v38 = vld [vmem:[%s0] sm:$0xff]
    %v39 = vld [vmem:[%s0 + $0x8] sm:$0xff]
    %v40 = vld [vmem:[%s1 + $0x10] sm:$0xff]
    %v41 = vld [vmem:[%s1 + $0x18] sm:$0xff]
    %v42 = vld [vmem:[%s1 + $0x20] sm:$0xff]
    %v43 = vld [vmem:[%s1 + $0x28] sm:$0xff]
    %v44 = vld [vmem:[%s1 + $0x30] sm:$0xff]
    %v45 = vld [vmem:[%s1 + $0x38] sm:$0xff]
    %v46 = vld [vmem:[%s1 + $0x40] sm:$0xff]
    %v47 = vld [vmem:[%s1 + $0x48] sm:$0xff]
    %s48 = scalar_lea.vmem %s1, 80
    %v49 = vld [vmem:[%s48] ss:$8 sm:$0x3]
    %v51 = vlaneseq
    %v52 = vshrl.u32 %v51, 7
    %v53 = vsub.s32 0, %v52
    %v54 = vrot.slane %v49, %v53
    %v55 = vlaneseq
    %v56 = vshrl.u32 %v55, 7
    %v57 = vsub.s32 1, %v56
    %v58 = vrot.slane %v49, %v57
    %vm61 = vcmask 261120
    %v63 = vsel %vm61, %v38, 0
    %v66 = vsel %vm61, %v39, 0
    %68 = vmatprep.subr.mxu0 0.0
    %69 = vmatpush1.msra.mxu0 0.0
    %70 = vmatprep.subr.mxu0 0.0
    %71 = vmatpush1.msra.mxu0 0.0
    %72 = vmatprep.subr.mxu0 0.0
    %73 = vmatpush1.msra.mxu0 0.0
    %74 = vmatprep.subr.mxu0 0.0
    %75 = vmatpush1.msra.mxu0 0.0
    %76 = vmatprep.subr.mxu0 0.0
    %77 = vmatpush1.msra.mxu0 0.0
    %78 = vmatprep.subr.mxu0 0.0
    %79 = vmatpush1.msra.mxu0 0.0
    %80 = vmatprep.subr.mxu0 0.0
    %81 = vmatpush1.msra.mxu0 0.0
    %82 = vmatprep.subr.mxu0 0.0
    %83 = vmatpush1.msra.mxu0 0.0
    %84 = vmatprep.subr.mxu0 0.0
    %85 = vmatpush1.msra.mxu0 0.0
    %86 = vmatprep.subr.mxu0 0.0
    %87 = vmatpush1.msra.mxu0 0.0
    %88 = vmatprep.subr.mxu0 0.0
    %89 = vmatpush1.msra.mxu0 0.0
    %90 = vmatprep.subr.mxu0 0.0
    %91 = vmatpush1.msra.mxu0 0.0
    %92 = vmatprep.subr.mxu0 %v47
    %93 = vmatpush1.msra.mxu0 %v46
    %94 = vmatprep.subr.mxu0 %v45
    %95 = vmatpush1.msra.mxu0 %v44
    %96 = vmatprep.subr.mxu0 %v43
    %97 = vmatpush1.msra.mxu0 %v42
    %98 = vmatprep.subr.mxu0 %v41
    %99 = vmatpush1.msra.mxu0 %v40
    %100 = vmatprep.subr.mxu0 0.0
    %101 = vmatpush2.msra.mxu0 0.0
    %102 = vmatprep.subr.mxu0 0.0
    %103 = vmatpush2.msra.mxu0 0.0
    %104 = vmatprep.subr.mxu0 0.0
    %105 = vmatpush2.msra.mxu0 0.0
    %106 = vmatprep.subr.mxu0 0.0
    %107 = vmatpush2.msra.mxu0 0.0
    %108 = vmatprep.subr.mxu0 0.0
    %109 = vmatpush2.msra.mxu0 0.0
    %110 = vmatprep.subr.mxu0 0.0
    %111 = vmatpush2.msra.mxu0 0.0
    %112 = vmatprep.subr.mxu0 0.0
    %113 = vmatpush2.msra.mxu0 0.0
    %114 = vmatprep.subr.mxu0 0.0
    %115 = vmatpush2.msra.mxu0 0.0
    %116 = vmatprep.subr.mxu0 0.0
    %117 = vmatpush2.msra.mxu0 0.0
    %118 = vmatprep.subr.mxu0 0.0
    %119 = vmatpush2.msra.mxu0 0.0
    %120 = vmatprep.subr.mxu0 0.0
    %121 = vmatpush2.msra.mxu0 0.0
    %122 = vmatprep.subr.mxu0 0.0
    %123 = vmatpush2.msra.mxu0 0.0
    %124 = vmatprep.subr.mxu0 0.0
    %125 = vmatpush2.msra.mxu0 0.0
    %126 = vmatprep.subr.mxu0 0.0
    %127 = vmatpush2.msra.mxu0 0.0
    %128 = vmatprep.subr.mxu0 0.0
    %129 = vmatpush2.msra.mxu0 0.0
    %130 = vmatprep.subr.mxu0 0.0
    %131 = vmatpush2.msra.mxu0 0.0
    %132 = vmatprep.mubr.f32.mxu0 0.0
    %133 = vmatmul.mubr.f32.gmra.mxu0 %v63
    %v134 = vpop.f32.mrf.mxu0
    %v135 = vadd.f32 %v54, %v134
    %v136 = vpop.f32.mrf.mxu0
    %v137 = vadd.f32 %v58, %v136
    %138 = vmatprep.mubr.f32.mxu0 0.0
    %139 = vmatmul.mubr.f32.gmra.mxu0 %v66
    %v140 = vpop.f32.mrf.mxu0
    %v141 = vadd.f32 %v54, %v140
    %v142 = vpop.f32.mrf.mxu0
    %v143 = vadd.f32 %v58, %v142
    %144 = vdwg.mxu0
    %v145 = vld [vmem:[%s1 + $0x60] sm:$0xff]
    %v146 = vld [vmem:[%s1 + $0x70] sm:$0xff]
    %v147 = vld [vmem:[%s1 + $0x80] sm:$0xff]
    %v148 = vld [vmem:[%s1 + $0x90] sm:$0xff]
    %v149 = vld [vmem:[%s1 + $0xa0] sm:$0xff]
    %v150 = vld [vmem:[%s1 + $0xb0] sm:$0xff]
    %v151 = vld [vmem:[%s1 + $0xc0] sm:$0xff]
    %v152 = vld [vmem:[%s1 + $0xd0] sm:$0xff]
    %v153 = vld [vmem:[%s1 + $0xe0] ss:$0 sm:$0xff]
    %156 = vrot.lane.b32.xlu0 %v135, 64
    %v157 = vpop.permute.xlu0 %156
    %158 = vrot.lane.b32.xlu0 %v141, 64
    %v159 = vpop.permute.xlu0 %158
    %vm160 = vcmask 130048
    %v161 = vsel %vm160, %v135, 0
    %v163 = vsel %vm160, %v141, 0
    %v165 = vsel %vm160, %v157, 0
    %v167 = vsel %vm160, %v159, 0
    %169 = vmatprep.subr.mxu0 0.0
    %170 = vmatpush1.xpose.msra.mxu0 0.0
    %171 = vmatprep.subr.mxu0 0.0
    %172 = vmatpush1.xpose.msra.mxu0 0.0
    %173 = vmatprep.subr.mxu0 0.0
    %174 = vmatpush1.xpose.msra.mxu0 0.0
    %175 = vmatprep.subr.mxu0 0.0
    %176 = vmatpush1.xpose.msra.mxu0 0.0
    %177 = vmatprep.subr.mxu0 0.0
    %178 = vmatpush1.xpose.msra.mxu0 0.0
    %179 = vmatprep.subr.mxu0 0.0
    %180 = vmatpush1.xpose.msra.mxu0 0.0
    %181 = vmatprep.subr.mxu0 0.0
    %182 = vmatpush1.xpose.msra.mxu0 0.0
    %183 = vmatprep.subr.mxu0 0.0
    %184 = vmatpush1.xpose.msra.mxu0 0.0
    %185 = vmatprep.subr.mxu0 0.0
    %186 = vmatpush1.xpose.msra.mxu0 0.0
    %187 = vmatprep.subr.mxu0 0.0
    %188 = vmatpush1.xpose.msra.mxu0 0.0
    %189 = vmatprep.subr.mxu0 0.0
    %190 = vmatpush1.xpose.msra.mxu0 0.0
    %191 = vmatprep.subr.mxu0 0.0
    %192 = vmatpush1.xpose.msra.mxu0 0.0
    %193 = vmatprep.subr.mxu0 0.0
    %194 = vmatpush1.xpose.msra.mxu0 0.0
    %195 = vmatprep.subr.mxu0 0.0
    %196 = vmatpush1.xpose.msra.mxu0 0.0
    %197 = vmatprep.subr.mxu0 0.0
    %198 = vmatpush1.xpose.msra.mxu0 %v167
    %199 = vmatprep.subr.mxu0 0.0
    %200 = vmatpush1.xpose.msra.mxu0 %v165
    %201 = vmatprep.subr.mxu0 0.0
    %202 = vmatpush2.xpose.msra.mxu0 0.0
    %203 = vmatprep.subr.mxu0 0.0
    %204 = vmatpush2.xpose.msra.mxu0 0.0
    %205 = vmatprep.subr.mxu0 0.0
    %206 = vmatpush2.xpose.msra.mxu0 0.0
    %207 = vmatprep.subr.mxu0 0.0
    %208 = vmatpush2.xpose.msra.mxu0 0.0
    %209 = vmatprep.subr.mxu0 0.0
    %210 = vmatpush2.xpose.msra.mxu0 0.0
    %211 = vmatprep.subr.mxu0 0.0
    %212 = vmatpush2.xpose.msra.mxu0 0.0
    %213 = vmatprep.subr.mxu0 0.0
    %214 = vmatpush2.xpose.msra.mxu0 0.0
    %215 = vmatprep.subr.mxu0 0.0
    %216 = vmatpush2.xpose.msra.mxu0 0.0
    %217 = vmatprep.subr.mxu0 0.0
    %218 = vmatpush2.xpose.msra.mxu0 0.0
    %219 = vmatprep.subr.mxu0 0.0
    %220 = vmatpush2.xpose.msra.mxu0 0.0
    %221 = vmatprep.subr.mxu0 0.0
    %222 = vmatpush2.xpose.msra.mxu0 0.0
    %223 = vmatprep.subr.mxu0 0.0
    %224 = vmatpush2.xpose.msra.mxu0 0.0
    %225 = vmatprep.subr.mxu0 0.0
    %226 = vmatpush2.xpose.msra.mxu0 0.0
    %227 = vmatprep.subr.mxu0 0.0
    %228 = vmatpush2.xpose.msra.mxu0 0.0
    %229 = vmatprep.subr.mxu0 0.0
    %230 = vmatpush2.xpose.msra.mxu0 0.0
    %231 = vmatprep.subr.mxu0 0.0
    %232 = vmatpush2.xpose.msra.mxu0 0.0
    %233 = vmatprep.mubr.f32.mxu0 0.0
    %234 = vmatmul.mubr.f32.gmra.mxu0 %v161
    %v235 = vpop.f32.mrf.mxu0
    %v236 = vadd.f32 0.0, %v235
    %v237 = vpop.f32.mrf.mxu0
    %238 = vmatprep.mubr.f32.mxu0 0.0
    %239 = vmatmul.mubr.f32.gmra.mxu0 %v163
    %v240 = vpop.f32.mrf.mxu0
    %v241 = vadd.f32 0.0, %v240
    %v242 = vpop.f32.mrf.mxu0
    %243 = vdwg.mxu0
    %v244 = vmul.f32 %v236, 0.25
    %v245 = vmul.f32 %v241, 0.25
    %v246 = vadd.f32 %v244, %v28
    %v247 = vadd.f32 %v245, %v29
    %v248 = vsel %vm160, %v246, -inf
    %249 = vmax.xlane.f32.xlu0 %v248
    %v250 = vpop.xlane.xlu0 %249
    %v251 = vsel %vm160, %v247, -inf
    %252 = vmax.xlane.f32.xlu0 %v251
    %v253 = vpop.xlane.xlu0 %252
    %v254 = vsub.f32 %v246, %v250
    %v255 = vsub.f32 %v247, %v253
    %v256 = vmul.f32 %v254, 1.442695
    %v257 = vpow.pop %v256
    %v258 = vmul.f32 %v255, 1.442695
    %v259 = vpow.pop %v258
    %v260 = vsel %vm160, %v257, 0.0
    %261 = vadd.xlane.f32.xlu0 %v260
    %v262 = vpop.xlane.xlu0 %261
    %v263 = vsel %vm160, %v259, 0.0
    %264 = vadd.xlane.f32.xlu0 %v263
    %v265 = vpop.xlane.xlu0 %264
    %v266 = vrcp.pop %v262
    %v267 = vrcp.pop %v265
    %v268 = vmul.f32 %v257, %v266
    %v269 = vmul.f32 %v259, %v267
    %v271 = vsel %vm160, %v268, 0
    %v274 = vsel %vm160, %v269, 0
    %276 = vmatprep.subr.mxu0 0.0
    %277 = vmatpush1.msra.mxu0 0.0
    %278 = vmatprep.subr.mxu0 0.0
    %279 = vmatpush1.msra.mxu0 0.0
    %280 = vmatprep.subr.mxu0 0.0
    %281 = vmatpush1.msra.mxu0 0.0
    %282 = vmatprep.subr.mxu0 0.0
    %283 = vmatpush1.msra.mxu0 0.0
    %284 = vmatprep.subr.mxu0 0.0
    %285 = vmatpush1.msra.mxu0 0.0
    %286 = vmatprep.subr.mxu0 0.0
    %287 = vmatpush1.msra.mxu0 0.0
    %288 = vmatprep.subr.mxu0 0.0
    %289 = vmatpush1.msra.mxu0 0.0
    %290 = vmatprep.subr.mxu0 0.0
    %291 = vmatpush1.msra.mxu0 0.0
    %292 = vmatprep.subr.mxu0 0.0
    %293 = vmatpush1.msra.mxu0 0.0
    %294 = vmatprep.subr.mxu0 0.0
    %295 = vmatpush1.msra.mxu0 0.0
    %296 = vmatprep.subr.mxu0 0.0
    %297 = vmatpush1.msra.mxu0 0.0
    %298 = vmatprep.subr.mxu0 0.0
    %299 = vmatpush1.msra.mxu0 0.0
    %300 = vmatprep.subr.mxu0 0.0
    %301 = vmatpush1.msra.mxu0 0.0
    %302 = vmatprep.subr.mxu0 0.0
    %303 = vmatpush1.msra.mxu0 0.0
    %304 = vmatprep.subr.mxu0 0.0
    %305 = vmatpush1.msra.mxu0 %v143
    %306 = vmatprep.subr.mxu0 0.0
    %307 = vmatpush1.msra.mxu0 %v137
    %308 = vmatprep.subr.mxu0 0.0
    %309 = vmatpush2.msra.mxu0 0.0
    %310 = vmatprep.subr.mxu0 0.0
    %311 = vmatpush2.msra.mxu0 0.0
    %312 = vmatprep.subr.mxu0 0.0
    %313 = vmatpush2.msra.mxu0 0.0
    %314 = vmatprep.subr.mxu0 0.0
    %315 = vmatpush2.msra.mxu0 0.0
    %316 = vmatprep.subr.mxu0 0.0
    %317 = vmatpush2.msra.mxu0 0.0
    %318 = vmatprep.subr.mxu0 0.0
    %319 = vmatpush2.msra.mxu0 0.0
    %320 = vmatprep.subr.mxu0 0.0
    %321 = vmatpush2.msra.mxu0 0.0
    %322 = vmatprep.subr.mxu0 0.0
    %323 = vmatpush2.msra.mxu0 0.0
    %324 = vmatprep.subr.mxu0 0.0
    %325 = vmatpush2.msra.mxu0 0.0
    %326 = vmatprep.subr.mxu0 0.0
    %327 = vmatpush2.msra.mxu0 0.0
    %328 = vmatprep.subr.mxu0 0.0
    %329 = vmatpush2.msra.mxu0 0.0
    %330 = vmatprep.subr.mxu0 0.0
    %331 = vmatpush2.msra.mxu0 0.0
    %332 = vmatprep.subr.mxu0 0.0
    %333 = vmatpush2.msra.mxu0 0.0
    %334 = vmatprep.subr.mxu0 0.0
    %335 = vmatpush2.msra.mxu0 0.0
    %336 = vmatprep.subr.mxu0 0.0
    %337 = vmatpush2.msra.mxu0 0.0
    %338 = vmatprep.subr.mxu0 0.0
    %339 = vmatpush2.msra.mxu0 0.0
    %340 = vmatprep.mubr.f32.mxu0 0.0
    %341 = vmatmul.mubr.f32.gmra.mxu0 %v271
    %v342 = vpop.f32.mrf.mxu0
    %v343 = vadd.f32 0.0, %v342
    %v344 = vpop.f32.mrf.mxu0
    %345 = vmatprep.mubr.f32.mxu0 0.0
    %346 = vmatmul.mubr.f32.gmra.mxu0 %v274
    %v347 = vpop.f32.mrf.mxu0
    %v348 = vadd.f32 0.0, %v347
    %v349 = vpop.f32.mrf.mxu0
    %350 = vdwg.mxu0
    %351 = vrot.lane.b32.xlu0 %v135, 112
    %v352 = vpop.permute.xlu0 %351
    %353 = vrot.lane.b32.xlu0 %v141, 112
    %v354 = vpop.permute.xlu0 %353
    %355 = vrot.lane.b32.xlu0 %v135, 48
    %v356 = vpop.permute.xlu0 %355
    %357 = vrot.lane.b32.xlu0 %v141, 48
    %v358 = vpop.permute.xlu0 %357
    %v359 = vsel %vm160, %v352, 0
    %v361 = vsel %vm160, %v354, 0
    %v363 = vsel %vm160, %v356, 0
    %v365 = vsel %vm160, %v358, 0
    %367 = vmatprep.subr.mxu0 0.0
    %368 = vmatpush1.xpose.msra.mxu0 0.0
    %369 = vmatprep.subr.mxu0 0.0
    %370 = vmatpush1.xpose.msra.mxu0 0.0
    %371 = vmatprep.subr.mxu0 0.0
    %372 = vmatpush1.xpose.msra.mxu0 0.0
    %373 = vmatprep.subr.mxu0 0.0
    %374 = vmatpush1.xpose.msra.mxu0 0.0
    %375 = vmatprep.subr.mxu0 0.0
    %376 = vmatpush1.xpose.msra.mxu0 0.0
    %377 = vmatprep.subr.mxu0 0.0
    %378 = vmatpush1.xpose.msra.mxu0 0.0
    %379 = vmatprep.subr.mxu0 0.0
    %380 = vmatpush1.xpose.msra.mxu0 0.0
    %381 = vmatprep.subr.mxu0 0.0
    %382 = vmatpush1.xpose.msra.mxu0 0.0
    %383 = vmatprep.subr.mxu0 0.0
    %384 = vmatpush1.xpose.msra.mxu0 0.0
    %385 = vmatprep.subr.mxu0 0.0
    %386 = vmatpush1.xpose.msra.mxu0 0.0
    %387 = vmatprep.subr.mxu0 0.0
    %388 = vmatpush1.xpose.msra.mxu0 0.0
    %389 = vmatprep.subr.mxu0 0.0
    %390 = vmatpush1.xpose.msra.mxu0 0.0
    %391 = vmatprep.subr.mxu0 0.0
    %392 = vmatpush1.xpose.msra.mxu0 0.0
    %393 = vmatprep.subr.mxu0 0.0
    %394 = vmatpush1.xpose.msra.mxu0 0.0
    %395 = vmatprep.subr.mxu0 0.0
    %396 = vmatpush1.xpose.msra.mxu0 %v365
    %397 = vmatprep.subr.mxu0 0.0
    %398 = vmatpush1.xpose.msra.mxu0 %v363
    %399 = vmatprep.subr.mxu0 0.0
    %400 = vmatpush2.xpose.msra.mxu0 0.0
    %401 = vmatprep.subr.mxu0 0.0
    %402 = vmatpush2.xpose.msra.mxu0 0.0
    %403 = vmatprep.subr.mxu0 0.0
    %404 = vmatpush2.xpose.msra.mxu0 0.0
    %405 = vmatprep.subr.mxu0 0.0
    %406 = vmatpush2.xpose.msra.mxu0 0.0
    %407 = vmatprep.subr.mxu0 0.0
    %408 = vmatpush2.xpose.msra.mxu0 0.0
    %409 = vmatprep.subr.mxu0 0.0
    %410 = vmatpush2.xpose.msra.mxu0 0.0
    %411 = vmatprep.subr.mxu0 0.0
    %412 = vmatpush2.xpose.msra.mxu0 0.0
    %413 = vmatprep.subr.mxu0 0.0
    %414 = vmatpush2.xpose.msra.mxu0 0.0
    %415 = vmatprep.subr.mxu0 0.0
    %416 = vmatpush2.xpose.msra.mxu0 0.0
    %417 = vmatprep.subr.mxu0 0.0
    %418 = vmatpush2.xpose.msra.mxu0 0.0
    %419 = vmatprep.subr.mxu0 0.0
    %420 = vmatpush2.xpose.msra.mxu0 0.0
    %421 = vmatprep.subr.mxu0 0.0
    %422 = vmatpush2.xpose.msra.mxu0 0.0
    %423 = vmatprep.subr.mxu0 0.0
    %424 = vmatpush2.xpose.msra.mxu0 0.0
    %425 = vmatprep.subr.mxu0 0.0
    %426 = vmatpush2.xpose.msra.mxu0 0.0
    %427 = vmatprep.subr.mxu0 0.0
    %428 = vmatpush2.xpose.msra.mxu0 0.0
    %429 = vmatprep.subr.mxu0 0.0
    %430 = vmatpush2.xpose.msra.mxu0 0.0
    %431 = vmatprep.mubr.f32.mxu0 0.0
    %432 = vmatmul.mubr.f32.gmra.mxu0 %v359
    %v433 = vpop.f32.mrf.mxu0
    %v434 = vadd.f32 0.0, %v433
    %v435 = vpop.f32.mrf.mxu0
    %436 = vmatprep.mubr.f32.mxu0 0.0
    %437 = vmatmul.mubr.f32.gmra.mxu0 %v361
    %v438 = vpop.f32.mrf.mxu0
    %v439 = vadd.f32 0.0, %v438
    %v440 = vpop.f32.mrf.mxu0
    %441 = vdwg.mxu0
    %v442 = vmul.f32 %v434, 0.25
    %v443 = vmul.f32 %v439, 0.25
    %v444 = vadd.f32 %v442, %v28
    %v445 = vadd.f32 %v443, %v29
    %v446 = vsel %vm160, %v444, -inf
    %447 = vmax.xlane.f32.xlu0 %v446
    %v448 = vpop.xlane.xlu0 %447
    %v449 = vsel %vm160, %v445, -inf
    %450 = vmax.xlane.f32.xlu0 %v449
    %v451 = vpop.xlane.xlu0 %450
    %v452 = vsub.f32 %v444, %v448
    %v453 = vsub.f32 %v445, %v451
    %v454 = vmul.f32 %v452, 1.442695
    %v455 = vpow.pop %v454
    %v456 = vmul.f32 %v453, 1.442695
    %v457 = vpow.pop %v456
    %v458 = vsel %vm160, %v455, 0.0
    %459 = vadd.xlane.f32.xlu0 %v458
    %v460 = vpop.xlane.xlu0 %459
    %v461 = vsel %vm160, %v457, 0.0
    %462 = vadd.xlane.f32.xlu0 %v461
    %v463 = vpop.xlane.xlu0 %462
    %v464 = vrcp.pop %v460
    %v465 = vrcp.pop %v463
    %v466 = vmul.f32 %v455, %v464
    %v467 = vmul.f32 %v457, %v465
    %470 = vrot.lane.b32.xlu0 %v137, 112
    %v471 = vpop.permute.xlu0 %470
    %472 = vrot.lane.b32.xlu0 %v143, 112
    %v473 = vpop.permute.xlu0 %472
    %v477 = vsel %vm160, %v466, 0
    %v480 = vsel %vm160, %v467, 0
    %482 = vmatprep.subr.mxu0 0.0
    %483 = vmatpush1.msra.mxu0 0.0
    %484 = vmatprep.subr.mxu0 0.0
    %485 = vmatpush1.msra.mxu0 0.0
    %486 = vmatprep.subr.mxu0 0.0
    %487 = vmatpush1.msra.mxu0 0.0
    %488 = vmatprep.subr.mxu0 0.0
    %489 = vmatpush1.msra.mxu0 0.0
    %490 = vmatprep.subr.mxu0 0.0
    %491 = vmatpush1.msra.mxu0 0.0
    %492 = vmatprep.subr.mxu0 0.0
    %493 = vmatpush1.msra.mxu0 0.0
    %494 = vmatprep.subr.mxu0 0.0
    %495 = vmatpush1.msra.mxu0 0.0
    %496 = vmatprep.subr.mxu0 0.0
    %497 = vmatpush1.msra.mxu0 0.0
    %498 = vmatprep.subr.mxu0 0.0
    %499 = vmatpush1.msra.mxu0 0.0
    %500 = vmatprep.subr.mxu0 0.0
    %501 = vmatpush1.msra.mxu0 0.0
    %502 = vmatprep.subr.mxu0 0.0
    %503 = vmatpush1.msra.mxu0 0.0
    %504 = vmatprep.subr.mxu0 0.0
    %505 = vmatpush1.msra.mxu0 0.0
    %506 = vmatprep.subr.mxu0 0.0
    %507 = vmatpush1.msra.mxu0 0.0
    %508 = vmatprep.subr.mxu0 0.0
    %509 = vmatpush1.msra.mxu0 0.0
    %510 = vmatprep.subr.mxu0 0.0
    %511 = vmatpush1.msra.mxu0 %v473
    %512 = vmatprep.subr.mxu0 0.0
    %513 = vmatpush1.msra.mxu0 %v471
    %514 = vmatprep.subr.mxu0 0.0
    %515 = vmatpush2.msra.mxu0 0.0
    %516 = vmatprep.subr.mxu0 0.0
    %517 = vmatpush2.msra.mxu0 0.0
    %518 = vmatprep.subr.mxu0 0.0
    %519 = vmatpush2.msra.mxu0 0.0
    %520 = vmatprep.subr.mxu0 0.0
    %521 = vmatpush2.msra.mxu0 0.0
    %522 = vmatprep.subr.mxu0 0.0
    %523 = vmatpush2.msra.mxu0 0.0
    %524 = vmatprep.subr.mxu0 0.0
    %525 = vmatpush2.msra.mxu0 0.0
    %526 = vmatprep.subr.mxu0 0.0
    %527 = vmatpush2.msra.mxu0 0.0
    %528 = vmatprep.subr.mxu0 0.0
    %529 = vmatpush2.msra.mxu0 0.0
    %530 = vmatprep.subr.mxu0 0.0
    %531 = vmatpush2.msra.mxu0 0.0
    %532 = vmatprep.subr.mxu0 0.0
    %533 = vmatpush2.msra.mxu0 0.0
    %534 = vmatprep.subr.mxu0 0.0
    %535 = vmatpush2.msra.mxu0 0.0
    %536 = vmatprep.subr.mxu0 0.0
    %537 = vmatpush2.msra.mxu0 0.0
    %538 = vmatprep.subr.mxu0 0.0
    %539 = vmatpush2.msra.mxu0 0.0
    %540 = vmatprep.subr.mxu0 0.0
    %541 = vmatpush2.msra.mxu0 0.0
    %542 = vmatprep.subr.mxu0 0.0
    %543 = vmatpush2.msra.mxu0 0.0
    %544 = vmatprep.subr.mxu0 0.0
    %545 = vmatpush2.msra.mxu0 0.0
    %546 = vmatprep.mubr.f32.mxu0 0.0
    %547 = vmatmul.mubr.f32.gmra.mxu0 %v477
    %v548 = vpop.f32.mrf.mxu0
    %v549 = vadd.f32 0.0, %v548
    %v550 = vpop.f32.mrf.mxu0
    %551 = vmatprep.mubr.f32.mxu0 0.0
    %552 = vmatmul.mubr.f32.gmra.mxu0 %v480
    %v553 = vpop.f32.mrf.mxu0
    %v554 = vadd.f32 0.0, %v553
    %v555 = vpop.f32.mrf.mxu0
    %556 = vdwg.mxu0
    %557 = vrot.lane.b32.xlu0 %v135, 96
    %v558 = vpop.permute.xlu0 %557
    %559 = vrot.lane.b32.xlu0 %v141, 96
    %v560 = vpop.permute.xlu0 %559
    %561 = vrot.lane.b32.xlu0 %v135, 32
    %v562 = vpop.permute.xlu0 %561
    %563 = vrot.lane.b32.xlu0 %v141, 32
    %v564 = vpop.permute.xlu0 %563
    %v565 = vsel %vm160, %v558, 0
    %v567 = vsel %vm160, %v560, 0
    %v569 = vsel %vm160, %v562, 0
    %v571 = vsel %vm160, %v564, 0
    %573 = vmatprep.subr.mxu0 0.0
    %574 = vmatpush1.xpose.msra.mxu0 0.0
    %575 = vmatprep.subr.mxu0 0.0
    %576 = vmatpush1.xpose.msra.mxu0 0.0
    %577 = vmatprep.subr.mxu0 0.0
    %578 = vmatpush1.xpose.msra.mxu0 0.0
    %579 = vmatprep.subr.mxu0 0.0
    %580 = vmatpush1.xpose.msra.mxu0 0.0
    %581 = vmatprep.subr.mxu0 0.0
    %582 = vmatpush1.xpose.msra.mxu0 0.0
    %583 = vmatprep.subr.mxu0 0.0
    %584 = vmatpush1.xpose.msra.mxu0 0.0
    %585 = vmatprep.subr.mxu0 0.0
    %586 = vmatpush1.xpose.msra.mxu0 0.0
    %587 = vmatprep.subr.mxu0 0.0
    %588 = vmatpush1.xpose.msra.mxu0 0.0
    %589 = vmatprep.subr.mxu0 0.0
    %590 = vmatpush1.xpose.msra.mxu0 0.0
    %591 = vmatprep.subr.mxu0 0.0
    %592 = vmatpush1.xpose.msra.mxu0 0.0
    %593 = vmatprep.subr.mxu0 0.0
    %594 = vmatpush1.xpose.msra.mxu0 0.0
    %595 = vmatprep.subr.mxu0 0.0
    %596 = vmatpush1.xpose.msra.mxu0 0.0
    %597 = vmatprep.subr.mxu0 0.0
    %598 = vmatpush1.xpose.msra.mxu0 0.0
    %599 = vmatprep.subr.mxu0 0.0
    %600 = vmatpush1.xpose.msra.mxu0 0.0
    %601 = vmatprep.subr.mxu0 0.0
    %602 = vmatpush1.xpose.msra.mxu0 %v571
    %603 = vmatprep.subr.mxu0 0.0
    %604 = vmatpush1.xpose.msra.mxu0 %v569
    %605 = vmatprep.subr.mxu0 0.0
    %606 = vmatpush2.xpose.msra.mxu0 0.0
    %607 = vmatprep.subr.mxu0 0.0
    %608 = vmatpush2.xpose.msra.mxu0 0.0
    %609 = vmatprep.subr.mxu0 0.0
    %610 = vmatpush2.xpose.msra.mxu0 0.0
    %611 = vmatprep.subr.mxu0 0.0
    %612 = vmatpush2.xpose.msra.mxu0 0.0
    %613 = vmatprep.subr.mxu0 0.0
    %614 = vmatpush2.xpose.msra.mxu0 0.0
    %615 = vmatprep.subr.mxu0 0.0
    %616 = vmatpush2.xpose.msra.mxu0 0.0
    %617 = vmatprep.subr.mxu0 0.0
    %618 = vmatpush2.xpose.msra.mxu0 0.0
    %619 = vmatprep.subr.mxu0 0.0
    %620 = vmatpush2.xpose.msra.mxu0 0.0
    %621 = vmatprep.subr.mxu0 0.0
    %622 = vmatpush2.xpose.msra.mxu0 0.0
    %623 = vmatprep.subr.mxu0 0.0
    %624 = vmatpush2.xpose.msra.mxu0 0.0
    %625 = vmatprep.subr.mxu0 0.0
    %626 = vmatpush2.xpose.msra.mxu0 0.0
    %627 = vmatprep.subr.mxu0 0.0
    %628 = vmatpush2.xpose.msra.mxu0 0.0
    %629 = vmatprep.subr.mxu0 0.0
    %630 = vmatpush2.xpose.msra.mxu0 0.0
    %631 = vmatprep.subr.mxu0 0.0
    %632 = vmatpush2.xpose.msra.mxu0 0.0
    %633 = vmatprep.subr.mxu0 0.0
    %634 = vmatpush2.xpose.msra.mxu0 0.0
    %635 = vmatprep.subr.mxu0 0.0
    %636 = vmatpush2.xpose.msra.mxu0 0.0
    %637 = vmatprep.mubr.f32.mxu0 0.0
    %638 = vmatmul.mubr.f32.gmra.mxu0 %v565
    %v639 = vpop.f32.mrf.mxu0
    %v640 = vadd.f32 0.0, %v639
    %v641 = vpop.f32.mrf.mxu0
    %642 = vmatprep.mubr.f32.mxu0 0.0
    %643 = vmatmul.mubr.f32.gmra.mxu0 %v567
    %v644 = vpop.f32.mrf.mxu0
    %v645 = vadd.f32 0.0, %v644
    %v646 = vpop.f32.mrf.mxu0
    %647 = vdwg.mxu0
    %v648 = vmul.f32 %v640, 0.25
    %v649 = vmul.f32 %v645, 0.25
    %v650 = vadd.f32 %v648, %v28
    %v651 = vadd.f32 %v649, %v29
    %v652 = vsel %vm160, %v650, -inf
    %653 = vmax.xlane.f32.xlu0 %v652
    %v654 = vpop.xlane.xlu0 %653
    %v655 = vsel %vm160, %v651, -inf
    %656 = vmax.xlane.f32.xlu0 %v655
    %v657 = vpop.xlane.xlu0 %656
    %v658 = vsub.f32 %v650, %v654
    %v659 = vsub.f32 %v651, %v657
    %v660 = vmul.f32 %v658, 1.442695
    %v661 = vpow.pop %v660
    %v662 = vmul.f32 %v659, 1.442695
    %v663 = vpow.pop %v662
    %v664 = vsel %vm160, %v661, 0.0
    %665 = vadd.xlane.f32.xlu0 %v664
    %v666 = vpop.xlane.xlu0 %665
    %v667 = vsel %vm160, %v663, 0.0
    %668 = vadd.xlane.f32.xlu0 %v667
    %v669 = vpop.xlane.xlu0 %668
    %v670 = vrcp.pop %v666
    %v671 = vrcp.pop %v669
    %v672 = vmul.f32 %v661, %v670
    %v673 = vmul.f32 %v663, %v671
    %674 = vrot.lane.b32.xlu0 %v137, 96
    %v675 = vpop.permute.xlu0 %674
    %676 = vrot.lane.b32.xlu0 %v143, 96
    %v677 = vpop.permute.xlu0 %676
    %v681 = vsel %vm160, %v672, 0
    %v684 = vsel %vm160, %v673, 0
    %686 = vmatprep.subr.mxu0 0.0
    %687 = vmatpush1.msra.mxu0 0.0
    %688 = vmatprep.subr.mxu0 0.0
    %689 = vmatpush1.msra.mxu0 0.0
    %690 = vmatprep.subr.mxu0 0.0
    %691 = vmatpush1.msra.mxu0 0.0
    %692 = vmatprep.subr.mxu0 0.0
    %693 = vmatpush1.msra.mxu0 0.0
    %694 = vmatprep.subr.mxu0 0.0
    %695 = vmatpush1.msra.mxu0 0.0
    %696 = vmatprep.subr.mxu0 0.0
    %697 = vmatpush1.msra.mxu0 0.0
    %698 = vmatprep.subr.mxu0 0.0
    %699 = vmatpush1.msra.mxu0 0.0
    %700 = vmatprep.subr.mxu0 0.0
    %701 = vmatpush1.msra.mxu0 0.0
    %702 = vmatprep.subr.mxu0 0.0
    %703 = vmatpush1.msra.mxu0 0.0
    %704 = vmatprep.subr.mxu0 0.0
    %705 = vmatpush1.msra.mxu0 0.0
    %706 = vmatprep.subr.mxu0 0.0
    %707 = vmatpush1.msra.mxu0 0.0
    %708 = vmatprep.subr.mxu0 0.0
    %709 = vmatpush1.msra.mxu0 0.0
    %710 = vmatprep.subr.mxu0 0.0
    %711 = vmatpush1.msra.mxu0 0.0
    %712 = vmatprep.subr.mxu0 0.0
    %713 = vmatpush1.msra.mxu0 0.0
    %714 = vmatprep.subr.mxu0 0.0
    %715 = vmatpush1.msra.mxu0 %v677
    %716 = vmatprep.subr.mxu0 0.0
    %717 = vmatpush1.msra.mxu0 %v675
    %718 = vmatprep.subr.mxu0 0.0
    %719 = vmatpush2.msra.mxu0 0.0
    %720 = vmatprep.subr.mxu0 0.0
    %721 = vmatpush2.msra.mxu0 0.0
    %722 = vmatprep.subr.mxu0 0.0
    %723 = vmatpush2.msra.mxu0 0.0
    %724 = vmatprep.subr.mxu0 0.0
    %725 = vmatpush2.msra.mxu0 0.0
    %726 = vmatprep.subr.mxu0 0.0
    %727 = vmatpush2.msra.mxu0 0.0
    %728 = vmatprep.subr.mxu0 0.0
    %729 = vmatpush2.msra.mxu0 0.0
    %730 = vmatprep.subr.mxu0 0.0
    %731 = vmatpush2.msra.mxu0 0.0
    %732 = vmatprep.subr.mxu0 0.0
    %733 = vmatpush2.msra.mxu0 0.0
    %734 = vmatprep.subr.mxu0 0.0
    %735 = vmatpush2.msra.mxu0 0.0
    %736 = vmatprep.subr.mxu0 0.0
    %737 = vmatpush2.msra.mxu0 0.0
    %738 = vmatprep.subr.mxu0 0.0
    %739 = vmatpush2.msra.mxu0 0.0
    %740 = vmatprep.subr.mxu0 0.0
    %741 = vmatpush2.msra.mxu0 0.0
    %742 = vmatprep.subr.mxu0 0.0
    %743 = vmatpush2.msra.mxu0 0.0
    %744 = vmatprep.subr.mxu0 0.0
    %745 = vmatpush2.msra.mxu0 0.0
    %746 = vmatprep.subr.mxu0 0.0
    %747 = vmatpush2.msra.mxu0 0.0
    %748 = vmatprep.subr.mxu0 0.0
    %749 = vmatpush2.msra.mxu0 0.0
    %750 = vmatprep.mubr.f32.mxu0 0.0
    %751 = vmatmul.mubr.f32.gmra.mxu0 %v681
    %v752 = vpop.f32.mrf.mxu0
    %v753 = vadd.f32 0.0, %v752
    %v754 = vpop.f32.mrf.mxu0
    %755 = vmatprep.mubr.f32.mxu0 0.0
    %756 = vmatmul.mubr.f32.gmra.mxu0 %v684
    %v757 = vpop.f32.mrf.mxu0
    %v758 = vadd.f32 0.0, %v757
    %v759 = vpop.f32.mrf.mxu0
    %760 = vdwg.mxu0
    %761 = vrot.lane.b32.xlu0 %v135, 80
    %v762 = vpop.permute.xlu0 %761
    %763 = vrot.lane.b32.xlu0 %v141, 80
    %v764 = vpop.permute.xlu0 %763
    %765 = vrot.lane.b32.xlu0 %v135, 16
    %v766 = vpop.permute.xlu0 %765
    %767 = vrot.lane.b32.xlu0 %v141, 16
    %v768 = vpop.permute.xlu0 %767
    %v769 = vsel %vm160, %v762, 0
    %v771 = vsel %vm160, %v764, 0
    %v773 = vsel %vm160, %v766, 0
    %v775 = vsel %vm160, %v768, 0
    %777 = vmatprep.subr.mxu0 0.0
    %778 = vmatpush1.xpose.msra.mxu0 0.0
    %779 = vmatprep.subr.mxu0 0.0
    %780 = vmatpush1.xpose.msra.mxu0 0.0
    %781 = vmatprep.subr.mxu0 0.0
    %782 = vmatpush1.xpose.msra.mxu0 0.0
    %783 = vmatprep.subr.mxu0 0.0
    %784 = vmatpush1.xpose.msra.mxu0 0.0
    %785 = vmatprep.subr.mxu0 0.0
    %786 = vmatpush1.xpose.msra.mxu0 0.0
    %787 = vmatprep.subr.mxu0 0.0
    %788 = vmatpush1.xpose.msra.mxu0 0.0
    %789 = vmatprep.subr.mxu0 0.0
    %790 = vmatpush1.xpose.msra.mxu0 0.0
    %791 = vmatprep.subr.mxu0 0.0
    %792 = vmatpush1.xpose.msra.mxu0 0.0
    %793 = vmatprep.subr.mxu0 0.0
    %794 = vmatpush1.xpose.msra.mxu0 0.0
    %795 = vmatprep.subr.mxu0 0.0
    %796 = vmatpush1.xpose.msra.mxu0 0.0
    %797 = vmatprep.subr.mxu0 0.0
    %798 = vmatpush1.xpose.msra.mxu0 0.0
    %799 = vmatprep.subr.mxu0 0.0
    %800 = vmatpush1.xpose.msra.mxu0 0.0
    %801 = vmatprep.subr.mxu0 0.0
    %802 = vmatpush1.xpose.msra.mxu0 0.0
    %803 = vmatprep.subr.mxu0 0.0
    %804 = vmatpush1.xpose.msra.mxu0 0.0
    %805 = vmatprep.subr.mxu0 0.0
    %806 = vmatpush1.xpose.msra.mxu0 %v775
    %807 = vmatprep.subr.mxu0 0.0
    %808 = vmatpush1.xpose.msra.mxu0 %v773
    %809 = vmatprep.subr.mxu0 0.0
    %810 = vmatpush2.xpose.msra.mxu0 0.0
    %811 = vmatprep.subr.mxu0 0.0
    %812 = vmatpush2.xpose.msra.mxu0 0.0
    %813 = vmatprep.subr.mxu0 0.0
    %814 = vmatpush2.xpose.msra.mxu0 0.0
    %815 = vmatprep.subr.mxu0 0.0
    %816 = vmatpush2.xpose.msra.mxu0 0.0
    %817 = vmatprep.subr.mxu0 0.0
    %818 = vmatpush2.xpose.msra.mxu0 0.0
    %819 = vmatprep.subr.mxu0 0.0
    %820 = vmatpush2.xpose.msra.mxu0 0.0
    %821 = vmatprep.subr.mxu0 0.0
    %822 = vmatpush2.xpose.msra.mxu0 0.0
    %823 = vmatprep.subr.mxu0 0.0
    %824 = vmatpush2.xpose.msra.mxu0 0.0
    %825 = vmatprep.subr.mxu0 0.0
    %826 = vmatpush2.xpose.msra.mxu0 0.0
    %827 = vmatprep.subr.mxu0 0.0
    %828 = vmatpush2.xpose.msra.mxu0 0.0
    %829 = vmatprep.subr.mxu0 0.0
    %830 = vmatpush2.xpose.msra.mxu0 0.0
    %831 = vmatprep.subr.mxu0 0.0
    %832 = vmatpush2.xpose.msra.mxu0 0.0
    %833 = vmatprep.subr.mxu0 0.0
    %834 = vmatpush2.xpose.msra.mxu0 0.0
    %835 = vmatprep.subr.mxu0 0.0
    %836 = vmatpush2.xpose.msra.mxu0 0.0
    %837 = vmatprep.subr.mxu0 0.0
    %838 = vmatpush2.xpose.msra.mxu0 0.0
    %839 = vmatprep.subr.mxu0 0.0
    %840 = vmatpush2.xpose.msra.mxu0 0.0
    %841 = vmatprep.mubr.f32.mxu0 0.0
    %842 = vmatmul.mubr.f32.gmra.mxu0 %v769
    %v843 = vpop.f32.mrf.mxu0
    %v844 = vadd.f32 0.0, %v843
    %v845 = vpop.f32.mrf.mxu0
    %846 = vmatprep.mubr.f32.mxu0 0.0
    %847 = vmatmul.mubr.f32.gmra.mxu0 %v771
    %v848 = vpop.f32.mrf.mxu0
    %v849 = vadd.f32 0.0, %v848
    %v850 = vpop.f32.mrf.mxu0
    %851 = vdwg.mxu0
    %v852 = vmul.f32 %v844, 0.25
    %v853 = vmul.f32 %v849, 0.25
    %v854 = vadd.f32 %v852, %v28
    %v855 = vadd.f32 %v853, %v29
    %v856 = vsel %vm160, %v854, -inf
    %857 = vmax.xlane.f32.xlu0 %v856
    %v858 = vpop.xlane.xlu0 %857
    %v859 = vsel %vm160, %v855, -inf
    %860 = vmax.xlane.f32.xlu0 %v859
    %v861 = vpop.xlane.xlu0 %860
    %v862 = vsub.f32 %v854, %v858
    %v863 = vsub.f32 %v855, %v861
    %v864 = vmul.f32 %v862, 1.442695
    %v865 = vpow.pop %v864
    %v866 = vmul.f32 %v863, 1.442695
    %v867 = vpow.pop %v866
    %v868 = vsel %vm160, %v865, 0.0
    %869 = vadd.xlane.f32.xlu0 %v868
    %v870 = vpop.xlane.xlu0 %869
    %v871 = vsel %vm160, %v867, 0.0
    %872 = vadd.xlane.f32.xlu0 %v871
    %v873 = vpop.xlane.xlu0 %872
    %v874 = vrcp.pop %v870
    %v875 = vrcp.pop %v873
    %v876 = vmul.f32 %v865, %v874
    %v877 = vmul.f32 %v867, %v875
    %878 = vrot.lane.b32.xlu0 %v137, 80
    %v879 = vpop.permute.xlu0 %878
    %880 = vrot.lane.b32.xlu0 %v143, 80
    %v881 = vpop.permute.xlu0 %880
    %v885 = vsel %vm160, %v876, 0
    %v888 = vsel %vm160, %v877, 0
    %890 = vmatprep.subr.mxu0 0.0
    %891 = vmatpush1.msra.mxu0 0.0
    %892 = vmatprep.subr.mxu0 0.0
    %893 = vmatpush1.msra.mxu0 0.0
    %894 = vmatprep.subr.mxu0 0.0
    %895 = vmatpush1.msra.mxu0 0.0
    %896 = vmatprep.subr.mxu0 0.0
    %897 = vmatpush1.msra.mxu0 0.0
    %898 = vmatprep.subr.mxu0 0.0
    %899 = vmatpush1.msra.mxu0 0.0
    %900 = vmatprep.subr.mxu0 0.0
    %901 = vmatpush1.msra.mxu0 0.0
    %902 = vmatprep.subr.mxu0 0.0
    %903 = vmatpush1.msra.mxu0 0.0
    %904 = vmatprep.subr.mxu0 0.0
    %905 = vmatpush1.msra.mxu0 0.0
    %906 = vmatprep.subr.mxu0 0.0
    %907 = vmatpush1.msra.mxu0 0.0
    %908 = vmatprep.subr.mxu0 0.0
    %909 = vmatpush1.msra.mxu0 0.0
    %910 = vmatprep.subr.mxu0 0.0
    %911 = vmatpush1.msra.mxu0 0.0
    %912 = vmatprep.subr.mxu0 0.0
    %913 = vmatpush1.msra.mxu0 0.0
    %914 = vmatprep.subr.mxu0 0.0
    %915 = vmatpush1.msra.mxu0 0.0
    %916 = vmatprep.subr.mxu0 0.0
    %917 = vmatpush1.msra.mxu0 0.0
    %918 = vmatprep.subr.mxu0 0.0
    %919 = vmatpush1.msra.mxu0 %v881
    %920 = vmatprep.subr.mxu0 0.0
    %921 = vmatpush1.msra.mxu0 %v879
    %922 = vmatprep.subr.mxu0 0.0
    %923 = vmatpush2.msra.mxu0 0.0
    %924 = vmatprep.subr.mxu0 0.0
    %925 = vmatpush2.msra.mxu0 0.0
    %926 = vmatprep.subr.mxu0 0.0
    %927 = vmatpush2.msra.mxu0 0.0
    %928 = vmatprep.subr.mxu0 0.0
    %929 = vmatpush2.msra.mxu0 0.0
    %930 = vmatprep.subr.mxu0 0.0
    %931 = vmatpush2.msra.mxu0 0.0
    %932 = vmatprep.subr.mxu0 0.0
    %933 = vmatpush2.msra.mxu0 0.0
    %934 = vmatprep.subr.mxu0 0.0
    %935 = vmatpush2.msra.mxu0 0.0
    %936 = vmatprep.subr.mxu0 0.0
    %937 = vmatpush2.msra.mxu0 0.0
    %938 = vmatprep.subr.mxu0 0.0
    %939 = vmatpush2.msra.mxu0 0.0
    %940 = vmatprep.subr.mxu0 0.0
    %941 = vmatpush2.msra.mxu0 0.0
    %942 = vmatprep.subr.mxu0 0.0
    %943 = vmatpush2.msra.mxu0 0.0
    %944 = vmatprep.subr.mxu0 0.0
    %945 = vmatpush2.msra.mxu0 0.0
    %946 = vmatprep.subr.mxu0 0.0
    %947 = vmatpush2.msra.mxu0 0.0
    %948 = vmatprep.subr.mxu0 0.0
    %949 = vmatpush2.msra.mxu0 0.0
    %950 = vmatprep.subr.mxu0 0.0
    %951 = vmatpush2.msra.mxu0 0.0
    %952 = vmatprep.subr.mxu0 0.0
    %953 = vmatpush2.msra.mxu0 0.0
    %954 = vmatprep.mubr.f32.mxu0 0.0
    %955 = vmatmul.mubr.f32.gmra.mxu0 %v885
    %v956 = vpop.f32.mrf.mxu0
    %v957 = vadd.f32 0.0, %v956
    %v958 = vpop.f32.mrf.mxu0
    %959 = vmatprep.mubr.f32.mxu0 0.0
    %960 = vmatmul.mubr.f32.gmra.mxu0 %v888
    %v961 = vpop.f32.mrf.mxu0
    %v962 = vadd.f32 0.0, %v961
    %v963 = vpop.f32.mrf.mxu0
    %964 = vdwg.mxu0
    %967 = vrot.lane.b32.xlu0 %v549, 16
    %v968 = vpop.permute.xlu0 %967
    %969 = vrot.lane.b32.xlu0 %v554, 16
    %v970 = vpop.permute.xlu0 %969
    %975 = vrot.lane.b32.xlu0 %v753, 32
    %v976 = vpop.permute.xlu0 %975
    %977 = vrot.lane.b32.xlu0 %v758, 32
    %v978 = vpop.permute.xlu0 %977
    %983 = vrot.lane.b32.xlu0 %v957, 48
    %v984 = vpop.permute.xlu0 %983
    %985 = vrot.lane.b32.xlu0 %v962, 48
    %v986 = vpop.permute.xlu0 %985
    %v989 = vsel %vm160, %v343, %v968
    %v990 = vsel %vm160, %v348, %v970
    %v991 = vsel %vm61, %v989, %v976
    %v992 = vsel %vm61, %v990, %v978
    %vm993 = vcmask 392192
    %v994 = vsel %vm993, %v991, %v984
    %v995 = vsel %vm993, %v992, %v986
    %vm996 = vcmask 523264
    %v998 = vsel %vm996, %v994, 0
    %v1001 = vsel %vm996, %v995, 0
    %1003 = vmatprep.subr.mxu0 0.0
    %1004 = vmatpush1.msra.mxu0 0.0
    %1005 = vmatprep.subr.mxu0 0.0
    %1006 = vmatpush1.msra.mxu0 0.0
    %1007 = vmatprep.subr.mxu0 0.0
    %1008 = vmatpush1.msra.mxu0 0.0
    %1009 = vmatprep.subr.mxu0 0.0
    %1010 = vmatpush1.msra.mxu0 0.0
    %1011 = vmatprep.subr.mxu0 0.0
    %1012 = vmatpush1.msra.mxu0 0.0
    %1013 = vmatprep.subr.mxu0 0.0
    %1014 = vmatpush1.msra.mxu0 0.0
    %1015 = vmatprep.subr.mxu0 0.0
    %1016 = vmatpush1.msra.mxu0 0.0
    %1017 = vmatprep.subr.mxu0 0.0
    %1018 = vmatpush1.msra.mxu0 0.0
    %1019 = vmatprep.subr.mxu0 0.0
    %1020 = vmatpush1.msra.mxu0 %v152
    %1021 = vmatprep.subr.mxu0 0.0
    %1022 = vmatpush1.msra.mxu0 %v151
    %1023 = vmatprep.subr.mxu0 0.0
    %1024 = vmatpush1.msra.mxu0 %v150
    %1025 = vmatprep.subr.mxu0 0.0
    %1026 = vmatpush1.msra.mxu0 %v149
    %1027 = vmatprep.subr.mxu0 0.0
    %1028 = vmatpush1.msra.mxu0 %v148
    %1029 = vmatprep.subr.mxu0 0.0
    %1030 = vmatpush1.msra.mxu0 %v147
    %1031 = vmatprep.subr.mxu0 0.0
    %1032 = vmatpush1.msra.mxu0 %v146
    %1033 = vmatprep.subr.mxu0 0.0
    %1034 = vmatpush1.msra.mxu0 %v145
    %1035 = vmatprep.subr.mxu0 0.0
    %1036 = vmatpush2.msra.mxu0 0.0
    %1037 = vmatprep.subr.mxu0 0.0
    %1038 = vmatpush2.msra.mxu0 0.0
    %1039 = vmatprep.subr.mxu0 0.0
    %1040 = vmatpush2.msra.mxu0 0.0
    %1041 = vmatprep.subr.mxu0 0.0
    %1042 = vmatpush2.msra.mxu0 0.0
    %1043 = vmatprep.subr.mxu0 0.0
    %1044 = vmatpush2.msra.mxu0 0.0
    %1045 = vmatprep.subr.mxu0 0.0
    %1046 = vmatpush2.msra.mxu0 0.0
    %1047 = vmatprep.subr.mxu0 0.0
    %1048 = vmatpush2.msra.mxu0 0.0
    %1049 = vmatprep.subr.mxu0 0.0
    %1050 = vmatpush2.msra.mxu0 0.0
    %1051 = vmatprep.subr.mxu0 0.0
    %1052 = vmatpush2.msra.mxu0 0.0
    %1053 = vmatprep.subr.mxu0 0.0
    %1054 = vmatpush2.msra.mxu0 0.0
    %1055 = vmatprep.subr.mxu0 0.0
    %1056 = vmatpush2.msra.mxu0 0.0
    %1057 = vmatprep.subr.mxu0 0.0
    %1058 = vmatpush2.msra.mxu0 0.0
    %1059 = vmatprep.subr.mxu0 0.0
    %1060 = vmatpush2.msra.mxu0 0.0
    %1061 = vmatprep.subr.mxu0 0.0
    %1062 = vmatpush2.msra.mxu0 0.0
    %1063 = vmatprep.subr.mxu0 0.0
    %1064 = vmatpush2.msra.mxu0 0.0
    %1065 = vmatprep.subr.mxu0 0.0
    %1066 = vmatpush2.msra.mxu0 0.0
    %1067 = vmatprep.mubr.f32.mxu0 0.0
    %1068 = vmatmul.mubr.f32.gmra.mxu0 %v998
    %v1069 = vpop.f32.mrf.mxu0
    %v1070 = vadd.f32 %v153, %v1069
    %v1071 = vpop.f32.mrf.mxu0
    %1072 = vmatprep.mubr.f32.mxu0 0.0
    %1073 = vmatmul.mubr.f32.gmra.mxu0 %v1001
    %v1074 = vpop.f32.mrf.mxu0
    %v1075 = vadd.f32 %v153, %v1074
    %v1076 = vpop.f32.mrf.mxu0
    %1077 = vdwg.mxu0
    %v1078 = vadd.f32 %v38, %v1070
    %v1079 = vadd.f32 %v39, %v1075
    %v1080 = vld [vmem:[%s1 + $0xf0] ss:$0 sm:$0xff]
    %v1081 = vld [vmem:[%s1 + $0x100] ss:$0 sm:$0xff]
    %v1082 = vsel %vm61, %v1078, 0.0
    %1083 = vadd.xlane.f32.xlu0 %v1082
    %v1084 = vpop.xlane.xlu0 %1083
    %v1085 = vsel %vm61, %v1079, 0.0
    %1086 = vadd.xlane.f32.xlu0 %v1085
    %v1087 = vpop.xlane.xlu0 %1086
    %v1088 = vrcp.pop 32.0
    %v1089 = vmul.f32 %v1084, %v1088
    %v1090 = vmul.f32 %v1087, %v1088
    %v1091 = vsub.f32 %v1078, %v1089
    %v1092 = vsub.f32 %v1079, %v1090
    %v1093 = vmul.f32 %v1091, %v1091
    %v1094 = vmul.f32 %v1092, %v1092
    %v1095 = vsel %vm61, %v1093, 0.0
    %1096 = vadd.xlane.f32.xlu0 %v1095
    %v1097 = vpop.xlane.xlu0 %1096
    %v1098 = vsel %vm61, %v1094, 0.0
    %1099 = vadd.xlane.f32.xlu0 %v1098
    %v1100 = vpop.xlane.xlu0 %1099
    %v1101 = vmul.f32 %v1097, %v1088
    %v1102 = vmul.f32 %v1100, %v1088
    %v1103 = vadd.f32 %v1101, 1e-05
    %v1104 = vadd.f32 %v1102, 1e-05
    %v1105 = vrsqrt.pop %v1103
    %v1106 = vrsqrt.pop %v1104
    %v1107 = vmul.f32 %v1091, %v1105
    %v1108 = vmul.f32 %v1092, %v1106
    %v1109 = vmul.f32 %v1107, %v1080
    %v1110 = vmul.f32 %v1108, %v1080
    %v1111 = vadd.f32 %v1109, %v1081
    %v1112 = vadd.f32 %v1110, %v1081
    %v1113 = vld [vmem:[%s1 + $0x110] sm:$0xff]
    %v1114 = vld [vmem:[%s1 + $0x120] sm:$0xff]
    %v1115 = vld [vmem:[%s1 + $0x130] sm:$0xff]
    %v1116 = vld [vmem:[%s1 + $0x140] sm:$0xff]
    %v1117 = vld [vmem:[%s1 + $0x150] ss:$0 sm:$0xff]
    %v1119 = vsel %vm61, %v1111, 0
    %v1122 = vsel %vm61, %v1112, 0
    %1124 = vmatprep.subr.mxu0 0.0
    %1125 = vmatpush1.msra.mxu0 0.0
    %1126 = vmatprep.subr.mxu0 0.0
    %1127 = vmatpush1.msra.mxu0 0.0
    %1128 = vmatprep.subr.mxu0 0.0
    %1129 = vmatpush1.msra.mxu0 0.0
    %1130 = vmatprep.subr.mxu0 0.0
    %1131 = vmatpush1.msra.mxu0 0.0
    %1132 = vmatprep.subr.mxu0 0.0
    %1133 = vmatpush1.msra.mxu0 0.0
    %1134 = vmatprep.subr.mxu0 0.0
    %1135 = vmatpush1.msra.mxu0 0.0
    %1136 = vmatprep.subr.mxu0 0.0
    %1137 = vmatpush1.msra.mxu0 0.0
    %1138 = vmatprep.subr.mxu0 0.0
    %1139 = vmatpush1.msra.mxu0 0.0
    %1140 = vmatprep.subr.mxu0 0.0
    %1141 = vmatpush1.msra.mxu0 0.0
    %1142 = vmatprep.subr.mxu0 0.0
    %1143 = vmatpush1.msra.mxu0 0.0
    %1144 = vmatprep.subr.mxu0 0.0
    %1145 = vmatpush1.msra.mxu0 0.0
    %1146 = vmatprep.subr.mxu0 0.0
    %1147 = vmatpush1.msra.mxu0 0.0
    %1148 = vmatprep.subr.mxu0 0.0
    %1149 = vmatpush1.msra.mxu0 %v1116
    %1150 = vmatprep.subr.mxu0 0.0
    %1151 = vmatpush1.msra.mxu0 %v1115
    %1152 = vmatprep.subr.mxu0 0.0
    %1153 = vmatpush1.msra.mxu0 %v1114
    %1154 = vmatprep.subr.mxu0 0.0
    %1155 = vmatpush1.msra.mxu0 %v1113
    %1156 = vmatprep.subr.mxu0 0.0
    %1157 = vmatpush2.msra.mxu0 0.0
    %1158 = vmatprep.subr.mxu0 0.0
    %1159 = vmatpush2.msra.mxu0 0.0
    %1160 = vmatprep.subr.mxu0 0.0
    %1161 = vmatpush2.msra.mxu0 0.0
    %1162 = vmatprep.subr.mxu0 0.0
    %1163 = vmatpush2.msra.mxu0 0.0
    %1164 = vmatprep.subr.mxu0 0.0
    %1165 = vmatpush2.msra.mxu0 0.0
    %1166 = vmatprep.subr.mxu0 0.0
    %1167 = vmatpush2.msra.mxu0 0.0
    %1168 = vmatprep.subr.mxu0 0.0
    %1169 = vmatpush2.msra.mxu0 0.0
    %1170 = vmatprep.subr.mxu0 0.0
    %1171 = vmatpush2.msra.mxu0 0.0
    %1172 = vmatprep.subr.mxu0 0.0
    %1173 = vmatpush2.msra.mxu0 0.0
    %1174 = vmatprep.subr.mxu0 0.0
    %1175 = vmatpush2.msra.mxu0 0.0
    %1176 = vmatprep.subr.mxu0 0.0
    %1177 = vmatpush2.msra.mxu0 0.0
    %1178 = vmatprep.subr.mxu0 0.0
    %1179 = vmatpush2.msra.mxu0 0.0
    %1180 = vmatprep.subr.mxu0 0.0
    %1181 = vmatpush2.msra.mxu0 0.0
    %1182 = vmatprep.subr.mxu0 0.0
    %1183 = vmatpush2.msra.mxu0 0.0
    %1184 = vmatprep.subr.mxu0 0.0
    %1185 = vmatpush2.msra.mxu0 0.0
    %1186 = vmatprep.subr.mxu0 0.0
    %1187 = vmatpush2.msra.mxu0 0.0
    %1188 = vmatprep.mubr.f32.mxu0 0.0
    %1189 = vmatmul.mubr.f32.gmra.mxu0 %v1119
    %v1190 = vpop.f32.mrf.mxu0
    %v1191 = vadd.f32 %v1117, %v1190
    %v1192 = vpop.f32.mrf.mxu0
    %1193 = vmatprep.mubr.f32.mxu0 0.0
    %1194 = vmatmul.mubr.f32.gmra.mxu0 %v1122
    %v1195 = vpop.f32.mrf.mxu0
    %v1196 = vadd.f32 %v1117, %v1195
    %v1197 = vpop.f32.mrf.mxu0
    %1198 = vdwg.mxu0
    %v1199 = vmax.f32 %v1191, 0.0
    %v1200 = vmax.f32 %v1196, 0.0
    %v1201 = vld [vmem:[%s1 + $0x160] sm:$0xff]
    %v1202 = vld [vmem:[%s1 + $0x170] sm:$0xff]
    %v1203 = vld [vmem:[%s1 + $0x180] ss:$0 sm:$0xff]
    %v1205 = vsel %vm160, %v1199, 0
    %v1208 = vsel %vm160, %v1200, 0
    %1210 = vmatprep.subr.mxu0 0.0
    %1211 = vmatpush1.msra.mxu0 0.0
    %1212 = vmatprep.subr.mxu0 0.0
    %1213 = vmatpush1.msra.mxu0 0.0
    %1214 = vmatprep.subr.mxu0 0.0
    %1215 = vmatpush1.msra.mxu0 0.0
    %1216 = vmatprep.subr.mxu0 0.0
    %1217 = vmatpush1.msra.mxu0 0.0
    %1218 = vmatprep.subr.mxu0 0.0
    %1219 = vmatpush1.msra.mxu0 0.0
    %1220 = vmatprep.subr.mxu0 0.0
    %1221 = vmatpush1.msra.mxu0 0.0
    %1222 = vmatprep.subr.mxu0 0.0
    %1223 = vmatpush1.msra.mxu0 0.0
    %1224 = vmatprep.subr.mxu0 0.0
    %1225 = vmatpush1.msra.mxu0 0.0
    %1226 = vmatprep.subr.mxu0 0.0
    %1227 = vmatpush1.msra.mxu0 0.0
    %1228 = vmatprep.subr.mxu0 0.0
    %1229 = vmatpush1.msra.mxu0 0.0
    %1230 = vmatprep.subr.mxu0 0.0
    %1231 = vmatpush1.msra.mxu0 0.0
    %1232 = vmatprep.subr.mxu0 0.0
    %1233 = vmatpush1.msra.mxu0 0.0
    %1234 = vmatprep.subr.mxu0 0.0
    %1235 = vmatpush1.msra.mxu0 0.0
    %1236 = vmatprep.subr.mxu0 0.0
    %1237 = vmatpush1.msra.mxu0 0.0
    %1238 = vmatprep.subr.mxu0 0.0
    %1239 = vmatpush1.msra.mxu0 %v1202
    %1240 = vmatprep.subr.mxu0 0.0
    %1241 = vmatpush1.msra.mxu0 %v1201
    %1242 = vmatprep.subr.mxu0 0.0
    %1243 = vmatpush2.msra.mxu0 0.0
    %1244 = vmatprep.subr.mxu0 0.0
    %1245 = vmatpush2.msra.mxu0 0.0
    %1246 = vmatprep.subr.mxu0 0.0
    %1247 = vmatpush2.msra.mxu0 0.0
    %1248 = vmatprep.subr.mxu0 0.0
    %1249 = vmatpush2.msra.mxu0 0.0
    %1250 = vmatprep.subr.mxu0 0.0
    %1251 = vmatpush2.msra.mxu0 0.0
    %1252 = vmatprep.subr.mxu0 0.0
    %1253 = vmatpush2.msra.mxu0 0.0
    %1254 = vmatprep.subr.mxu0 0.0
    %1255 = vmatpush2.msra.mxu0 0.0
    %1256 = vmatprep.subr.mxu0 0.0
    %1257 = vmatpush2.msra.mxu0 0.0
    %1258 = vmatprep.subr.mxu0 0.0
    %1259 = vmatpush2.msra.mxu0 0.0
    %1260 = vmatprep.subr.mxu0 0.0
    %1261 = vmatpush2.msra.mxu0 0.0
    %1262 = vmatprep.subr.mxu0 0.0
    %1263 = vmatpush2.msra.mxu0 0.0
    %1264 = vmatprep.subr.mxu0 0.0
    %1265 = vmatpush2.msra.mxu0 0.0
    %1266 = vmatprep.subr.mxu0 0.0
    %1267 = vmatpush2.msra.mxu0 0.0
    %1268 = vmatprep.subr.mxu0 0.0
    %1269 = vmatpush2.msra.mxu0 0.0
    %1270 = vmatprep.subr.mxu0 0.0
    %1271 = vmatpush2.msra.mxu0 0.0
    %1272 = vmatprep.subr.mxu0 0.0
    %1273 = vmatpush2.msra.mxu0 0.0
    %1274 = vmatprep.mubr.f32.mxu0 0.0
    %1275 = vmatmul.mubr.f32.gmra.mxu0 %v1205
    %v1276 = vpop.f32.mrf.mxu0
    %v1277 = vadd.f32 %v1203, %v1276
    %v1278 = vpop.f32.mrf.mxu0
    %1279 = vmatprep.mubr.f32.mxu0 0.0
    %1280 = vmatmul.mubr.f32.gmra.mxu0 %v1208
    %v1281 = vpop.f32.mrf.mxu0
    %v1282 = vadd.f32 %v1203, %v1281
    %v1283 = vpop.f32.mrf.mxu0
    %1284 = vdwg.mxu0
    %v1285 = vadd.f32 %v1111, %v1277
    %v1286 = vadd.f32 %v1112, %v1282
    %v1287 = vld [vmem:[%s1 + $0x190] ss:$0 sm:$0xff]
    %v1288 = vld [vmem:[%s1 + $0x1a0] ss:$0 sm:$0xff]
    %v1289 = vsel %vm61, %v1285, 0.0
    %1290 = vadd.xlane.f32.xlu0 %v1289
    %v1291 = vpop.xlane.xlu0 %1290
    %v1292 = vsel %vm61, %v1286, 0.0
    %1293 = vadd.xlane.f32.xlu0 %v1292
    %v1294 = vpop.xlane.xlu0 %1293
    %v1295 = vmul.f32 %v1291, %v1088
    %v1296 = vmul.f32 %v1294, %v1088
    %v1297 = vsub.f32 %v1285, %v1295
    %v1298 = vsub.f32 %v1286, %v1296
    %v1299 = vmul.f32 %v1297, %v1297
    %v1300 = vmul.f32 %v1298, %v1298
    %v1301 = vsel %vm61, %v1299, 0.0
    %1302 = vadd.xlane.f32.xlu0 %v1301
    %v1303 = vpop.xlane.xlu0 %1302
    %v1304 = vsel %vm61, %v1300, 0.0
    %1305 = vadd.xlane.f32.xlu0 %v1304
    %v1306 = vpop.xlane.xlu0 %1305
    %v1307 = vmul.f32 %v1303, %v1088
    %v1308 = vmul.f32 %v1306, %v1088
    %v1309 = vadd.f32 %v1307, 1e-05
    %v1310 = vadd.f32 %v1308, 1e-05
    %v1311 = vrsqrt.pop %v1309
    %v1312 = vrsqrt.pop %v1310
    %v1313 = vmul.f32 %v1297, %v1311
    %v1314 = vmul.f32 %v1298, %v1312
    %v1315 = vmul.f32 %v1313, %v1287
    %v1316 = vmul.f32 %v1314, %v1287
    %v1317 = vadd.f32 %v1315, %v1288
    %v1318 = vadd.f32 %v1316, %v1288
    %v1319 = vld [vmem:[%s1] sm:$0xf]
    %v1321 = vrot.slane %v1319, 4
    %vm1323 = vcmask 1043456
    %v1324 = vsel %vm1323, %v1319, %v1321
    %v1325 = vld [vmem:[%s1 + $0x1b0] sm:$0xff]
    %v1326 = vld [vmem:[%s1 + $0x1b8] sm:$0xff]
    %v1327 = vld [vmem:[%s1 + $0x1c0] sm:$0xff]
    %v1328 = vld [vmem:[%s1 + $0x1c8] sm:$0xff]
    %v1329 = vld [vmem:[%s1 + $0x1d0] sm:$0xff]
    %v1330 = vld [vmem:[%s1 + $0x1d8] sm:$0xff]
    %v1331 = vld [vmem:[%s1 + $0x1e0] sm:$0xff]
    %v1332 = vld [vmem:[%s1 + $0x1e8] sm:$0xff]
    %s1333 = scalar_lea.vmem %s1, 496
    %v1334 = vld [vmem:[%s1333] ss:$8 sm:$0x3]
    %v1336 = vlaneseq
    %v1337 = vshrl.u32 %v1336, 7
    %v1338 = vsub.s32 0, %v1337
    %v1339 = vrot.slane %v1334, %v1338
    %v1340 = vlaneseq
    %v1341 = vshrl.u32 %v1340, 7
    %v1342 = vsub.s32 1, %v1341
    %v1343 = vrot.slane %v1334, %v1342
    %v1347 = vsel %vm61, %v1324, 0
    %1349 = vmatprep.subr.mxu0 0.0
    %1350 = vmatpush1.msra.mxu0 0.0
    %1351 = vmatprep.subr.mxu0 0.0
    %1352 = vmatpush1.msra.mxu0 0.0
    %1353 = vmatprep.subr.mxu0 0.0
    %1354 = vmatpush1.msra.mxu0 0.0
    %1355 = vmatprep.subr.mxu0 0.0
    %1356 = vmatpush1.msra.mxu0 0.0
    %1357 = vmatprep.subr.mxu0 0.0
    %1358 = vmatpush1.msra.mxu0 0.0
    %1359 = vmatprep.subr.mxu0 0.0
    %1360 = vmatpush1.msra.mxu0 0.0
    %1361 = vmatprep.subr.mxu0 0.0
    %1362 = vmatpush1.msra.mxu0 0.0
    %1363 = vmatprep.subr.mxu0 0.0
    %1364 = vmatpush1.msra.mxu0 0.0
    %1365 = vmatprep.subr.mxu0 0.0
    %1366 = vmatpush1.msra.mxu0 0.0
    %1367 = vmatprep.subr.mxu0 0.0
    %1368 = vmatpush1.msra.mxu0 0.0
    %1369 = vmatprep.subr.mxu0 0.0
    %1370 = vmatpush1.msra.mxu0 0.0
    %1371 = vmatprep.subr.mxu0 0.0
    %1372 = vmatpush1.msra.mxu0 0.0
    %1373 = vmatprep.subr.mxu0 %v1332
    %1374 = vmatpush1.msra.mxu0 %v1331
    %1375 = vmatprep.subr.mxu0 %v1330
    %1376 = vmatpush1.msra.mxu0 %v1329
    %1377 = vmatprep.subr.mxu0 %v1328
    %1378 = vmatpush1.msra.mxu0 %v1327
    %1379 = vmatprep.subr.mxu0 %v1326
    %1380 = vmatpush1.msra.mxu0 %v1325
    %1381 = vmatprep.subr.mxu0 0.0
    %1382 = vmatpush2.msra.mxu0 0.0
    %1383 = vmatprep.subr.mxu0 0.0
    %1384 = vmatpush2.msra.mxu0 0.0
    %1385 = vmatprep.subr.mxu0 0.0
    %1386 = vmatpush2.msra.mxu0 0.0
    %1387 = vmatprep.subr.mxu0 0.0
    %1388 = vmatpush2.msra.mxu0 0.0
    %1389 = vmatprep.subr.mxu0 0.0
    %1390 = vmatpush2.msra.mxu0 0.0
    %1391 = vmatprep.subr.mxu0 0.0
    %1392 = vmatpush2.msra.mxu0 0.0
    %1393 = vmatprep.subr.mxu0 0.0
    %1394 = vmatpush2.msra.mxu0 0.0
    %1395 = vmatprep.subr.mxu0 0.0
    %1396 = vmatpush2.msra.mxu0 0.0
    %1397 = vmatprep.subr.mxu0 0.0
    %1398 = vmatpush2.msra.mxu0 0.0
    %1399 = vmatprep.subr.mxu0 0.0
    %1400 = vmatpush2.msra.mxu0 0.0
    %1401 = vmatprep.subr.mxu0 0.0
    %1402 = vmatpush2.msra.mxu0 0.0
    %1403 = vmatprep.subr.mxu0 0.0
    %1404 = vmatpush2.msra.mxu0 0.0
    %1405 = vmatprep.subr.mxu0 0.0
    %1406 = vmatpush2.msra.mxu0 0.0
    %1407 = vmatprep.subr.mxu0 0.0
    %1408 = vmatpush2.msra.mxu0 0.0
    %1409 = vmatprep.subr.mxu0 0.0
    %1410 = vmatpush2.msra.mxu0 0.0
    %1411 = vmatprep.subr.mxu0 0.0
    %1412 = vmatpush2.msra.mxu0 0.0
    %1413 = vmatprep.mubr.f32.mxu0 0.0
    %1414 = vmatmul.mubr.f32.gmra.mxu0 %v1347
    %v1415 = vpop.f32.mrf.mxu0
    %v1416 = vadd.f32 %v1339, %v1415
    %v1417 = vpop.f32.mrf.mxu0
    %v1418 = vadd.f32 %v1343, %v1417
    %1419 = vdwg.mxu0
    %v1420 = vld [vmem:[%s1 + $0x200] sm:$0xff]
    %v1421 = vld [vmem:[%s1 + $0x210] sm:$0xff]
    %v1422 = vld [vmem:[%s1 + $0x220] sm:$0xff]
    %v1423 = vld [vmem:[%s1 + $0x230] sm:$0xff]
    %v1424 = vld [vmem:[%s1 + $0x240] sm:$0xff]
    %v1425 = vld [vmem:[%s1 + $0x250] sm:$0xff]
    %v1426 = vld [vmem:[%s1 + $0x260] sm:$0xff]
    %v1427 = vld [vmem:[%s1 + $0x270] sm:$0xff]
    %v1428 = vld [vmem:[%s1 + $0x280] ss:$0 sm:$0xff]
    %1430 = vrot.lane.b32.xlu0 %v1416, 64
    %v1431 = vpop.permute.xlu0 %1430
    %v1432 = vsel %vm160, %v1416, 0
    %v1434 = vsel %vm160, %v1431, 0
    %1436 = vmatprep.subr.mxu0 0.0
    %1437 = vmatpush1.xpose.msra.mxu0 0.0
    %1438 = vmatprep.subr.mxu0 0.0
    %1439 = vmatpush1.xpose.msra.mxu0 0.0
    %1440 = vmatprep.subr.mxu0 0.0
    %1441 = vmatpush1.xpose.msra.mxu0 0.0
    %1442 = vmatprep.subr.mxu0 0.0
    %1443 = vmatpush1.xpose.msra.mxu0 0.0
    %1444 = vmatprep.subr.mxu0 0.0
    %1445 = vmatpush1.xpose.msra.mxu0 0.0
    %1446 = vmatprep.subr.mxu0 0.0
    %1447 = vmatpush1.xpose.msra.mxu0 0.0
    %1448 = vmatprep.subr.mxu0 0.0
    %1449 = vmatpush1.xpose.msra.mxu0 0.0
    %1450 = vmatprep.subr.mxu0 0.0
    %1451 = vmatpush1.xpose.msra.mxu0 0.0
    %1452 = vmatprep.subr.mxu0 0.0
    %1453 = vmatpush1.xpose.msra.mxu0 0.0
    %1454 = vmatprep.subr.mxu0 0.0
    %1455 = vmatpush1.xpose.msra.mxu0 0.0
    %1456 = vmatprep.subr.mxu0 0.0
    %1457 = vmatpush1.xpose.msra.mxu0 0.0
    %1458 = vmatprep.subr.mxu0 0.0
    %1459 = vmatpush1.xpose.msra.mxu0 0.0
    %1460 = vmatprep.subr.mxu0 0.0
    %1461 = vmatpush1.xpose.msra.mxu0 0.0
    %1462 = vmatprep.subr.mxu0 0.0
    %1463 = vmatpush1.xpose.msra.mxu0 0.0
    %1464 = vmatprep.subr.mxu0 0.0
    %1465 = vmatpush1.xpose.msra.mxu0 0.0
    %1466 = vmatprep.subr.mxu0 0.0
    %1467 = vmatpush1.xpose.msra.mxu0 %v1434
    %1468 = vmatprep.subr.mxu0 0.0
    %1469 = vmatpush2.xpose.msra.mxu0 0.0
    %1470 = vmatprep.subr.mxu0 0.0
    %1471 = vmatpush2.xpose.msra.mxu0 0.0
    %1472 = vmatprep.subr.mxu0 0.0
    %1473 = vmatpush2.xpose.msra.mxu0 0.0
    %1474 = vmatprep.subr.mxu0 0.0
    %1475 = vmatpush2.xpose.msra.mxu0 0.0
    %1476 = vmatprep.subr.mxu0 0.0
    %1477 = vmatpush2.xpose.msra.mxu0 0.0
    %1478 = vmatprep.subr.mxu0 0.0
    %1479 = vmatpush2.xpose.msra.mxu0 0.0
    %1480 = vmatprep.subr.mxu0 0.0
    %1481 = vmatpush2.xpose.msra.mxu0 0.0
    %1482 = vmatprep.subr.mxu0 0.0
    %1483 = vmatpush2.xpose.msra.mxu0 0.0
    %1484 = vmatprep.subr.mxu0 0.0
    %1485 = vmatpush2.xpose.msra.mxu0 0.0
    %1486 = vmatprep.subr.mxu0 0.0
    %1487 = vmatpush2.xpose.msra.mxu0 0.0
    %1488 = vmatprep.subr.mxu0 0.0
    %1489 = vmatpush2.xpose.msra.mxu0 0.0
    %1490 = vmatprep.subr.mxu0 0.0
    %1491 = vmatpush2.xpose.msra.mxu0 0.0
    %1492 = vmatprep.subr.mxu0 0.0
    %1493 = vmatpush2.xpose.msra.mxu0 0.0
    %1494 = vmatprep.subr.mxu0 0.0
    %1495 = vmatpush2.xpose.msra.mxu0 0.0
    %1496 = vmatprep.subr.mxu0 0.0
    %1497 = vmatpush2.xpose.msra.mxu0 0.0
    %1498 = vmatprep.subr.mxu0 0.0
    %1499 = vmatpush2.xpose.msra.mxu0 0.0
    %1500 = vmatprep.mubr.f32.mxu0 0.0
    %1501 = vmatmul.mubr.f32.gmra.mxu0 %v1432
    %v1502 = vpop.f32.mrf.mxu0
    %v1503 = vadd.f32 0.0, %v1502
    %v1504 = vpop.f32.mrf.mxu0
    %1505 = vdwg.mxu0
    %v1506 = vmul.f32 %v1503, 0.25
    %v1507 = vadd.f32 %v1506, %v35
    %vm1508 = vcmask 64512
    %v1509 = vsel %vm1508, %v1507, -inf
    %1510 = vmax.xlane.f32.xlu0 %v1509
    %v1511 = vpop.xlane.xlu0 %1510
    %v1512 = vsub.f32 %v1507, %v1511
    %v1513 = vmul.f32 %v1512, 1.442695
    %v1514 = vpow.pop %v1513
    %v1515 = vsel %vm1508, %v1514, 0.0
    %1516 = vadd.xlane.f32.xlu0 %v1515
    %v1517 = vpop.xlane.xlu0 %1516
    %v1518 = vrcp.pop %v1517
    %v1519 = vmul.f32 %v1514, %v1518
    %v1521 = vsel %vm1508, %v1519, 0
    %1523 = vmatprep.subr.mxu0 0.0
    %1524 = vmatpush1.msra.mxu0 0.0
    %1525 = vmatprep.subr.mxu0 0.0
    %1526 = vmatpush1.msra.mxu0 0.0
    %1527 = vmatprep.subr.mxu0 0.0
    %1528 = vmatpush1.msra.mxu0 0.0
    %1529 = vmatprep.subr.mxu0 0.0
    %1530 = vmatpush1.msra.mxu0 0.0
    %1531 = vmatprep.subr.mxu0 0.0
    %1532 = vmatpush1.msra.mxu0 0.0
    %1533 = vmatprep.subr.mxu0 0.0
    %1534 = vmatpush1.msra.mxu0 0.0
    %1535 = vmatprep.subr.mxu0 0.0
    %1536 = vmatpush1.msra.mxu0 0.0
    %1537 = vmatprep.subr.mxu0 0.0
    %1538 = vmatpush1.msra.mxu0 0.0
    %1539 = vmatprep.subr.mxu0 0.0
    %1540 = vmatpush1.msra.mxu0 0.0
    %1541 = vmatprep.subr.mxu0 0.0
    %1542 = vmatpush1.msra.mxu0 0.0
    %1543 = vmatprep.subr.mxu0 0.0
    %1544 = vmatpush1.msra.mxu0 0.0
    %1545 = vmatprep.subr.mxu0 0.0
    %1546 = vmatpush1.msra.mxu0 0.0
    %1547 = vmatprep.subr.mxu0 0.0
    %1548 = vmatpush1.msra.mxu0 0.0
    %1549 = vmatprep.subr.mxu0 0.0
    %1550 = vmatpush1.msra.mxu0 0.0
    %1551 = vmatprep.subr.mxu0 0.0
    %1552 = vmatpush1.msra.mxu0 0.0
    %1553 = vmatprep.subr.mxu0 0.0
    %1554 = vmatpush1.msra.mxu0 %v1418
    %1555 = vmatprep.subr.mxu0 0.0
    %1556 = vmatpush2.msra.mxu0 0.0
    %1557 = vmatprep.subr.mxu0 0.0
    %1558 = vmatpush2.msra.mxu0 0.0
    %1559 = vmatprep.subr.mxu0 0.0
    %1560 = vmatpush2.msra.mxu0 0.0
    %1561 = vmatprep.subr.mxu0 0.0
    %1562 = vmatpush2.msra.mxu0 0.0
    %1563 = vmatprep.subr.mxu0 0.0
    %1564 = vmatpush2.msra.mxu0 0.0
    %1565 = vmatprep.subr.mxu0 0.0
    %1566 = vmatpush2.msra.mxu0 0.0
    %1567 = vmatprep.subr.mxu0 0.0
    %1568 = vmatpush2.msra.mxu0 0.0
    %1569 = vmatprep.subr.mxu0 0.0
    %1570 = vmatpush2.msra.mxu0 0.0
    %1571 = vmatprep.subr.mxu0 0.0
    %1572 = vmatpush2.msra.mxu0 0.0
    %1573 = vmatprep.subr.mxu0 0.0
    %1574 = vmatpush2.msra.mxu0 0.0
    %1575 = vmatprep.subr.mxu0 0.0
    %1576 = vmatpush2.msra.mxu0 0.0
    %1577 = vmatprep.subr.mxu0 0.0
    %1578 = vmatpush2.msra.mxu0 0.0
    %1579 = vmatprep.subr.mxu0 0.0
    %1580 = vmatpush2.msra.mxu0 0.0
    %1581 = vmatprep.subr.mxu0 0.0
    %1582 = vmatpush2.msra.mxu0 0.0
    %1583 = vmatprep.subr.mxu0 0.0
    %1584 = vmatpush2.msra.mxu0 0.0
    %1585 = vmatprep.subr.mxu0 0.0
    %1586 = vmatpush2.msra.mxu0 0.0
    %1587 = vmatprep.mubr.f32.mxu0 0.0
    %1588 = vmatmul.mubr.f32.gmra.mxu0 %v1521
    %v1589 = vpop.f32.mrf.mxu0
    %v1590 = vadd.f32 0.0, %v1589
    %v1591 = vpop.f32.mrf.mxu0
    %1592 = vdwg.mxu0
    %1593 = vrot.lane.b32.xlu0 %v1416, 112
    %v1594 = vpop.permute.xlu0 %1593
    %1595 = vrot.lane.b32.xlu0 %v1416, 48
    %v1596 = vpop.permute.xlu0 %1595
    %v1597 = vsel %vm160, %v1594, 0
    %v1599 = vsel %vm160, %v1596, 0
    %1601 = vmatprep.subr.mxu0 0.0
    %1602 = vmatpush1.xpose.msra.mxu0 0.0
    %1603 = vmatprep.subr.mxu0 0.0
    %1604 = vmatpush1.xpose.msra.mxu0 0.0
    %1605 = vmatprep.subr.mxu0 0.0
    %1606 = vmatpush1.xpose.msra.mxu0 0.0
    %1607 = vmatprep.subr.mxu0 0.0
    %1608 = vmatpush1.xpose.msra.mxu0 0.0
    %1609 = vmatprep.subr.mxu0 0.0
    %1610 = vmatpush1.xpose.msra.mxu0 0.0
    %1611 = vmatprep.subr.mxu0 0.0
    %1612 = vmatpush1.xpose.msra.mxu0 0.0
    %1613 = vmatprep.subr.mxu0 0.0
    %1614 = vmatpush1.xpose.msra.mxu0 0.0
    %1615 = vmatprep.subr.mxu0 0.0
    %1616 = vmatpush1.xpose.msra.mxu0 0.0
    %1617 = vmatprep.subr.mxu0 0.0
    %1618 = vmatpush1.xpose.msra.mxu0 0.0
    %1619 = vmatprep.subr.mxu0 0.0
    %1620 = vmatpush1.xpose.msra.mxu0 0.0
    %1621 = vmatprep.subr.mxu0 0.0
    %1622 = vmatpush1.xpose.msra.mxu0 0.0
    %1623 = vmatprep.subr.mxu0 0.0
    %1624 = vmatpush1.xpose.msra.mxu0 0.0
    %1625 = vmatprep.subr.mxu0 0.0
    %1626 = vmatpush1.xpose.msra.mxu0 0.0
    %1627 = vmatprep.subr.mxu0 0.0
    %1628 = vmatpush1.xpose.msra.mxu0 0.0
    %1629 = vmatprep.subr.mxu0 0.0
    %1630 = vmatpush1.xpose.msra.mxu0 0.0
    %1631 = vmatprep.subr.mxu0 0.0
    %1632 = vmatpush1.xpose.msra.mxu0 %v1599
    %1633 = vmatprep.subr.mxu0 0.0
    %1634 = vmatpush2.xpose.msra.mxu0 0.0
    %1635 = vmatprep.subr.mxu0 0.0
    %1636 = vmatpush2.xpose.msra.mxu0 0.0
    %1637 = vmatprep.subr.mxu0 0.0
    %1638 = vmatpush2.xpose.msra.mxu0 0.0
    %1639 = vmatprep.subr.mxu0 0.0
    %1640 = vmatpush2.xpose.msra.mxu0 0.0
    %1641 = vmatprep.subr.mxu0 0.0
    %1642 = vmatpush2.xpose.msra.mxu0 0.0
    %1643 = vmatprep.subr.mxu0 0.0
    %1644 = vmatpush2.xpose.msra.mxu0 0.0
    %1645 = vmatprep.subr.mxu0 0.0
    %1646 = vmatpush2.xpose.msra.mxu0 0.0
    %1647 = vmatprep.subr.mxu0 0.0
    %1648 = vmatpush2.xpose.msra.mxu0 0.0
    %1649 = vmatprep.subr.mxu0 0.0
    %1650 = vmatpush2.xpose.msra.mxu0 0.0
    %1651 = vmatprep.subr.mxu0 0.0
    %1652 = vmatpush2.xpose.msra.mxu0 0.0
    %1653 = vmatprep.subr.mxu0 0.0
    %1654 = vmatpush2.xpose.msra.mxu0 0.0
    %1655 = vmatprep.subr.mxu0 0.0
    %1656 = vmatpush2.xpose.msra.mxu0 0.0
    %1657 = vmatprep.subr.mxu0 0.0
    %1658 = vmatpush2.xpose.msra.mxu0 0.0
    %1659 = vmatprep.subr.mxu0 0.0
    %1660 = vmatpush2.xpose.msra.mxu0 0.0
    %1661 = vmatprep.subr.mxu0 0.0
    %1662 = vmatpush2.xpose.msra.mxu0 0.0
    %1663 = vmatprep.subr.mxu0 0.0
    %1664 = vmatpush2.xpose.msra.mxu0 0.0
    %1665 = vmatprep.mubr.f32.mxu0 0.0
    %1666 = vmatmul.mubr.f32.gmra.mxu0 %v1597
    %v1667 = vpop.f32.mrf.mxu0
    %v1668 = vadd.f32 0.0, %v1667
    %v1669 = vpop.f32.mrf.mxu0
    %1670 = vdwg.mxu0
    %v1671 = vmul.f32 %v1668, 0.25
    %v1672 = vadd.f32 %v1671, %v35
    %v1673 = vsel %vm1508, %v1672, -inf
    %1674 = vmax.xlane.f32.xlu0 %v1673
    %v1675 = vpop.xlane.xlu0 %1674
    %v1676 = vsub.f32 %v1672, %v1675
    %v1677 = vmul.f32 %v1676, 1.442695
    %v1678 = vpow.pop %v1677
    %v1679 = vsel %vm1508, %v1678, 0.0
    %1680 = vadd.xlane.f32.xlu0 %v1679
    %v1681 = vpop.xlane.xlu0 %1680
    %v1682 = vrcp.pop %v1681
    %v1683 = vmul.f32 %v1678, %v1682
    %1685 = vrot.lane.b32.xlu0 %v1418, 112
    %v1686 = vpop.permute.xlu0 %1685
    %v1689 = vsel %vm1508, %v1683, 0
    %1691 = vmatprep.subr.mxu0 0.0
    %1692 = vmatpush1.msra.mxu0 0.0
    %1693 = vmatprep.subr.mxu0 0.0
    %1694 = vmatpush1.msra.mxu0 0.0
    %1695 = vmatprep.subr.mxu0 0.0
    %1696 = vmatpush1.msra.mxu0 0.0
    %1697 = vmatprep.subr.mxu0 0.0
    %1698 = vmatpush1.msra.mxu0 0.0
    %1699 = vmatprep.subr.mxu0 0.0
    %1700 = vmatpush1.msra.mxu0 0.0
    %1701 = vmatprep.subr.mxu0 0.0
    %1702 = vmatpush1.msra.mxu0 0.0
    %1703 = vmatprep.subr.mxu0 0.0
    %1704 = vmatpush1.msra.mxu0 0.0
    %1705 = vmatprep.subr.mxu0 0.0
    %1706 = vmatpush1.msra.mxu0 0.0
    %1707 = vmatprep.subr.mxu0 0.0
    %1708 = vmatpush1.msra.mxu0 0.0
    %1709 = vmatprep.subr.mxu0 0.0
    %1710 = vmatpush1.msra.mxu0 0.0
    %1711 = vmatprep.subr.mxu0 0.0
    %1712 = vmatpush1.msra.mxu0 0.0
    %1713 = vmatprep.subr.mxu0 0.0
    %1714 = vmatpush1.msra.mxu0 0.0
    %1715 = vmatprep.subr.mxu0 0.0
    %1716 = vmatpush1.msra.mxu0 0.0
    %1717 = vmatprep.subr.mxu0 0.0
    %1718 = vmatpush1.msra.mxu0 0.0
    %1719 = vmatprep.subr.mxu0 0.0
    %1720 = vmatpush1.msra.mxu0 0.0
    %1721 = vmatprep.subr.mxu0 0.0
    %1722 = vmatpush1.msra.mxu0 %v1686
    %1723 = vmatprep.subr.mxu0 0.0
    %1724 = vmatpush2.msra.mxu0 0.0
    %1725 = vmatprep.subr.mxu0 0.0
    %1726 = vmatpush2.msra.mxu0 0.0
    %1727 = vmatprep.subr.mxu0 0.0
    %1728 = vmatpush2.msra.mxu0 0.0
    %1729 = vmatprep.subr.mxu0 0.0
    %1730 = vmatpush2.msra.mxu0 0.0
    %1731 = vmatprep.subr.mxu0 0.0
    %1732 = vmatpush2.msra.mxu0 0.0
    %1733 = vmatprep.subr.mxu0 0.0
    %1734 = vmatpush2.msra.mxu0 0.0
    %1735 = vmatprep.subr.mxu0 0.0
    %1736 = vmatpush2.msra.mxu0 0.0
    %1737 = vmatprep.subr.mxu0 0.0
    %1738 = vmatpush2.msra.mxu0 0.0
    %1739 = vmatprep.subr.mxu0 0.0
    %1740 = vmatpush2.msra.mxu0 0.0
    %1741 = vmatprep.subr.mxu0 0.0
    %1742 = vmatpush2.msra.mxu0 0.0
    %1743 = vmatprep.subr.mxu0 0.0
    %1744 = vmatpush2.msra.mxu0 0.0
    %1745 = vmatprep.subr.mxu0 0.0
    %1746 = vmatpush2.msra.mxu0 0.0
    %1747 = vmatprep.subr.mxu0 0.0
    %1748 = vmatpush2.msra.mxu0 0.0
    %1749 = vmatprep.subr.mxu0 0.0
    %1750 = vmatpush2.msra.mxu0 0.0
    %1751 = vmatprep.subr.mxu0 0.0
    %1752 = vmatpush2.msra.mxu0 0.0
    %1753 = vmatprep.subr.mxu0 0.0
    %1754 = vmatpush2.msra.mxu0 0.0
    %1755 = vmatprep.mubr.f32.mxu0 0.0
    %1756 = vmatmul.mubr.f32.gmra.mxu0 %v1689
    %v1757 = vpop.f32.mrf.mxu0
    %v1758 = vadd.f32 0.0, %v1757
    %v1759 = vpop.f32.mrf.mxu0
    %1760 = vdwg.mxu0
    %1761 = vrot.lane.b32.xlu0 %v1416, 96
    %v1762 = vpop.permute.xlu0 %1761
    %1763 = vrot.lane.b32.xlu0 %v1416, 32
    %v1764 = vpop.permute.xlu0 %1763
    %v1765 = vsel %vm160, %v1762, 0
    %v1767 = vsel %vm160, %v1764, 0
    %1769 = vmatprep.subr.mxu0 0.0
    %1770 = vmatpush1.xpose.msra.mxu0 0.0
    %1771 = vmatprep.subr.mxu0 0.0
    %1772 = vmatpush1.xpose.msra.mxu0 0.0
    %1773 = vmatprep.subr.mxu0 0.0
    %1774 = vmatpush1.xpose.msra.mxu0 0.0
    %1775 = vmatprep.subr.mxu0 0.0
    %1776 = vmatpush1.xpose.msra.mxu0 0.0
    %1777 = vmatprep.subr.mxu0 0.0
    %1778 = vmatpush1.xpose.msra.mxu0 0.0
    %1779 = vmatprep.subr.mxu0 0.0
    %1780 = vmatpush1.xpose.msra.mxu0 0.0
    %1781 = vmatprep.subr.mxu0 0.0
    %1782 = vmatpush1.xpose.msra.mxu0 0.0
    %1783 = vmatprep.subr.mxu0 0.0
    %1784 = vmatpush1.xpose.msra.mxu0 0.0
    %1785 = vmatprep.subr.mxu0 0.0
    %1786 = vmatpush1.xpose.msra.mxu0 0.0
    %1787 = vmatprep.subr.mxu0 0.0
    %1788 = vmatpush1.xpose.msra.mxu0 0.0
    %1789 = vmatprep.subr.mxu0 0.0
    %1790 = vmatpush1.xpose.msra.mxu0 0.0
    %1791 = vmatprep.subr.mxu0 0.0
    %1792 = vmatpush1.xpose.msra.mxu0 0.0
    %1793 = vmatprep.subr.mxu0 0.0
    %1794 = vmatpush1.xpose.msra.mxu0 0.0
    %1795 = vmatprep.subr.mxu0 0.0
    %1796 = vmatpush1.xpose.msra.mxu0 0.0
    %1797 = vmatprep.subr.mxu0 0.0
    %1798 = vmatpush1.xpose.msra.mxu0 0.0
    %1799 = vmatprep.subr.mxu0 0.0
    %1800 = vmatpush1.xpose.msra.mxu0 %v1767
    %1801 = vmatprep.subr.mxu0 0.0
    %1802 = vmatpush2.xpose.msra.mxu0 0.0
    %1803 = vmatprep.subr.mxu0 0.0
    %1804 = vmatpush2.xpose.msra.mxu0 0.0
    %1805 = vmatprep.subr.mxu0 0.0
    %1806 = vmatpush2.xpose.msra.mxu0 0.0
    %1807 = vmatprep.subr.mxu0 0.0
    %1808 = vmatpush2.xpose.msra.mxu0 0.0
    %1809 = vmatprep.subr.mxu0 0.0
    %1810 = vmatpush2.xpose.msra.mxu0 0.0
    %1811 = vmatprep.subr.mxu0 0.0
    %1812 = vmatpush2.xpose.msra.mxu0 0.0
    %1813 = vmatprep.subr.mxu0 0.0
    %1814 = vmatpush2.xpose.msra.mxu0 0.0
    %1815 = vmatprep.subr.mxu0 0.0
    %1816 = vmatpush2.xpose.msra.mxu0 0.0
    %1817 = vmatprep.subr.mxu0 0.0
    %1818 = vmatpush2.xpose.msra.mxu0 0.0
    %1819 = vmatprep.subr.mxu0 0.0
    %1820 = vmatpush2.xpose.msra.mxu0 0.0
    %1821 = vmatprep.subr.mxu0 0.0
    %1822 = vmatpush2.xpose.msra.mxu0 0.0
    %1823 = vmatprep.subr.mxu0 0.0
    %1824 = vmatpush2.xpose.msra.mxu0 0.0
    %1825 = vmatprep.subr.mxu0 0.0
    %1826 = vmatpush2.xpose.msra.mxu0 0.0
    %1827 = vmatprep.subr.mxu0 0.0
    %1828 = vmatpush2.xpose.msra.mxu0 0.0
    %1829 = vmatprep.subr.mxu0 0.0
    %1830 = vmatpush2.xpose.msra.mxu0 0.0
    %1831 = vmatprep.subr.mxu0 0.0
    %1832 = vmatpush2.xpose.msra.mxu0 0.0
    %1833 = vmatprep.mubr.f32.mxu0 0.0
    %1834 = vmatmul.mubr.f32.gmra.mxu0 %v1765
    %v1835 = vpop.f32.mrf.mxu0
    %v1836 = vadd.f32 0.0, %v1835
    %v1837 = vpop.f32.mrf.mxu0
    %1838 = vdwg.mxu0
    %v1839 = vmul.f32 %v1836, 0.25
    %v1840 = vadd.f32 %v1839, %v35
    %v1841 = vsel %vm1508, %v1840, -inf
    %1842 = vmax.xlane.f32.xlu0 %v1841
    %v1843 = vpop.xlane.xlu0 %1842
    %v1844 = vsub.f32 %v1840, %v1843
    %v1845 = vmul.f32 %v1844, 1.442695
    %v1846 = vpow.pop %v1845
    %v1847 = vsel %vm1508, %v1846, 0.0
    %1848 = vadd.xlane.f32.xlu0 %v1847
    %v1849 = vpop.xlane.xlu0 %1848
    %v1850 = vrcp.pop %v1849
    %v1851 = vmul.f32 %v1846, %v1850
    %1852 = vrot.lane.b32.xlu0 %v1418, 96
    %v1853 = vpop.permute.xlu0 %1852
    %v1856 = vsel %vm1508, %v1851, 0
    %1858 = vmatprep.subr.mxu0 0.0
    %1859 = vmatpush1.msra.mxu0 0.0
    %1860 = vmatprep.subr.mxu0 0.0
    %1861 = vmatpush1.msra.mxu0 0.0
    %1862 = vmatprep.subr.mxu0 0.0
    %1863 = vmatpush1.msra.mxu0 0.0
    %1864 = vmatprep.subr.mxu0 0.0
    %1865 = vmatpush1.msra.mxu0 0.0
    %1866 = vmatprep.subr.mxu0 0.0
    %1867 = vmatpush1.msra.mxu0 0.0
    %1868 = vmatprep.subr.mxu0 0.0
    %1869 = vmatpush1.msra.mxu0 0.0
    %1870 = vmatprep.subr.mxu0 0.0
    %1871 = vmatpush1.msra.mxu0 0.0
    %1872 = vmatprep.subr.mxu0 0.0
    %1873 = vmatpush1.msra.mxu0 0.0
    %1874 = vmatprep.subr.mxu0 0.0
    %1875 = vmatpush1.msra.mxu0 0.0
    %1876 = vmatprep.subr.mxu0 0.0
    %1877 = vmatpush1.msra.mxu0 0.0
    %1878 = vmatprep.subr.mxu0 0.0
    %1879 = vmatpush1.msra.mxu0 0.0
    %1880 = vmatprep.subr.mxu0 0.0
    %1881 = vmatpush1.msra.mxu0 0.0
    %1882 = vmatprep.subr.mxu0 0.0
    %1883 = vmatpush1.msra.mxu0 0.0
    %1884 = vmatprep.subr.mxu0 0.0
    %1885 = vmatpush1.msra.mxu0 0.0
    %1886 = vmatprep.subr.mxu0 0.0
    %1887 = vmatpush1.msra.mxu0 0.0
    %1888 = vmatprep.subr.mxu0 0.0
    %1889 = vmatpush1.msra.mxu0 %v1853
    %1890 = vmatprep.subr.mxu0 0.0
    %1891 = vmatpush2.msra.mxu0 0.0
    %1892 = vmatprep.subr.mxu0 0.0
    %1893 = vmatpush2.msra.mxu0 0.0
    %1894 = vmatprep.subr.mxu0 0.0
    %1895 = vmatpush2.msra.mxu0 0.0
    %1896 = vmatprep.subr.mxu0 0.0
    %1897 = vmatpush2.msra.mxu0 0.0
    %1898 = vmatprep.subr.mxu0 0.0
    %1899 = vmatpush2.msra.mxu0 0.0
    %1900 = vmatprep.subr.mxu0 0.0
    %1901 = vmatpush2.msra.mxu0 0.0
    %1902 = vmatprep.subr.mxu0 0.0
    %1903 = vmatpush2.msra.mxu0 0.0
    %1904 = vmatprep.subr.mxu0 0.0
    %1905 = vmatpush2.msra.mxu0 0.0
    %1906 = vmatprep.subr.mxu0 0.0
    %1907 = vmatpush2.msra.mxu0 0.0
    %1908 = vmatprep.subr.mxu0 0.0
    %1909 = vmatpush2.msra.mxu0 0.0
    %1910 = vmatprep.subr.mxu0 0.0
    %1911 = vmatpush2.msra.mxu0 0.0
    %1912 = vmatprep.subr.mxu0 0.0
    %1913 = vmatpush2.msra.mxu0 0.0
    %1914 = vmatprep.subr.mxu0 0.0
    %1915 = vmatpush2.msra.mxu0 0.0
    %1916 = vmatprep.subr.mxu0 0.0
    %1917 = vmatpush2.msra.mxu0 0.0
    %1918 = vmatprep.subr.mxu0 0.0
    %1919 = vmatpush2.msra.mxu0 0.0
    %1920 = vmatprep.subr.mxu0 0.0
    %1921 = vmatpush2.msra.mxu0 0.0
    %1922 = vmatprep.mubr.f32.mxu0 0.0
    %1923 = vmatmul.mubr.f32.gmra.mxu0 %v1856
    %v1924 = vpop.f32.mrf.mxu0
    %v1925 = vadd.f32 0.0, %v1924
    %v1926 = vpop.f32.mrf.mxu0
    %1927 = vdwg.mxu0
    %1928 = vrot.lane.b32.xlu0 %v1416, 80
    %v1929 = vpop.permute.xlu0 %1928
    %1930 = vrot.lane.b32.xlu0 %v1416, 16
    %v1931 = vpop.permute.xlu0 %1930
    %v1932 = vsel %vm160, %v1929, 0
    %v1934 = vsel %vm160, %v1931, 0
    %1936 = vmatprep.subr.mxu0 0.0
    %1937 = vmatpush1.xpose.msra.mxu0 0.0
    %1938 = vmatprep.subr.mxu0 0.0
    %1939 = vmatpush1.xpose.msra.mxu0 0.0
    %1940 = vmatprep.subr.mxu0 0.0
    %1941 = vmatpush1.xpose.msra.mxu0 0.0
    %1942 = vmatprep.subr.mxu0 0.0
    %1943 = vmatpush1.xpose.msra.mxu0 0.0
    %1944 = vmatprep.subr.mxu0 0.0
    %1945 = vmatpush1.xpose.msra.mxu0 0.0
    %1946 = vmatprep.subr.mxu0 0.0
    %1947 = vmatpush1.xpose.msra.mxu0 0.0
    %1948 = vmatprep.subr.mxu0 0.0
    %1949 = vmatpush1.xpose.msra.mxu0 0.0
    %1950 = vmatprep.subr.mxu0 0.0
    %1951 = vmatpush1.xpose.msra.mxu0 0.0
    %1952 = vmatprep.subr.mxu0 0.0
    %1953 = vmatpush1.xpose.msra.mxu0 0.0
    %1954 = vmatprep.subr.mxu0 0.0
    %1955 = vmatpush1.xpose.msra.mxu0 0.0
    %1956 = vmatprep.subr.mxu0 0.0
    %1957 = vmatpush1.xpose.msra.mxu0 0.0
    %1958 = vmatprep.subr.mxu0 0.0
    %1959 = vmatpush1.xpose.msra.mxu0 0.0
    %1960 = vmatprep.subr.mxu0 0.0
    %1961 = vmatpush1.xpose.msra.mxu0 0.0
    %1962 = vmatprep.subr.mxu0 0.0
    %1963 = vmatpush1.xpose.msra.mxu0 0.0
    %1964 = vmatprep.subr.mxu0 0.0
    %1965 = vmatpush1.xpose.msra.mxu0 0.0
    %1966 = vmatprep.subr.mxu0 0.0
    %1967 = vmatpush1.xpose.msra.mxu0 %v1934
    %1968 = vmatprep.subr.mxu0 0.0
    %1969 = vmatpush2.xpose.msra.mxu0 0.0
    %1970 = vmatprep.subr.mxu0 0.0
    %1971 = vmatpush2.xpose.msra.mxu0 0.0
    %1972 = vmatprep.subr.mxu0 0.0
    %1973 = vmatpush2.xpose.msra.mxu0 0.0
    %1974 = vmatprep.subr.mxu0 0.0
    %1975 = vmatpush2.xpose.msra.mxu0 0.0
    %1976 = vmatprep.subr.mxu0 0.0
    %1977 = vmatpush2.xpose.msra.mxu0 0.0
    %1978 = vmatprep.subr.mxu0 0.0
    %1979 = vmatpush2.xpose.msra.mxu0 0.0
    %1980 = vmatprep.subr.mxu0 0.0
    %1981 = vmatpush2.xpose.msra.mxu0 0.0
    %1982 = vmatprep.subr.mxu0 0.0
    %1983 = vmatpush2.xpose.msra.mxu0 0.0
    %1984 = vmatprep.subr.mxu0 0.0
    %1985 = vmatpush2.xpose.msra.mxu0 0.0
    %1986 = vmatprep.subr.mxu0 0.0
    %1987 = vmatpush2.xpose.msra.mxu0 0.0
    %1988 = vmatprep.subr.mxu0 0.0
    %1989 = vmatpush2.xpose.msra.mxu0 0.0
    %1990 = vmatprep.subr.mxu0 0.0
    %1991 = vmatpush2.xpose.msra.mxu0 0.0
    %1992 = vmatprep.subr.mxu0 0.0
    %1993 = vmatpush2.xpose.msra.mxu0 0.0
    %1994 = vmatprep.subr.mxu0 0.0
    %1995 = vmatpush2.xpose.msra.mxu0 0.0
    %1996 = vmatprep.subr.mxu0 0.0
    %1997 = vmatpush2.xpose.msra.mxu0 0.0
    %1998 = vmatprep.subr.mxu0 0.0
    %1999 = vmatpush2.xpose.msra.mxu0 0.0
    %2000 = vmatprep.mubr.f32.mxu0 0.0
    %2001 = vmatmul.mubr.f32.gmra.mxu0 %v1932
    %v2002 = vpop.f32.mrf.mxu0
    %v2003 = vadd.f32 0.0, %v2002
    %v2004 = vpop.f32.mrf.mxu0
    %2005 = vdwg.mxu0
    %v2006 = vmul.f32 %v2003, 0.25
    %v2007 = vadd.f32 %v2006, %v35
    %v2008 = vsel %vm1508, %v2007, -inf
    %2009 = vmax.xlane.f32.xlu0 %v2008
    %v2010 = vpop.xlane.xlu0 %2009
    %v2011 = vsub.f32 %v2007, %v2010
    %v2012 = vmul.f32 %v2011, 1.442695
    %v2013 = vpow.pop %v2012
    %v2014 = vsel %vm1508, %v2013, 0.0
    %2015 = vadd.xlane.f32.xlu0 %v2014
    %v2016 = vpop.xlane.xlu0 %2015
    %v2017 = vrcp.pop %v2016
    %v2018 = vmul.f32 %v2013, %v2017
    %2019 = vrot.lane.b32.xlu0 %v1418, 80
    %v2020 = vpop.permute.xlu0 %2019
    %v2023 = vsel %vm1508, %v2018, 0
    %2025 = vmatprep.subr.mxu0 0.0
    %2026 = vmatpush1.msra.mxu0 0.0
    %2027 = vmatprep.subr.mxu0 0.0
    %2028 = vmatpush1.msra.mxu0 0.0
    %2029 = vmatprep.subr.mxu0 0.0
    %2030 = vmatpush1.msra.mxu0 0.0
    %2031 = vmatprep.subr.mxu0 0.0
    %2032 = vmatpush1.msra.mxu0 0.0
    %2033 = vmatprep.subr.mxu0 0.0
    %2034 = vmatpush1.msra.mxu0 0.0
    %2035 = vmatprep.subr.mxu0 0.0
    %2036 = vmatpush1.msra.mxu0 0.0
    %2037 = vmatprep.subr.mxu0 0.0
    %2038 = vmatpush1.msra.mxu0 0.0
    %2039 = vmatprep.subr.mxu0 0.0
    %2040 = vmatpush1.msra.mxu0 0.0
    %2041 = vmatprep.subr.mxu0 0.0
    %2042 = vmatpush1.msra.mxu0 0.0
    %2043 = vmatprep.subr.mxu0 0.0
    %2044 = vmatpush1.msra.mxu0 0.0
    %2045 = vmatprep.subr.mxu0 0.0
    %2046 = vmatpush1.msra.mxu0 0.0
    %2047 = vmatprep.subr.mxu0 0.0
    %2048 = vmatpush1.msra.mxu0 0.0
    %2049 = vmatprep.subr.mxu0 0.0
    %2050 = vmatpush1.msra.mxu0 0.0
    %2051 = vmatprep.subr.mxu0 0.0
    %2052 = vmatpush1.msra.mxu0 0.0
    %2053 = vmatprep.subr.mxu0 0.0
    %2054 = vmatpush1.msra.mxu0 0.0
    %2055 = vmatprep.subr.mxu0 0.0
    %2056 = vmatpush1.msra.mxu0 %v2020
    %2057 = vmatprep.subr.mxu0 0.0
    %2058 = vmatpush2.msra.mxu0 0.0
    %2059 = vmatprep.subr.mxu0 0.0
    %2060 = vmatpush2.msra.mxu0 0.0
    %2061 = vmatprep.subr.mxu0 0.0
    %2062 = vmatpush2.msra.mxu0 0.0
    %2063 = vmatprep.subr.mxu0 0.0
    %2064 = vmatpush2.msra.mxu0 0.0
    %2065 = vmatprep.subr.mxu0 0.0
    %2066 = vmatpush2.msra.mxu0 0.0
    %2067 = vmatprep.subr.mxu0 0.0
    %2068 = vmatpush2.msra.mxu0 0.0
    %2069 = vmatprep.subr.mxu0 0.0
    %2070 = vmatpush2.msra.mxu0 0.0
    %2071 = vmatprep.subr.mxu0 0.0
    %2072 = vmatpush2.msra.mxu0 0.0
    %2073 = vmatprep.subr.mxu0 0.0
    %2074 = vmatpush2.msra.mxu0 0.0
    %2075 = vmatprep.subr.mxu0 0.0
    %2076 = vmatpush2.msra.mxu0 0.0
    %2077 = vmatprep.subr.mxu0 0.0
    %2078 = vmatpush2.msra.mxu0 0.0
    %2079 = vmatprep.subr.mxu0 0.0
    %2080 = vmatpush2.msra.mxu0 0.0
    %2081 = vmatprep.subr.mxu0 0.0
    %2082 = vmatpush2.msra.mxu0 0.0
    %2083 = vmatprep.subr.mxu0 0.0
    %2084 = vmatpush2.msra.mxu0 0.0
    %2085 = vmatprep.subr.mxu0 0.0
    %2086 = vmatpush2.msra.mxu0 0.0
    %2087 = vmatprep.subr.mxu0 0.0
    %2088 = vmatpush2.msra.mxu0 0.0
    %2089 = vmatprep.mubr.f32.mxu0 0.0
    %2090 = vmatmul.mubr.f32.gmra.mxu0 %v2023
    %v2091 = vpop.f32.mrf.mxu0
    %v2092 = vadd.f32 0.0, %v2091
    %v2093 = vpop.f32.mrf.mxu0
    %2094 = vdwg.mxu0
    %2096 = vrot.lane.b32.xlu0 %v1758, 16
    %v2097 = vpop.permute.xlu0 %2096
    %2100 = vrot.lane.b32.xlu0 %v1925, 32
    %v2101 = vpop.permute.xlu0 %2100
    %2104 = vrot.lane.b32.xlu0 %v2092, 48
    %v2105 = vpop.permute.xlu0 %2104
    %v2107 = vsel %vm160, %v1590, %v2097
    %v2108 = vsel %vm61, %v2107, %v2101
    %v2109 = vsel %vm993, %v2108, %v2105
    %v2111 = vsel %vm996, %v2109, 0
    %2113 = vmatprep.subr.mxu0 0.0
    %2114 = vmatpush1.msra.mxu0 0.0
    %2115 = vmatprep.subr.mxu0 0.0
    %2116 = vmatpush1.msra.mxu0 0.0
    %2117 = vmatprep.subr.mxu0 0.0
    %2118 = vmatpush1.msra.mxu0 0.0
    %2119 = vmatprep.subr.mxu0 0.0
    %2120 = vmatpush1.msra.mxu0 0.0
    %2121 = vmatprep.subr.mxu0 0.0
    %2122 = vmatpush1.msra.mxu0 0.0
    %2123 = vmatprep.subr.mxu0 0.0
    %2124 = vmatpush1.msra.mxu0 0.0
    %2125 = vmatprep.subr.mxu0 0.0
    %2126 = vmatpush1.msra.mxu0 0.0
    %2127 = vmatprep.subr.mxu0 0.0
    %2128 = vmatpush1.msra.mxu0 0.0
    %2129 = vmatprep.subr.mxu0 0.0
    %2130 = vmatpush1.msra.mxu0 %v1427
    %2131 = vmatprep.subr.mxu0 0.0
    %2132 = vmatpush1.msra.mxu0 %v1426
    %2133 = vmatprep.subr.mxu0 0.0
    %2134 = vmatpush1.msra.mxu0 %v1425
    %2135 = vmatprep.subr.mxu0 0.0
    %2136 = vmatpush1.msra.mxu0 %v1424
    %2137 = vmatprep.subr.mxu0 0.0
    %2138 = vmatpush1.msra.mxu0 %v1423
    %2139 = vmatprep.subr.mxu0 0.0
    %2140 = vmatpush1.msra.mxu0 %v1422
    %2141 = vmatprep.subr.mxu0 0.0
    %2142 = vmatpush1.msra.mxu0 %v1421
    %2143 = vmatprep.subr.mxu0 0.0
    %2144 = vmatpush1.msra.mxu0 %v1420
    %2145 = vmatprep.subr.mxu0 0.0
    %2146 = vmatpush2.msra.mxu0 0.0
    %2147 = vmatprep.subr.mxu0 0.0
    %2148 = vmatpush2.msra.mxu0 0.0
    %2149 = vmatprep.subr.mxu0 0.0
    %2150 = vmatpush2.msra.mxu0 0.0
    %2151 = vmatprep.subr.mxu0 0.0
    %2152 = vmatpush2.msra.mxu0 0.0
    %2153 = vmatprep.subr.mxu0 0.0
    %2154 = vmatpush2.msra.mxu0 0.0
    %2155 = vmatprep.subr.mxu0 0.0
    %2156 = vmatpush2.msra.mxu0 0.0
    %2157 = vmatprep.subr.mxu0 0.0
    %2158 = vmatpush2.msra.mxu0 0.0
    %2159 = vmatprep.subr.mxu0 0.0
    %2160 = vmatpush2.msra.mxu0 0.0
    %2161 = vmatprep.subr.mxu0 0.0
    %2162 = vmatpush2.msra.mxu0 0.0
    %2163 = vmatprep.subr.mxu0 0.0
    %2164 = vmatpush2.msra.mxu0 0.0
    %2165 = vmatprep.subr.mxu0 0.0
    %2166 = vmatpush2.msra.mxu0 0.0
    %2167 = vmatprep.subr.mxu0 0.0
    %2168 = vmatpush2.msra.mxu0 0.0
    %2169 = vmatprep.subr.mxu0 0.0
    %2170 = vmatpush2.msra.mxu0 0.0
    %2171 = vmatprep.subr.mxu0 0.0
    %2172 = vmatpush2.msra.mxu0 0.0
    %2173 = vmatprep.subr.mxu0 0.0
    %2174 = vmatpush2.msra.mxu0 0.0
    %2175 = vmatprep.subr.mxu0 0.0
    %2176 = vmatpush2.msra.mxu0 0.0
    %2177 = vmatprep.mubr.f32.mxu0 0.0
    %2178 = vmatmul.mubr.f32.gmra.mxu0 %v2111
    %v2179 = vpop.f32.mrf.mxu0
    %v2180 = vadd.f32 %v1428, %v2179
    %v2181 = vpop.f32.mrf.mxu0
    %2182 = vdwg.mxu0
    %v2183 = vadd.f32 %v1324, %v2180
    %v2184 = vld [vmem:[%s1 + $0x290] ss:$0 sm:$0xff]
    %v2185 = vld [vmem:[%s1 + $0x2a0] ss:$0 sm:$0xff]
    %v2186 = vsel %vm61, %v2183, 0.0
    %2187 = vadd.xlane.f32.xlu0 %v2186
    %v2188 = vpop.xlane.xlu0 %2187
    %v2189 = vmul.f32 %v2188, %v1088
    %v2190 = vsub.f32 %v2183, %v2189
    %v2191 = vmul.f32 %v2190, %v2190
    %v2192 = vsel %vm61, %v2191, 0.0
    %2193 = vadd.xlane.f32.xlu0 %v2192
    %v2194 = vpop.xlane.xlu0 %2193
    %v2195 = vmul.f32 %v2194, %v1088
    %v2196 = vadd.f32 %v2195, 1e-05
    %v2197 = vrsqrt.pop %v2196
    %v2198 = vmul.f32 %v2190, %v2197
    %v2199 = vmul.f32 %v2198, %v2184
    %v2200 = vadd.f32 %v2199, %v2185
    %v2201 = vld [vmem:[%s1 + $0x2b0] sm:$0xff]
    %v2202 = vld [vmem:[%s1 + $0x2c0] sm:$0xff]
    %v2203 = vld [vmem:[%s1 + $0x2d0] sm:$0xff]
    %v2204 = vld [vmem:[%s1 + $0x2e0] sm:$0xff]
    %v2205 = vld [vmem:[%s1 + $0x2f0] ss:$0 sm:$0xff]
    %v2207 = vsel %vm61, %v2200, 0
    %2209 = vmatprep.subr.mxu0 0.0
    %2210 = vmatpush1.msra.mxu0 0.0
    %2211 = vmatprep.subr.mxu0 0.0
    %2212 = vmatpush1.msra.mxu0 0.0
    %2213 = vmatprep.subr.mxu0 0.0
    %2214 = vmatpush1.msra.mxu0 0.0
    %2215 = vmatprep.subr.mxu0 0.0
    %2216 = vmatpush1.msra.mxu0 0.0
    %2217 = vmatprep.subr.mxu0 0.0
    %2218 = vmatpush1.msra.mxu0 0.0
    %2219 = vmatprep.subr.mxu0 0.0
    %2220 = vmatpush1.msra.mxu0 0.0
    %2221 = vmatprep.subr.mxu0 0.0
    %2222 = vmatpush1.msra.mxu0 0.0
    %2223 = vmatprep.subr.mxu0 0.0
    %2224 = vmatpush1.msra.mxu0 0.0
    %2225 = vmatprep.subr.mxu0 0.0
    %2226 = vmatpush1.msra.mxu0 0.0
    %2227 = vmatprep.subr.mxu0 0.0
    %2228 = vmatpush1.msra.mxu0 0.0
    %2229 = vmatprep.subr.mxu0 0.0
    %2230 = vmatpush1.msra.mxu0 0.0
    %2231 = vmatprep.subr.mxu0 0.0
    %2232 = vmatpush1.msra.mxu0 0.0
    %2233 = vmatprep.subr.mxu0 0.0
    %2234 = vmatpush1.msra.mxu0 %v2204
    %2235 = vmatprep.subr.mxu0 0.0
    %2236 = vmatpush1.msra.mxu0 %v2203
    %2237 = vmatprep.subr.mxu0 0.0
    %2238 = vmatpush1.msra.mxu0 %v2202
    %2239 = vmatprep.subr.mxu0 0.0
    %2240 = vmatpush1.msra.mxu0 %v2201
    %2241 = vmatprep.subr.mxu0 0.0
    %2242 = vmatpush2.msra.mxu0 0.0
    %2243 = vmatprep.subr.mxu0 0.0
    %2244 = vmatpush2.msra.mxu0 0.0
    %2245 = vmatprep.subr.mxu0 0.0
    %2246 = vmatpush2.msra.mxu0 0.0
    %2247 = vmatprep.subr.mxu0 0.0
    %2248 = vmatpush2.msra.mxu0 0.0
    %2249 = vmatprep.subr.mxu0 0.0
    %2250 = vmatpush2.msra.mxu0 0.0
    %2251 = vmatprep.subr.mxu0 0.0
    %2252 = vmatpush2.msra.mxu0 0.0
    %2253 = vmatprep.subr.mxu0 0.0
    %2254 = vmatpush2.msra.mxu0 0.0
    %2255 = vmatprep.subr.mxu0 0.0
    %2256 = vmatpush2.msra.mxu0 0.0
    %2257 = vmatprep.subr.mxu0 0.0
    %2258 = vmatpush2.msra.mxu0 0.0
    %2259 = vmatprep.subr.mxu0 0.0
    %2260 = vmatpush2.msra.mxu0 0.0
    %2261 = vmatprep.subr.mxu0 0.0
    %2262 = vmatpush2.msra.mxu0 0.0
    %2263 = vmatprep.subr.mxu0 0.0
    %2264 = vmatpush2.msra.mxu0 0.0
    %2265 = vmatprep.subr.mxu0 0.0
    %2266 = vmatpush2.msra.mxu0 0.0
    %2267 = vmatprep.subr.mxu0 0.0
    %2268 = vmatpush2.msra.mxu0 0.0
    %2269 = vmatprep.subr.mxu0 0.0
    %2270 = vmatpush2.msra.mxu0 0.0
    %2271 = vmatprep.subr.mxu0 0.0
    %2272 = vmatpush2.msra.mxu0 0.0
    %2273 = vmatprep.mubr.f32.mxu0 0.0
    %2274 = vmatmul.mubr.f32.gmra.mxu0 %v2207
    %v2275 = vpop.f32.mrf.mxu0
    %v2276 = vadd.f32 %v2205, %v2275
    %v2277 = vpop.f32.mrf.mxu0
    %2278 = vdwg.mxu0
    %v2279 = vld [vmem:[%s1 + $0x300] sm:$0xff]
    %v2280 = vld [vmem:[%s1 + $0x310] sm:$0xff]
    %v2281 = vld [vmem:[%s1 + $0x320] sm:$0xff]
    %v2282 = vld [vmem:[%s1 + $0x330] sm:$0xff]
    %v2283 = vld [vmem:[%s1 + $0x340] ss:$0 sm:$0xff]
    %v2285 = vsel %vm61, %v1317, 0
    %v2288 = vsel %vm61, %v1318, 0
    %2290 = vmatprep.subr.mxu0 0.0
    %2291 = vmatpush1.msra.mxu0 0.0
    %2292 = vmatprep.subr.mxu0 0.0
    %2293 = vmatpush1.msra.mxu0 0.0
    %2294 = vmatprep.subr.mxu0 0.0
    %2295 = vmatpush1.msra.mxu0 0.0
    %2296 = vmatprep.subr.mxu0 0.0
    %2297 = vmatpush1.msra.mxu0 0.0
    %2298 = vmatprep.subr.mxu0 0.0
    %2299 = vmatpush1.msra.mxu0 0.0
    %2300 = vmatprep.subr.mxu0 0.0
    %2301 = vmatpush1.msra.mxu0 0.0
    %2302 = vmatprep.subr.mxu0 0.0
    %2303 = vmatpush1.msra.mxu0 0.0
    %2304 = vmatprep.subr.mxu0 0.0
    %2305 = vmatpush1.msra.mxu0 0.0
    %2306 = vmatprep.subr.mxu0 0.0
    %2307 = vmatpush1.msra.mxu0 0.0
    %2308 = vmatprep.subr.mxu0 0.0
    %2309 = vmatpush1.msra.mxu0 0.0
    %2310 = vmatprep.subr.mxu0 0.0
    %2311 = vmatpush1.msra.mxu0 0.0
    %2312 = vmatprep.subr.mxu0 0.0
    %2313 = vmatpush1.msra.mxu0 0.0
    %2314 = vmatprep.subr.mxu0 0.0
    %2315 = vmatpush1.msra.mxu0 %v2282
    %2316 = vmatprep.subr.mxu0 0.0
    %2317 = vmatpush1.msra.mxu0 %v2281
    %2318 = vmatprep.subr.mxu0 0.0
    %2319 = vmatpush1.msra.mxu0 %v2280
    %2320 = vmatprep.subr.mxu0 0.0
    %2321 = vmatpush1.msra.mxu0 %v2279
    %2322 = vmatprep.subr.mxu0 0.0
    %2323 = vmatpush2.msra.mxu0 0.0
    %2324 = vmatprep.subr.mxu0 0.0
    %2325 = vmatpush2.msra.mxu0 0.0
    %2326 = vmatprep.subr.mxu0 0.0
    %2327 = vmatpush2.msra.mxu0 0.0
    %2328 = vmatprep.subr.mxu0 0.0
    %2329 = vmatpush2.msra.mxu0 0.0
    %2330 = vmatprep.subr.mxu0 0.0
    %2331 = vmatpush2.msra.mxu0 0.0
    %2332 = vmatprep.subr.mxu0 0.0
    %2333 = vmatpush2.msra.mxu0 0.0
    %2334 = vmatprep.subr.mxu0 0.0
    %2335 = vmatpush2.msra.mxu0 0.0
    %2336 = vmatprep.subr.mxu0 0.0
    %2337 = vmatpush2.msra.mxu0 0.0
    %2338 = vmatprep.subr.mxu0 0.0
    %2339 = vmatpush2.msra.mxu0 0.0
    %2340 = vmatprep.subr.mxu0 0.0
    %2341 = vmatpush2.msra.mxu0 0.0
    %2342 = vmatprep.subr.mxu0 0.0
    %2343 = vmatpush2.msra.mxu0 0.0
    %2344 = vmatprep.subr.mxu0 0.0
    %2345 = vmatpush2.msra.mxu0 0.0
    %2346 = vmatprep.subr.mxu0 0.0
    %2347 = vmatpush2.msra.mxu0 0.0
    %2348 = vmatprep.subr.mxu0 0.0
    %2349 = vmatpush2.msra.mxu0 0.0
    %2350 = vmatprep.subr.mxu0 0.0
    %2351 = vmatpush2.msra.mxu0 0.0
    %2352 = vmatprep.subr.mxu0 0.0
    %2353 = vmatpush2.msra.mxu0 0.0
    %2354 = vmatprep.mubr.f32.mxu0 0.0
    %2355 = vmatmul.mubr.f32.gmra.mxu0 %v2285
    %v2356 = vpop.f32.mrf.mxu0
    %v2357 = vadd.f32 %v2283, %v2356
    %v2358 = vpop.f32.mrf.mxu0
    %2359 = vmatprep.mubr.f32.mxu0 0.0
    %2360 = vmatmul.mubr.f32.gmra.mxu0 %v2288
    %v2361 = vpop.f32.mrf.mxu0
    %v2362 = vadd.f32 %v2283, %v2361
    %v2363 = vpop.f32.mrf.mxu0
    %2364 = vdwg.mxu0
    %v2365 = vld [vmem:[%s1 + $0x350] sm:$0xff]
    %v2366 = vld [vmem:[%s1 + $0x360] sm:$0xff]
    %v2367 = vld [vmem:[%s1 + $0x370] sm:$0xff]
    %v2368 = vld [vmem:[%s1 + $0x380] sm:$0xff]
    %v2369 = vld [vmem:[%s1 + $0x390] sm:$0xff]
    %v2370 = vld [vmem:[%s1 + $0x3a0] sm:$0xff]
    %v2371 = vld [vmem:[%s1 + $0x3b0] sm:$0xff]
    %v2372 = vld [vmem:[%s1 + $0x3c0] sm:$0xff]
    %v2373 = vld [vmem:[%s1 + $0x3d0] ss:$0 sm:$0xff]
    %v2375 = vsel %vm160, %v2276, 0
    %v2378 = vsel %vm160, %v2357, 0
    %v2381 = vsel %vm160, %v2362, 0
    %2383 = vmatprep.subr.mxu0 0.0
    %2384 = vmatpush1.xpose.msra.mxu0 0.0
    %2385 = vmatprep.subr.mxu0 0.0
    %2386 = vmatpush1.xpose.msra.mxu0 0.0
    %2387 = vmatprep.subr.mxu0 0.0
    %2388 = vmatpush1.xpose.msra.mxu0 0.0
    %2389 = vmatprep.subr.mxu0 0.0
    %2390 = vmatpush1.xpose.msra.mxu0 0.0
    %2391 = vmatprep.subr.mxu0 0.0
    %2392 = vmatpush1.xpose.msra.mxu0 0.0
    %2393 = vmatprep.subr.mxu0 0.0
    %2394 = vmatpush1.xpose.msra.mxu0 0.0
    %2395 = vmatprep.subr.mxu0 0.0
    %2396 = vmatpush1.xpose.msra.mxu0 0.0
    %2397 = vmatprep.subr.mxu0 0.0
    %2398 = vmatpush1.xpose.msra.mxu0 0.0
    %2399 = vmatprep.subr.mxu0 0.0
    %2400 = vmatpush1.xpose.msra.mxu0 0.0
    %2401 = vmatprep.subr.mxu0 0.0
    %2402 = vmatpush1.xpose.msra.mxu0 0.0
    %2403 = vmatprep.subr.mxu0 0.0
    %2404 = vmatpush1.xpose.msra.mxu0 0.0
    %2405 = vmatprep.subr.mxu0 0.0
    %2406 = vmatpush1.xpose.msra.mxu0 0.0
    %2407 = vmatprep.subr.mxu0 0.0
    %2408 = vmatpush1.xpose.msra.mxu0 0.0
    %2409 = vmatprep.subr.mxu0 0.0
    %2410 = vmatpush1.xpose.msra.mxu0 0.0
    %2411 = vmatprep.subr.mxu0 0.0
    %2412 = vmatpush1.xpose.msra.mxu0 %v2381
    %2413 = vmatprep.subr.mxu0 0.0
    %2414 = vmatpush1.xpose.msra.mxu0 %v2378
    %2415 = vmatprep.subr.mxu0 0.0
    %2416 = vmatpush2.xpose.msra.mxu0 0.0
    %2417 = vmatprep.subr.mxu0 0.0
    %2418 = vmatpush2.xpose.msra.mxu0 0.0
    %2419 = vmatprep.subr.mxu0 0.0
    %2420 = vmatpush2.xpose.msra.mxu0 0.0
    %2421 = vmatprep.subr.mxu0 0.0
    %2422 = vmatpush2.xpose.msra.mxu0 0.0
    %2423 = vmatprep.subr.mxu0 0.0
    %2424 = vmatpush2.xpose.msra.mxu0 0.0
    %2425 = vmatprep.subr.mxu0 0.0
    %2426 = vmatpush2.xpose.msra.mxu0 0.0
    %2427 = vmatprep.subr.mxu0 0.0
    %2428 = vmatpush2.xpose.msra.mxu0 0.0
    %2429 = vmatprep.subr.mxu0 0.0
    %2430 = vmatpush2.xpose.msra.mxu0 0.0
    %2431 = vmatprep.subr.mxu0 0.0
    %2432 = vmatpush2.xpose.msra.mxu0 0.0
    %2433 = vmatprep.subr.mxu0 0.0
    %2434 = vmatpush2.xpose.msra.mxu0 0.0
    %2435 = vmatprep.subr.mxu0 0.0
    %2436 = vmatpush2.xpose.msra.mxu0 0.0
    %2437 = vmatprep.subr.mxu0 0.0
    %2438 = vmatpush2.xpose.msra.mxu0 0.0
    %2439 = vmatprep.subr.mxu0 0.0
    %2440 = vmatpush2.xpose.msra.mxu0 0.0
    %2441 = vmatprep.subr.mxu0 0.0
    %2442 = vmatpush2.xpose.msra.mxu0 0.0
    %2443 = vmatprep.subr.mxu0 0.0
    %2444 = vmatpush2.xpose.msra.mxu0 0.0
    %2445 = vmatprep.subr.mxu0 0.0
    %2446 = vmatpush2.xpose.msra.mxu0 0.0
    %2447 = vmatprep.mubr.f32.mxu0 0.0
    %2448 = vmatmul.mubr.f32.gmra.mxu0 %v2375
    %v2449 = vpop.f32.mrf.mxu0
    %v2450 = vadd.f32 0.0, %v2449
    %v2451 = vpop.f32.mrf.mxu0
    %2452 = vdwg.mxu0
    %v2453 = vmul.f32 %v2450, 0.25
    %v2454 = vadd.f32 %v2453, %v37
    %v2455 = vsel %vm160, %v2454, -inf
    %2456 = vmax.xlane.f32.xlu0 %v2455
    %v2457 = vpop.xlane.xlu0 %2456
    %v2458 = vsub.f32 %v2454, %v2457
    %v2459 = vmul.f32 %v2458, 1.442695
    %v2460 = vpow.pop %v2459
    %v2461 = vsel %vm160, %v2460, 0.0
    %2462 = vadd.xlane.f32.xlu0 %v2461
    %v2463 = vpop.xlane.xlu0 %2462
    %v2464 = vrcp.pop %v2463
    %v2465 = vmul.f32 %v2460, %v2464
    %2466 = vrot.lane.b32.xlu0 %v2357, 64
    %v2467 = vpop.permute.xlu0 %2466
    %2468 = vrot.lane.b32.xlu0 %v2362, 64
    %v2469 = vpop.permute.xlu0 %2468
    %v2473 = vsel %vm160, %v2465, 0
    %2475 = vmatprep.subr.mxu0 0.0
    %2476 = vmatpush1.msra.mxu0 0.0
    %2477 = vmatprep.subr.mxu0 0.0
    %2478 = vmatpush1.msra.mxu0 0.0
    %2479 = vmatprep.subr.mxu0 0.0
    %2480 = vmatpush1.msra.mxu0 0.0
    %2481 = vmatprep.subr.mxu0 0.0
    %2482 = vmatpush1.msra.mxu0 0.0
    %2483 = vmatprep.subr.mxu0 0.0
    %2484 = vmatpush1.msra.mxu0 0.0
    %2485 = vmatprep.subr.mxu0 0.0
    %2486 = vmatpush1.msra.mxu0 0.0
    %2487 = vmatprep.subr.mxu0 0.0
    %2488 = vmatpush1.msra.mxu0 0.0
    %2489 = vmatprep.subr.mxu0 0.0
    %2490 = vmatpush1.msra.mxu0 0.0
    %2491 = vmatprep.subr.mxu0 0.0
    %2492 = vmatpush1.msra.mxu0 0.0
    %2493 = vmatprep.subr.mxu0 0.0
    %2494 = vmatpush1.msra.mxu0 0.0
    %2495 = vmatprep.subr.mxu0 0.0
    %2496 = vmatpush1.msra.mxu0 0.0
    %2497 = vmatprep.subr.mxu0 0.0
    %2498 = vmatpush1.msra.mxu0 0.0
    %2499 = vmatprep.subr.mxu0 0.0
    %2500 = vmatpush1.msra.mxu0 0.0
    %2501 = vmatprep.subr.mxu0 0.0
    %2502 = vmatpush1.msra.mxu0 0.0
    %2503 = vmatprep.subr.mxu0 0.0
    %2504 = vmatpush1.msra.mxu0 %v2469
    %2505 = vmatprep.subr.mxu0 0.0
    %2506 = vmatpush1.msra.mxu0 %v2467
    %2507 = vmatprep.subr.mxu0 0.0
    %2508 = vmatpush2.msra.mxu0 0.0
    %2509 = vmatprep.subr.mxu0 0.0
    %2510 = vmatpush2.msra.mxu0 0.0
    %2511 = vmatprep.subr.mxu0 0.0
    %2512 = vmatpush2.msra.mxu0 0.0
    %2513 = vmatprep.subr.mxu0 0.0
    %2514 = vmatpush2.msra.mxu0 0.0
    %2515 = vmatprep.subr.mxu0 0.0
    %2516 = vmatpush2.msra.mxu0 0.0
    %2517 = vmatprep.subr.mxu0 0.0
    %2518 = vmatpush2.msra.mxu0 0.0
    %2519 = vmatprep.subr.mxu0 0.0
    %2520 = vmatpush2.msra.mxu0 0.0
    %2521 = vmatprep.subr.mxu0 0.0
    %2522 = vmatpush2.msra.mxu0 0.0
    %2523 = vmatprep.subr.mxu0 0.0
    %2524 = vmatpush2.msra.mxu0 0.0
    %2525 = vmatprep.subr.mxu0 0.0
    %2526 = vmatpush2.msra.mxu0 0.0
    %2527 = vmatprep.subr.mxu0 0.0
    %2528 = vmatpush2.msra.mxu0 0.0
    %2529 = vmatprep.subr.mxu0 0.0
    %2530 = vmatpush2.msra.mxu0 0.0
    %2531 = vmatprep.subr.mxu0 0.0
    %2532 = vmatpush2.msra.mxu0 0.0
    %2533 = vmatprep.subr.mxu0 0.0
    %2534 = vmatpush2.msra.mxu0 0.0
    %2535 = vmatprep.subr.mxu0 0.0
    %2536 = vmatpush2.msra.mxu0 0.0
    %2537 = vmatprep.subr.mxu0 0.0
    %2538 = vmatpush2.msra.mxu0 0.0
    %2539 = vmatprep.mubr.f32.mxu0 0.0
    %2540 = vmatmul.mubr.f32.gmra.mxu0 %v2473
    %v2541 = vpop.f32.mrf.mxu0
    %v2542 = vadd.f32 0.0, %v2541
    %v2543 = vpop.f32.mrf.mxu0
    %2544 = vdwg.mxu0
    %2545 = vrot.lane.b32.xlu0 %v2276, 112
    %v2546 = vpop.permute.xlu0 %2545
    %2547 = vrot.lane.b32.xlu0 %v2357, 112
    %v2548 = vpop.permute.xlu0 %2547
    %2549 = vrot.lane.b32.xlu0 %v2362, 112
    %v2550 = vpop.permute.xlu0 %2549
    %v2551 = vsel %vm160, %v2546, 0
    %v2553 = vsel %vm160, %v2548, 0
    %v2555 = vsel %vm160, %v2550, 0
    %2557 = vmatprep.subr.mxu0 0.0
    %2558 = vmatpush1.xpose.msra.mxu0 0.0
    %2559 = vmatprep.subr.mxu0 0.0
    %2560 = vmatpush1.xpose.msra.mxu0 0.0
    %2561 = vmatprep.subr.mxu0 0.0
    %2562 = vmatpush1.xpose.msra.mxu0 0.0
    %2563 = vmatprep.subr.mxu0 0.0
    %2564 = vmatpush1.xpose.msra.mxu0 0.0
    %2565 = vmatprep.subr.mxu0 0.0
    %2566 = vmatpush1.xpose.msra.mxu0 0.0
    %2567 = vmatprep.subr.mxu0 0.0
    %2568 = vmatpush1.xpose.msra.mxu0 0.0
    %2569 = vmatprep.subr.mxu0 0.0
    %2570 = vmatpush1.xpose.msra.mxu0 0.0
    %2571 = vmatprep.subr.mxu0 0.0
    %2572 = vmatpush1.xpose.msra.mxu0 0.0
    %2573 = vmatprep.subr.mxu0 0.0
    %2574 = vmatpush1.xpose.msra.mxu0 0.0
    %2575 = vmatprep.subr.mxu0 0.0
    %2576 = vmatpush1.xpose.msra.mxu0 0.0
    %2577 = vmatprep.subr.mxu0 0.0
    %2578 = vmatpush1.xpose.msra.mxu0 0.0
    %2579 = vmatprep.subr.mxu0 0.0
    %2580 = vmatpush1.xpose.msra.mxu0 0.0
    %2581 = vmatprep.subr.mxu0 0.0
    %2582 = vmatpush1.xpose.msra.mxu0 0.0
    %2583 = vmatprep.subr.mxu0 0.0
    %2584 = vmatpush1.xpose.msra.mxu0 0.0
    %2585 = vmatprep.subr.mxu0 0.0
    %2586 = vmatpush1.xpose.msra.mxu0 %v2555
    %2587 = vmatprep.subr.mxu0 0.0
    %2588 = vmatpush1.xpose.msra.mxu0 %v2553
    %2589 = vmatprep.subr.mxu0 0.0
    %2590 = vmatpush2.xpose.msra.mxu0 0.0
    %2591 = vmatprep.subr.mxu0 0.0
    %2592 = vmatpush2.xpose.msra.mxu0 0.0
    %2593 = vmatprep.subr.mxu0 0.0
    %2594 = vmatpush2.xpose.msra.mxu0 0.0
    %2595 = vmatprep.subr.mxu0 0.0
    %2596 = vmatpush2.xpose.msra.mxu0 0.0
    %2597 = vmatprep.subr.mxu0 0.0
    %2598 = vmatpush2.xpose.msra.mxu0 0.0
    %2599 = vmatprep.subr.mxu0 0.0
    %2600 = vmatpush2.xpose.msra.mxu0 0.0
    %2601 = vmatprep.subr.mxu0 0.0
    %2602 = vmatpush2.xpose.msra.mxu0 0.0
    %2603 = vmatprep.subr.mxu0 0.0
    %2604 = vmatpush2.xpose.msra.mxu0 0.0
    %2605 = vmatprep.subr.mxu0 0.0
    %2606 = vmatpush2.xpose.msra.mxu0 0.0
    %2607 = vmatprep.subr.mxu0 0.0
    %2608 = vmatpush2.xpose.msra.mxu0 0.0
    %2609 = vmatprep.subr.mxu0 0.0
    %2610 = vmatpush2.xpose.msra.mxu0 0.0
    %2611 = vmatprep.subr.mxu0 0.0
    %2612 = vmatpush2.xpose.msra.mxu0 0.0
    %2613 = vmatprep.subr.mxu0 0.0
    %2614 = vmatpush2.xpose.msra.mxu0 0.0
    %2615 = vmatprep.subr.mxu0 0.0
    %2616 = vmatpush2.xpose.msra.mxu0 0.0
    %2617 = vmatprep.subr.mxu0 0.0
    %2618 = vmatpush2.xpose.msra.mxu0 0.0
    %2619 = vmatprep.subr.mxu0 0.0
    %2620 = vmatpush2.xpose.msra.mxu0 0.0
    %2621 = vmatprep.mubr.f32.mxu0 0.0
    %2622 = vmatmul.mubr.f32.gmra.mxu0 %v2551
    %v2623 = vpop.f32.mrf.mxu0
    %v2624 = vadd.f32 0.0, %v2623
    %v2625 = vpop.f32.mrf.mxu0
    %2626 = vdwg.mxu0
    %v2627 = vmul.f32 %v2624, 0.25
    %v2628 = vadd.f32 %v2627, %v37
    %v2629 = vsel %vm160, %v2628, -inf
    %2630 = vmax.xlane.f32.xlu0 %v2629
    %v2631 = vpop.xlane.xlu0 %2630
    %v2632 = vsub.f32 %v2628, %v2631
    %v2633 = vmul.f32 %v2632, 1.442695
    %v2634 = vpow.pop %v2633
    %v2635 = vsel %vm160, %v2634, 0.0
    %2636 = vadd.xlane.f32.xlu0 %v2635
    %v2637 = vpop.xlane.xlu0 %2636
    %v2638 = vrcp.pop %v2637
    %v2639 = vmul.f32 %v2634, %v2638
    %2640 = vrot.lane.b32.xlu0 %v2357, 48
    %v2641 = vpop.permute.xlu0 %2640
    %2642 = vrot.lane.b32.xlu0 %v2362, 48
    %v2643 = vpop.permute.xlu0 %2642
    %v2647 = vsel %vm160, %v2639, 0
    %2649 = vmatprep.subr.mxu0 0.0
    %2650 = vmatpush1.msra.mxu0 0.0
    %2651 = vmatprep.subr.mxu0 0.0
    %2652 = vmatpush1.msra.mxu0 0.0
    %2653 = vmatprep.subr.mxu0 0.0
    %2654 = vmatpush1.msra.mxu0 0.0
    %2655 = vmatprep.subr.mxu0 0.0
    %2656 = vmatpush1.msra.mxu0 0.0
    %2657 = vmatprep.subr.mxu0 0.0
    %2658 = vmatpush1.msra.mxu0 0.0
    %2659 = vmatprep.subr.mxu0 0.0
    %2660 = vmatpush1.msra.mxu0 0.0
    %2661 = vmatprep.subr.mxu0 0.0
    %2662 = vmatpush1.msra.mxu0 0.0
    %2663 = vmatprep.subr.mxu0 0.0
    %2664 = vmatpush1.msra.mxu0 0.0
    %2665 = vmatprep.subr.mxu0 0.0
    %2666 = vmatpush1.msra.mxu0 0.0
    %2667 = vmatprep.subr.mxu0 0.0
    %2668 = vmatpush1.msra.mxu0 0.0
    %2669 = vmatprep.subr.mxu0 0.0
    %2670 = vmatpush1.msra.mxu0 0.0
    %2671 = vmatprep.subr.mxu0 0.0
    %2672 = vmatpush1.msra.mxu0 0.0
    %2673 = vmatprep.subr.mxu0 0.0
    %2674 = vmatpush1.msra.mxu0 0.0
    %2675 = vmatprep.subr.mxu0 0.0
    %2676 = vmatpush1.msra.mxu0 0.0
    %2677 = vmatprep.subr.mxu0 0.0
    %2678 = vmatpush1.msra.mxu0 %v2643
    %2679 = vmatprep.subr.mxu0 0.0
    %2680 = vmatpush1.msra.mxu0 %v2641
    %2681 = vmatprep.subr.mxu0 0.0
    %2682 = vmatpush2.msra.mxu0 0.0
    %2683 = vmatprep.subr.mxu0 0.0
    %2684 = vmatpush2.msra.mxu0 0.0
    %2685 = vmatprep.subr.mxu0 0.0
    %2686 = vmatpush2.msra.mxu0 0.0
    %2687 = vmatprep.subr.mxu0 0.0
    %2688 = vmatpush2.msra.mxu0 0.0
    %2689 = vmatprep.subr.mxu0 0.0
    %2690 = vmatpush2.msra.mxu0 0.0
    %2691 = vmatprep.subr.mxu0 0.0
    %2692 = vmatpush2.msra.mxu0 0.0
    %2693 = vmatprep.subr.mxu0 0.0
    %2694 = vmatpush2.msra.mxu0 0.0
    %2695 = vmatprep.subr.mxu0 0.0
    %2696 = vmatpush2.msra.mxu0 0.0
    %2697 = vmatprep.subr.mxu0 0.0
    %2698 = vmatpush2.msra.mxu0 0.0
    %2699 = vmatprep.subr.mxu0 0.0
    %2700 = vmatpush2.msra.mxu0 0.0
    %2701 = vmatprep.subr.mxu0 0.0
    %2702 = vmatpush2.msra.mxu0 0.0
    %2703 = vmatprep.subr.mxu0 0.0
    %2704 = vmatpush2.msra.mxu0 0.0
    %2705 = vmatprep.subr.mxu0 0.0
    %2706 = vmatpush2.msra.mxu0 0.0
    %2707 = vmatprep.subr.mxu0 0.0
    %2708 = vmatpush2.msra.mxu0 0.0
    %2709 = vmatprep.subr.mxu0 0.0
    %2710 = vmatpush2.msra.mxu0 0.0
    %2711 = vmatprep.subr.mxu0 0.0
    %2712 = vmatpush2.msra.mxu0 0.0
    %2713 = vmatprep.mubr.f32.mxu0 0.0
    %2714 = vmatmul.mubr.f32.gmra.mxu0 %v2647
    %v2715 = vpop.f32.mrf.mxu0
    %v2716 = vadd.f32 0.0, %v2715
    %v2717 = vpop.f32.mrf.mxu0
    %2718 = vdwg.mxu0
    %2719 = vrot.lane.b32.xlu0 %v2276, 96
    %v2720 = vpop.permute.xlu0 %2719
    %2721 = vrot.lane.b32.xlu0 %v2357, 96
    %v2722 = vpop.permute.xlu0 %2721
    %2723 = vrot.lane.b32.xlu0 %v2362, 96
    %v2724 = vpop.permute.xlu0 %2723
    %v2725 = vsel %vm160, %v2720, 0
    %v2727 = vsel %vm160, %v2722, 0
    %v2729 = vsel %vm160, %v2724, 0
    %2731 = vmatprep.subr.mxu0 0.0
    %2732 = vmatpush1.xpose.msra.mxu0 0.0
    %2733 = vmatprep.subr.mxu0 0.0
    %2734 = vmatpush1.xpose.msra.mxu0 0.0
    %2735 = vmatprep.subr.mxu0 0.0
    %2736 = vmatpush1.xpose.msra.mxu0 0.0
    %2737 = vmatprep.subr.mxu0 0.0
    %2738 = vmatpush1.xpose.msra.mxu0 0.0
    %2739 = vmatprep.subr.mxu0 0.0
    %2740 = vmatpush1.xpose.msra.mxu0 0.0
    %2741 = vmatprep.subr.mxu0 0.0
    %2742 = vmatpush1.xpose.msra.mxu0 0.0
    %2743 = vmatprep.subr.mxu0 0.0
    %2744 = vmatpush1.xpose.msra.mxu0 0.0
    %2745 = vmatprep.subr.mxu0 0.0
    %2746 = vmatpush1.xpose.msra.mxu0 0.0
    %2747 = vmatprep.subr.mxu0 0.0
    %2748 = vmatpush1.xpose.msra.mxu0 0.0
    %2749 = vmatprep.subr.mxu0 0.0
    %2750 = vmatpush1.xpose.msra.mxu0 0.0
    %2751 = vmatprep.subr.mxu0 0.0
    %2752 = vmatpush1.xpose.msra.mxu0 0.0
    %2753 = vmatprep.subr.mxu0 0.0
    %2754 = vmatpush1.xpose.msra.mxu0 0.0
    %2755 = vmatprep.subr.mxu0 0.0
    %2756 = vmatpush1.xpose.msra.mxu0 0.0
    %2757 = vmatprep.subr.mxu0 0.0
    %2758 = vmatpush1.xpose.msra.mxu0 0.0
    %2759 = vmatprep.subr.mxu0 0.0
    %2760 = vmatpush1.xpose.msra.mxu0 %v2729
    %2761 = vmatprep.subr.mxu0 0.0
    %2762 = vmatpush1.xpose.msra.mxu0 %v2727
    %2763 = vmatprep.subr.mxu0 0.0
    %2764 = vmatpush2.xpose.msra.mxu0 0.0
    %2765 = vmatprep.subr.mxu0 0.0
    %2766 = vmatpush2.xpose.msra.mxu0 0.0
    %2767 = vmatprep.subr.mxu0 0.0
    %2768 = vmatpush2.xpose.msra.mxu0 0.0
    %2769 = vmatprep.subr.mxu0 0.0
    %2770 = vmatpush2.xpose.msra.mxu0 0.0
    %2771 = vmatprep.subr.mxu0 0.0
    %2772 = vmatpush2.xpose.msra.mxu0 0.0
    %2773 = vmatprep.subr.mxu0 0.0
    %2774 = vmatpush2.xpose.msra.mxu0 0.0
    %2775 = vmatprep.subr.mxu0 0.0
    %2776 = vmatpush2.xpose.msra.mxu0 0.0
    %2777 = vmatprep.subr.mxu0 0.0
    %2778 = vmatpush2.xpose.msra.mxu0 0.0
    %2779 = vmatprep.subr.mxu0 0.0
    %2780 = vmatpush2.xpose.msra.mxu0 0.0
    %2781 = vmatprep.subr.mxu0 0.0
    %2782 = vmatpush2.xpose.msra.mxu0 0.0
    %2783 = vmatprep.subr.mxu0 0.0
    %2784 = vmatpush2.xpose.msra.mxu0 0.0
    %2785 = vmatprep.subr.mxu0 0.0
    %2786 = vmatpush2.xpose.msra.mxu0 0.0
    %2787 = vmatprep.subr.mxu0 0.0
    %2788 = vmatpush2.xpose.msra.mxu0 0.0
    %2789 = vmatprep.subr.mxu0 0.0
    %2790 = vmatpush2.xpose.msra.mxu0 0.0
    %2791 = vmatprep.subr.mxu0 0.0
    %2792 = vmatpush2.xpose.msra.mxu0 0.0
    %2793 = vmatprep.subr.mxu0 0.0
    %2794 = vmatpush2.xpose.msra.mxu0 0.0
    %2795 = vmatprep.mubr.f32.mxu0 0.0
    %2796 = vmatmul.mubr.f32.gmra.mxu0 %v2725
    %v2797 = vpop.f32.mrf.mxu0
    %v2798 = vadd.f32 0.0, %v2797
    %v2799 = vpop.f32.mrf.mxu0
    %2800 = vdwg.mxu0
    %v2801 = vmul.f32 %v2798, 0.25
    %v2802 = vadd.f32 %v2801, %v37
    %v2803 = vsel %vm160, %v2802, -inf
    %2804 = vmax.xlane.f32.xlu0 %v2803
    %v2805 = vpop.xlane.xlu0 %2804
    %v2806 = vsub.f32 %v2802, %v2805
    %v2807 = vmul.f32 %v2806, 1.442695
    %v2808 = vpow.pop %v2807
    %v2809 = vsel %vm160, %v2808, 0.0
    %2810 = vadd.xlane.f32.xlu0 %v2809
    %v2811 = vpop.xlane.xlu0 %2810
    %v2812 = vrcp.pop %v2811
    %v2813 = vmul.f32 %v2808, %v2812
    %2814 = vrot.lane.b32.xlu0 %v2357, 32
    %v2815 = vpop.permute.xlu0 %2814
    %2816 = vrot.lane.b32.xlu0 %v2362, 32
    %v2817 = vpop.permute.xlu0 %2816
    %v2821 = vsel %vm160, %v2813, 0
    %2823 = vmatprep.subr.mxu0 0.0
    %2824 = vmatpush1.msra.mxu0 0.0
    %2825 = vmatprep.subr.mxu0 0.0
    %2826 = vmatpush1.msra.mxu0 0.0
    %2827 = vmatprep.subr.mxu0 0.0
    %2828 = vmatpush1.msra.mxu0 0.0
    %2829 = vmatprep.subr.mxu0 0.0
    %2830 = vmatpush1.msra.mxu0 0.0
    %2831 = vmatprep.subr.mxu0 0.0
    %2832 = vmatpush1.msra.mxu0 0.0
    %2833 = vmatprep.subr.mxu0 0.0
    %2834 = vmatpush1.msra.mxu0 0.0
    %2835 = vmatprep.subr.mxu0 0.0
    %2836 = vmatpush1.msra.mxu0 0.0
    %2837 = vmatprep.subr.mxu0 0.0
    %2838 = vmatpush1.msra.mxu0 0.0
    %2839 = vmatprep.subr.mxu0 0.0
    %2840 = vmatpush1.msra.mxu0 0.0
    %2841 = vmatprep.subr.mxu0 0.0
    %2842 = vmatpush1.msra.mxu0 0.0
    %2843 = vmatprep.subr.mxu0 0.0
    %2844 = vmatpush1.msra.mxu0 0.0
    %2845 = vmatprep.subr.mxu0 0.0
    %2846 = vmatpush1.msra.mxu0 0.0
    %2847 = vmatprep.subr.mxu0 0.0
    %2848 = vmatpush1.msra.mxu0 0.0
    %2849 = vmatprep.subr.mxu0 0.0
    %2850 = vmatpush1.msra.mxu0 0.0
    %2851 = vmatprep.subr.mxu0 0.0
    %2852 = vmatpush1.msra.mxu0 %v2817
    %2853 = vmatprep.subr.mxu0 0.0
    %2854 = vmatpush1.msra.mxu0 %v2815
    %2855 = vmatprep.subr.mxu0 0.0
    %2856 = vmatpush2.msra.mxu0 0.0
    %2857 = vmatprep.subr.mxu0 0.0
    %2858 = vmatpush2.msra.mxu0 0.0
    %2859 = vmatprep.subr.mxu0 0.0
    %2860 = vmatpush2.msra.mxu0 0.0
    %2861 = vmatprep.subr.mxu0 0.0
    %2862 = vmatpush2.msra.mxu0 0.0
    %2863 = vmatprep.subr.mxu0 0.0
    %2864 = vmatpush2.msra.mxu0 0.0
    %2865 = vmatprep.subr.mxu0 0.0
    %2866 = vmatpush2.msra.mxu0 0.0
    %2867 = vmatprep.subr.mxu0 0.0
    %2868 = vmatpush2.msra.mxu0 0.0
    %2869 = vmatprep.subr.mxu0 0.0
    %2870 = vmatpush2.msra.mxu0 0.0
    %2871 = vmatprep.subr.mxu0 0.0
    %2872 = vmatpush2.msra.mxu0 0.0
    %2873 = vmatprep.subr.mxu0 0.0
    %2874 = vmatpush2.msra.mxu0 0.0
    %2875 = vmatprep.subr.mxu0 0.0
    %2876 = vmatpush2.msra.mxu0 0.0
    %2877 = vmatprep.subr.mxu0 0.0
    %2878 = vmatpush2.msra.mxu0 0.0
    %2879 = vmatprep.subr.mxu0 0.0
    %2880 = vmatpush2.msra.mxu0 0.0
    %2881 = vmatprep.subr.mxu0 0.0
    %2882 = vmatpush2.msra.mxu0 0.0
    %2883 = vmatprep.subr.mxu0 0.0
    %2884 = vmatpush2.msra.mxu0 0.0
    %2885 = vmatprep.subr.mxu0 0.0
    %2886 = vmatpush2.msra.mxu0 0.0
    %2887 = vmatprep.mubr.f32.mxu0 0.0
    %2888 = vmatmul.mubr.f32.gmra.mxu0 %v2821
    %v2889 = vpop.f32.mrf.mxu0
    %v2890 = vadd.f32 0.0, %v2889
    %v2891 = vpop.f32.mrf.mxu0
    %2892 = vdwg.mxu0
    %2893 = vrot.lane.b32.xlu0 %v2276, 80
    %v2894 = vpop.permute.xlu0 %2893
    %2895 = vrot.lane.b32.xlu0 %v2357, 80
    %v2896 = vpop.permute.xlu0 %2895
    %2897 = vrot.lane.b32.xlu0 %v2362, 80
    %v2898 = vpop.permute.xlu0 %2897
    %v2899 = vsel %vm160, %v2894, 0
    %v2901 = vsel %vm160, %v2896, 0
    %v2903 = vsel %vm160, %v2898, 0
    %2905 = vmatprep.subr.mxu0 0.0
    %2906 = vmatpush1.xpose.msra.mxu0 0.0
    %2907 = vmatprep.subr.mxu0 0.0
    %2908 = vmatpush1.xpose.msra.mxu0 0.0
    %2909 = vmatprep.subr.mxu0 0.0
    %2910 = vmatpush1.xpose.msra.mxu0 0.0
    %2911 = vmatprep.subr.mxu0 0.0
    %2912 = vmatpush1.xpose.msra.mxu0 0.0
    %2913 = vmatprep.subr.mxu0 0.0
    %2914 = vmatpush1.xpose.msra.mxu0 0.0
    %2915 = vmatprep.subr.mxu0 0.0
    %2916 = vmatpush1.xpose.msra.mxu0 0.0
    %2917 = vmatprep.subr.mxu0 0.0
    %2918 = vmatpush1.xpose.msra.mxu0 0.0
    %2919 = vmatprep.subr.mxu0 0.0
    %2920 = vmatpush1.xpose.msra.mxu0 0.0
    %2921 = vmatprep.subr.mxu0 0.0
    %2922 = vmatpush1.xpose.msra.mxu0 0.0
    %2923 = vmatprep.subr.mxu0 0.0
    %2924 = vmatpush1.xpose.msra.mxu0 0.0
    %2925 = vmatprep.subr.mxu0 0.0
    %2926 = vmatpush1.xpose.msra.mxu0 0.0
    %2927 = vmatprep.subr.mxu0 0.0
    %2928 = vmatpush1.xpose.msra.mxu0 0.0
    %2929 = vmatprep.subr.mxu0 0.0
    %2930 = vmatpush1.xpose.msra.mxu0 0.0
    %2931 = vmatprep.subr.mxu0 0.0
    %2932 = vmatpush1.xpose.msra.mxu0 0.0
    %2933 = vmatprep.subr.mxu0 0.0
    %2934 = vmatpush1.xpose.msra.mxu0 %v2903
    %2935 = vmatprep.subr.mxu0 0.0
    %2936 = vmatpush1.xpose.msra.mxu0 %v2901
    %2937 = vmatprep.subr.mxu0 0.0
    %2938 = vmatpush2.xpose.msra.mxu0 0.0
    %2939 = vmatprep.subr.mxu0 0.0
    %2940 = vmatpush2.xpose.msra.mxu0 0.0
    %2941 = vmatprep.subr.mxu0 0.0
    %2942 = vmatpush2.xpose.msra.mxu0 0.0
    %2943 = vmatprep.subr.mxu0 0.0
    %2944 = vmatpush2.xpose.msra.mxu0 0.0
    %2945 = vmatprep.subr.mxu0 0.0
    %2946 = vmatpush2.xpose.msra.mxu0 0.0
    %2947 = vmatprep.subr.mxu0 0.0
    %2948 = vmatpush2.xpose.msra.mxu0 0.0
    %2949 = vmatprep.subr.mxu0 0.0
    %2950 = vmatpush2.xpose.msra.mxu0 0.0
    %2951 = vmatprep.subr.mxu0 0.0
    %2952 = vmatpush2.xpose.msra.mxu0 0.0
    %2953 = vmatprep.subr.mxu0 0.0
    %2954 = vmatpush2.xpose.msra.mxu0 0.0
    %2955 = vmatprep.subr.mxu0 0.0
    %2956 = vmatpush2.xpose.msra.mxu0 0.0
    %2957 = vmatprep.subr.mxu0 0.0
    %2958 = vmatpush2.xpose.msra.mxu0 0.0
    %2959 = vmatprep.subr.mxu0 0.0
    %2960 = vmatpush2.xpose.msra.mxu0 0.0
    %2961 = vmatprep.subr.mxu0 0.0
    %2962 = vmatpush2.xpose.msra.mxu0 0.0
    %2963 = vmatprep.subr.mxu0 0.0
    %2964 = vmatpush2.xpose.msra.mxu0 0.0
    %2965 = vmatprep.subr.mxu0 0.0
    %2966 = vmatpush2.xpose.msra.mxu0 0.0
    %2967 = vmatprep.subr.mxu0 0.0
    %2968 = vmatpush2.xpose.msra.mxu0 0.0
    %2969 = vmatprep.mubr.f32.mxu0 0.0
    %2970 = vmatmul.mubr.f32.gmra.mxu0 %v2899
    %v2971 = vpop.f32.mrf.mxu0
    %v2972 = vadd.f32 0.0, %v2971
    %v2973 = vpop.f32.mrf.mxu0
    %2974 = vdwg.mxu0
    %v2975 = vmul.f32 %v2972, 0.25
    %v2976 = vadd.f32 %v2975, %v37
    %v2977 = vsel %vm160, %v2976, -inf
    %2978 = vmax.xlane.f32.xlu0 %v2977
    %v2979 = vpop.xlane.xlu0 %2978
    %v2980 = vsub.f32 %v2976, %v2979
    %v2981 = vmul.f32 %v2980, 1.442695
    %v2982 = vpow.pop %v2981
    %v2983 = vsel %vm160, %v2982, 0.0
    %2984 = vadd.xlane.f32.xlu0 %v2983
    %v2985 = vpop.xlane.xlu0 %2984
    %v2986 = vrcp.pop %v2985
    %v2987 = vmul.f32 %v2982, %v2986
    %2988 = vrot.lane.b32.xlu0 %v2357, 16
    %v2989 = vpop.permute.xlu0 %2988
    %2990 = vrot.lane.b32.xlu0 %v2362, 16
    %v2991 = vpop.permute.xlu0 %2990
    %v2995 = vsel %vm160, %v2987, 0
    %2997 = vmatprep.subr.mxu0 0.0
    %2998 = vmatpush1.msra.mxu0 0.0
    %2999 = vmatprep.subr.mxu0 0.0
    %3000 = vmatpush1.msra.mxu0 0.0
    %3001 = vmatprep.subr.mxu0 0.0
    %3002 = vmatpush1.msra.mxu0 0.0
    %3003 = vmatprep.subr.mxu0 0.0
    %3004 = vmatpush1.msra.mxu0 0.0
    %3005 = vmatprep.subr.mxu0 0.0
    %3006 = vmatpush1.msra.mxu0 0.0
    %3007 = vmatprep.subr.mxu0 0.0
    %3008 = vmatpush1.msra.mxu0 0.0
    %3009 = vmatprep.subr.mxu0 0.0
    %3010 = vmatpush1.msra.mxu0 0.0
    %3011 = vmatprep.subr.mxu0 0.0
    %3012 = vmatpush1.msra.mxu0 0.0
    %3013 = vmatprep.subr.mxu0 0.0
    %3014 = vmatpush1.msra.mxu0 0.0
    %3015 = vmatprep.subr.mxu0 0.0
    %3016 = vmatpush1.msra.mxu0 0.0
    %3017 = vmatprep.subr.mxu0 0.0
    %3018 = vmatpush1.msra.mxu0 0.0
    %3019 = vmatprep.subr.mxu0 0.0
    %3020 = vmatpush1.msra.mxu0 0.0
    %3021 = vmatprep.subr.mxu0 0.0
    %3022 = vmatpush1.msra.mxu0 0.0
    %3023 = vmatprep.subr.mxu0 0.0
    %3024 = vmatpush1.msra.mxu0 0.0
    %3025 = vmatprep.subr.mxu0 0.0
    %3026 = vmatpush1.msra.mxu0 %v2991
    %3027 = vmatprep.subr.mxu0 0.0
    %3028 = vmatpush1.msra.mxu0 %v2989
    %3029 = vmatprep.subr.mxu0 0.0
    %3030 = vmatpush2.msra.mxu0 0.0
    %3031 = vmatprep.subr.mxu0 0.0
    %3032 = vmatpush2.msra.mxu0 0.0
    %3033 = vmatprep.subr.mxu0 0.0
    %3034 = vmatpush2.msra.mxu0 0.0
    %3035 = vmatprep.subr.mxu0 0.0
    %3036 = vmatpush2.msra.mxu0 0.0
    %3037 = vmatprep.subr.mxu0 0.0
    %3038 = vmatpush2.msra.mxu0 0.0
    %3039 = vmatprep.subr.mxu0 0.0
    %3040 = vmatpush2.msra.mxu0 0.0
    %3041 = vmatprep.subr.mxu0 0.0
    %3042 = vmatpush2.msra.mxu0 0.0
    %3043 = vmatprep.subr.mxu0 0.0
    %3044 = vmatpush2.msra.mxu0 0.0
    %3045 = vmatprep.subr.mxu0 0.0
    %3046 = vmatpush2.msra.mxu0 0.0
    %3047 = vmatprep.subr.mxu0 0.0
    %3048 = vmatpush2.msra.mxu0 0.0
    %3049 = vmatprep.subr.mxu0 0.0
    %3050 = vmatpush2.msra.mxu0 0.0
    %3051 = vmatprep.subr.mxu0 0.0
    %3052 = vmatpush2.msra.mxu0 0.0
    %3053 = vmatprep.subr.mxu0 0.0
    %3054 = vmatpush2.msra.mxu0 0.0
    %3055 = vmatprep.subr.mxu0 0.0
    %3056 = vmatpush2.msra.mxu0 0.0
    %3057 = vmatprep.subr.mxu0 0.0
    %3058 = vmatpush2.msra.mxu0 0.0
    %3059 = vmatprep.subr.mxu0 0.0
    %3060 = vmatpush2.msra.mxu0 0.0
    %3061 = vmatprep.mubr.f32.mxu0 0.0
    %3062 = vmatmul.mubr.f32.gmra.mxu0 %v2995
    %v3063 = vpop.f32.mrf.mxu0
    %v3064 = vadd.f32 0.0, %v3063
    %v3065 = vpop.f32.mrf.mxu0
    %3066 = vdwg.mxu0
    %3068 = vrot.lane.b32.xlu0 %v2716, 16
    %v3069 = vpop.permute.xlu0 %3068
    %3072 = vrot.lane.b32.xlu0 %v2890, 32
    %v3073 = vpop.permute.xlu0 %3072
    %3076 = vrot.lane.b32.xlu0 %v3064, 48
    %v3077 = vpop.permute.xlu0 %3076
    %v3079 = vsel %vm160, %v2542, %v3069
    %v3080 = vsel %vm61, %v3079, %v3073
    %v3081 = vsel %vm993, %v3080, %v3077
    %v3083 = vsel %vm996, %v3081, 0
    %3085 = vmatprep.subr.mxu0 0.0
    %3086 = vmatpush1.msra.mxu0 0.0
    %3087 = vmatprep.subr.mxu0 0.0
    %3088 = vmatpush1.msra.mxu0 0.0
    %3089 = vmatprep.subr.mxu0 0.0
    %3090 = vmatpush1.msra.mxu0 0.0
    %3091 = vmatprep.subr.mxu0 0.0
    %3092 = vmatpush1.msra.mxu0 0.0
    %3093 = vmatprep.subr.mxu0 0.0
    %3094 = vmatpush1.msra.mxu0 0.0
    %3095 = vmatprep.subr.mxu0 0.0
    %3096 = vmatpush1.msra.mxu0 0.0
    %3097 = vmatprep.subr.mxu0 0.0
    %3098 = vmatpush1.msra.mxu0 0.0
    %3099 = vmatprep.subr.mxu0 0.0
    %3100 = vmatpush1.msra.mxu0 0.0
    %3101 = vmatprep.subr.mxu0 0.0
    %3102 = vmatpush1.msra.mxu0 %v2372
    %3103 = vmatprep.subr.mxu0 0.0
    %3104 = vmatpush1.msra.mxu0 %v2371
    %3105 = vmatprep.subr.mxu0 0.0
    %3106 = vmatpush1.msra.mxu0 %v2370
    %3107 = vmatprep.subr.mxu0 0.0
    %3108 = vmatpush1.msra.mxu0 %v2369
    %3109 = vmatprep.subr.mxu0 0.0
    %3110 = vmatpush1.msra.mxu0 %v2368
    %3111 = vmatprep.subr.mxu0 0.0
    %3112 = vmatpush1.msra.mxu0 %v2367
    %3113 = vmatprep.subr.mxu0 0.0
    %3114 = vmatpush1.msra.mxu0 %v2366
    %3115 = vmatprep.subr.mxu0 0.0
    %3116 = vmatpush1.msra.mxu0 %v2365
    %3117 = vmatprep.subr.mxu0 0.0
    %3118 = vmatpush2.msra.mxu0 0.0
    %3119 = vmatprep.subr.mxu0 0.0
    %3120 = vmatpush2.msra.mxu0 0.0
    %3121 = vmatprep.subr.mxu0 0.0
    %3122 = vmatpush2.msra.mxu0 0.0
    %3123 = vmatprep.subr.mxu0 0.0
    %3124 = vmatpush2.msra.mxu0 0.0
    %3125 = vmatprep.subr.mxu0 0.0
    %3126 = vmatpush2.msra.mxu0 0.0
    %3127 = vmatprep.subr.mxu0 0.0
    %3128 = vmatpush2.msra.mxu0 0.0
    %3129 = vmatprep.subr.mxu0 0.0
    %3130 = vmatpush2.msra.mxu0 0.0
    %3131 = vmatprep.subr.mxu0 0.0
    %3132 = vmatpush2.msra.mxu0 0.0
    %3133 = vmatprep.subr.mxu0 0.0
    %3134 = vmatpush2.msra.mxu0 0.0
    %3135 = vmatprep.subr.mxu0 0.0
    %3136 = vmatpush2.msra.mxu0 0.0
    %3137 = vmatprep.subr.mxu0 0.0
    %3138 = vmatpush2.msra.mxu0 0.0
    %3139 = vmatprep.subr.mxu0 0.0
    %3140 = vmatpush2.msra.mxu0 0.0
    %3141 = vmatprep.subr.mxu0 0.0
    %3142 = vmatpush2.msra.mxu0 0.0
    %3143 = vmatprep.subr.mxu0 0.0
    %3144 = vmatpush2.msra.mxu0 0.0
    %3145 = vmatprep.subr.mxu0 0.0
    %3146 = vmatpush2.msra.mxu0 0.0
    %3147 = vmatprep.subr.mxu0 0.0
    %3148 = vmatpush2.msra.mxu0 0.0
    %3149 = vmatprep.mubr.f32.mxu0 0.0
    %3150 = vmatmul.mubr.f32.gmra.mxu0 %v3083
    %v3151 = vpop.f32.mrf.mxu0
    %v3152 = vadd.f32 %v2373, %v3151
    %v3153 = vpop.f32.mrf.mxu0
    %3154 = vdwg.mxu0
    %v3155 = vadd.f32 %v2200, %v3152
    %v3156 = vld [vmem:[%s1 + $0x3e0] ss:$0 sm:$0xff]
    %v3157 = vld [vmem:[%s1 + $0x3f0] ss:$0 sm:$0xff]
    %v3158 = vsel %vm61, %v3155, 0.0
    %3159 = vadd.xlane.f32.xlu0 %v3158
    %v3160 = vpop.xlane.xlu0 %3159
    %v3161 = vmul.f32 %v3160, %v1088
    %v3162 = vsub.f32 %v3155, %v3161
    %v3163 = vmul.f32 %v3162, %v3162
    %v3164 = vsel %vm61, %v3163, 0.0
    %3165 = vadd.xlane.f32.xlu0 %v3164
    %v3166 = vpop.xlane.xlu0 %3165
    %v3167 = vmul.f32 %v3166, %v1088
    %v3168 = vadd.f32 %v3167, 1e-05
    %v3169 = vrsqrt.pop %v3168
    %v3170 = vmul.f32 %v3162, %v3169
    %v3171 = vmul.f32 %v3170, %v3156
    %v3172 = vadd.f32 %v3171, %v3157
    %v3173 = vld [vmem:[%s1 + $0x400] sm:$0xff]
    %v3174 = vld [vmem:[%s1 + $0x410] sm:$0xff]
    %v3175 = vld [vmem:[%s1 + $0x420] sm:$0xff]
    %v3176 = vld [vmem:[%s1 + $0x430] sm:$0xff]
    %v3177 = vld [vmem:[%s1 + $0x440] ss:$0 sm:$0xff]
    %v3179 = vsel %vm61, %v3172, 0
    %3181 = vmatprep.subr.mxu0 0.0
    %3182 = vmatpush1.msra.mxu0 0.0
    %3183 = vmatprep.subr.mxu0 0.0
    %3184 = vmatpush1.msra.mxu0 0.0
    %3185 = vmatprep.subr.mxu0 0.0
    %3186 = vmatpush1.msra.mxu0 0.0
    %3187 = vmatprep.subr.mxu0 0.0
    %3188 = vmatpush1.msra.mxu0 0.0
    %3189 = vmatprep.subr.mxu0 0.0
    %3190 = vmatpush1.msra.mxu0 0.0
    %3191 = vmatprep.subr.mxu0 0.0
    %3192 = vmatpush1.msra.mxu0 0.0
    %3193 = vmatprep.subr.mxu0 0.0
    %3194 = vmatpush1.msra.mxu0 0.0
    %3195 = vmatprep.subr.mxu0 0.0
    %3196 = vmatpush1.msra.mxu0 0.0
    %3197 = vmatprep.subr.mxu0 0.0
    %3198 = vmatpush1.msra.mxu0 0.0
    %3199 = vmatprep.subr.mxu0 0.0
    %3200 = vmatpush1.msra.mxu0 0.0
    %3201 = vmatprep.subr.mxu0 0.0
    %3202 = vmatpush1.msra.mxu0 0.0
    %3203 = vmatprep.subr.mxu0 0.0
    %3204 = vmatpush1.msra.mxu0 0.0
    %3205 = vmatprep.subr.mxu0 0.0
    %3206 = vmatpush1.msra.mxu0 %v3176
    %3207 = vmatprep.subr.mxu0 0.0
    %3208 = vmatpush1.msra.mxu0 %v3175
    %3209 = vmatprep.subr.mxu0 0.0
    %3210 = vmatpush1.msra.mxu0 %v3174
    %3211 = vmatprep.subr.mxu0 0.0
    %3212 = vmatpush1.msra.mxu0 %v3173
    %3213 = vmatprep.subr.mxu0 0.0
    %3214 = vmatpush2.msra.mxu0 0.0
    %3215 = vmatprep.subr.mxu0 0.0
    %3216 = vmatpush2.msra.mxu0 0.0
    %3217 = vmatprep.subr.mxu0 0.0
    %3218 = vmatpush2.msra.mxu0 0.0
    %3219 = vmatprep.subr.mxu0 0.0
    %3220 = vmatpush2.msra.mxu0 0.0
    %3221 = vmatprep.subr.mxu0 0.0
    %3222 = vmatpush2.msra.mxu0 0.0
    %3223 = vmatprep.subr.mxu0 0.0
    %3224 = vmatpush2.msra.mxu0 0.0
    %3225 = vmatprep.subr.mxu0 0.0
    %3226 = vmatpush2.msra.mxu0 0.0
    %3227 = vmatprep.subr.mxu0 0.0
    %3228 = vmatpush2.msra.mxu0 0.0
    %3229 = vmatprep.subr.mxu0 0.0
    %3230 = vmatpush2.msra.mxu0 0.0
    %3231 = vmatprep.subr.mxu0 0.0
    %3232 = vmatpush2.msra.mxu0 0.0
    %3233 = vmatprep.subr.mxu0 0.0
    %3234 = vmatpush2.msra.mxu0 0.0
    %3235 = vmatprep.subr.mxu0 0.0
    %3236 = vmatpush2.msra.mxu0 0.0
    %3237 = vmatprep.subr.mxu0 0.0
    %3238 = vmatpush2.msra.mxu0 0.0
    %3239 = vmatprep.subr.mxu0 0.0
    %3240 = vmatpush2.msra.mxu0 0.0
    %3241 = vmatprep.subr.mxu0 0.0
    %3242 = vmatpush2.msra.mxu0 0.0
    %3243 = vmatprep.subr.mxu0 0.0
    %3244 = vmatpush2.msra.mxu0 0.0
    %3245 = vmatprep.mubr.f32.mxu0 0.0
    %3246 = vmatmul.mubr.f32.gmra.mxu0 %v3179
    %v3247 = vpop.f32.mrf.mxu0
    %v3248 = vadd.f32 %v3177, %v3247
    %v3249 = vpop.f32.mrf.mxu0
    %3250 = vdwg.mxu0
    %v3251 = vmax.f32 %v3248, 0.0
    %v3252 = vld [vmem:[%s1 + $0x450] sm:$0xff]
    %v3253 = vld [vmem:[%s1 + $0x460] sm:$0xff]
    %v3254 = vld [vmem:[%s1 + $0x470] ss:$0 sm:$0xff]
    %v3256 = vsel %vm160, %v3251, 0
    %3258 = vmatprep.subr.mxu0 0.0
    %3259 = vmatpush1.msra.mxu0 0.0
    %3260 = vmatprep.subr.mxu0 0.0
    %3261 = vmatpush1.msra.mxu0 0.0
    %3262 = vmatprep.subr.mxu0 0.0
    %3263 = vmatpush1.msra.mxu0 0.0
    %3264 = vmatprep.subr.mxu0 0.0
    %3265 = vmatpush1.msra.mxu0 0.0
    %3266 = vmatprep.subr.mxu0 0.0
    %3267 = vmatpush1.msra.mxu0 0.0
    %3268 = vmatprep.subr.mxu0 0.0
    %3269 = vmatpush1.msra.mxu0 0.0
    %3270 = vmatprep.subr.mxu0 0.0
    %3271 = vmatpush1.msra.mxu0 0.0
    %3272 = vmatprep.subr.mxu0 0.0
    %3273 = vmatpush1.msra.mxu0 0.0
    %3274 = vmatprep.subr.mxu0 0.0
    %3275 = vmatpush1.msra.mxu0 0.0
    %3276 = vmatprep.subr.mxu0 0.0
    %3277 = vmatpush1.msra.mxu0 0.0
    %3278 = vmatprep.subr.mxu0 0.0
    %3279 = vmatpush1.msra.mxu0 0.0
    %3280 = vmatprep.subr.mxu0 0.0
    %3281 = vmatpush1.msra.mxu0 0.0
    %3282 = vmatprep.subr.mxu0 0.0
    %3283 = vmatpush1.msra.mxu0 0.0
    %3284 = vmatprep.subr.mxu0 0.0
    %3285 = vmatpush1.msra.mxu0 0.0
    %3286 = vmatprep.subr.mxu0 0.0
    %3287 = vmatpush1.msra.mxu0 %v3253
    %3288 = vmatprep.subr.mxu0 0.0
    %3289 = vmatpush1.msra.mxu0 %v3252
    %3290 = vmatprep.subr.mxu0 0.0
    %3291 = vmatpush2.msra.mxu0 0.0
    %3292 = vmatprep.subr.mxu0 0.0
    %3293 = vmatpush2.msra.mxu0 0.0
    %3294 = vmatprep.subr.mxu0 0.0
    %3295 = vmatpush2.msra.mxu0 0.0
    %3296 = vmatprep.subr.mxu0 0.0
    %3297 = vmatpush2.msra.mxu0 0.0
    %3298 = vmatprep.subr.mxu0 0.0
    %3299 = vmatpush2.msra.mxu0 0.0
    %3300 = vmatprep.subr.mxu0 0.0
    %3301 = vmatpush2.msra.mxu0 0.0
    %3302 = vmatprep.subr.mxu0 0.0
    %3303 = vmatpush2.msra.mxu0 0.0
    %3304 = vmatprep.subr.mxu0 0.0
    %3305 = vmatpush2.msra.mxu0 0.0
    %3306 = vmatprep.subr.mxu0 0.0
    %3307 = vmatpush2.msra.mxu0 0.0
    %3308 = vmatprep.subr.mxu0 0.0
    %3309 = vmatpush2.msra.mxu0 0.0
    %3310 = vmatprep.subr.mxu0 0.0
    %3311 = vmatpush2.msra.mxu0 0.0
    %3312 = vmatprep.subr.mxu0 0.0
    %3313 = vmatpush2.msra.mxu0 0.0
    %3314 = vmatprep.subr.mxu0 0.0
    %3315 = vmatpush2.msra.mxu0 0.0
    %3316 = vmatprep.subr.mxu0 0.0
    %3317 = vmatpush2.msra.mxu0 0.0
    %3318 = vmatprep.subr.mxu0 0.0
    %3319 = vmatpush2.msra.mxu0 0.0
    %3320 = vmatprep.subr.mxu0 0.0
    %3321 = vmatpush2.msra.mxu0 0.0
    %3322 = vmatprep.mubr.f32.mxu0 0.0
    %3323 = vmatmul.mubr.f32.gmra.mxu0 %v3256
    %v3324 = vpop.f32.mrf.mxu0
    %v3325 = vadd.f32 %v3254, %v3324
    %v3326 = vpop.f32.mrf.mxu0
    %3327 = vdwg.mxu0
    %v3328 = vadd.f32 %v3172, %v3325
    %v3329 = vld [vmem:[%s1 + $0x480] ss:$0 sm:$0xff]
    %v3330 = vld [vmem:[%s1 + $0x490] ss:$0 sm:$0xff]
    %v3331 = vsel %vm61, %v3328, 0.0
    %3332 = vadd.xlane.f32.xlu0 %v3331
    %v3333 = vpop.xlane.xlu0 %3332
    %v3334 = vmul.f32 %v3333, %v1088
    %v3335 = vsub.f32 %v3328, %v3334
    %v3336 = vmul.f32 %v3335, %v3335
    %v3337 = vsel %vm61, %v3336, 0.0
    %3338 = vadd.xlane.f32.xlu0 %v3337
    %v3339 = vpop.xlane.xlu0 %3338
    %v3340 = vmul.f32 %v3339, %v1088
    %v3341 = vadd.f32 %v3340, 1e-05
    %v3342 = vrsqrt.pop %v3341
    %v3343 = vmul.f32 %v3335, %v3342
    %v3344 = vmul.f32 %v3343, %v3329
    %v3345 = vadd.f32 %v3344, %v3330
    %vm3346 = vcmp.eq.f32.partialorder %v15, %v33
    %v3347 = vsel %vm3346, 0.25, 0.0
    %v3349 = vsel %vm1508, %v3347, 0
    %3351 = vmatprep.subr.mxu0 0.0
    %3352 = vmatpush1.msra.mxu0 0.0
    %3353 = vmatprep.subr.mxu0 0.0
    %3354 = vmatpush1.msra.mxu0 0.0
    %3355 = vmatprep.subr.mxu0 0.0
    %3356 = vmatpush1.msra.mxu0 0.0
    %3357 = vmatprep.subr.mxu0 0.0
    %3358 = vmatpush1.msra.mxu0 0.0
    %3359 = vmatprep.subr.mxu0 0.0
    %3360 = vmatpush1.msra.mxu0 0.0
    %3361 = vmatprep.subr.mxu0 0.0
    %3362 = vmatpush1.msra.mxu0 0.0
    %3363 = vmatprep.subr.mxu0 0.0
    %3364 = vmatpush1.msra.mxu0 0.0
    %3365 = vmatprep.subr.mxu0 0.0
    %3366 = vmatpush1.msra.mxu0 0.0
    %3367 = vmatprep.subr.mxu0 0.0
    %3368 = vmatpush1.msra.mxu0 0.0
    %3369 = vmatprep.subr.mxu0 0.0
    %3370 = vmatpush1.msra.mxu0 0.0
    %3371 = vmatprep.subr.mxu0 0.0
    %3372 = vmatpush1.msra.mxu0 0.0
    %3373 = vmatprep.subr.mxu0 0.0
    %3374 = vmatpush1.msra.mxu0 0.0
    %3375 = vmatprep.subr.mxu0 0.0
    %3376 = vmatpush1.msra.mxu0 0.0
    %3377 = vmatprep.subr.mxu0 0.0
    %3378 = vmatpush1.msra.mxu0 0.0
    %3379 = vmatprep.subr.mxu0 0.0
    %3380 = vmatpush1.msra.mxu0 0.0
    %3381 = vmatprep.subr.mxu0 0.0
    %3382 = vmatpush1.msra.mxu0 %v3345
    %3383 = vmatprep.subr.mxu0 0.0
    %3384 = vmatpush2.msra.mxu0 0.0
    %3385 = vmatprep.subr.mxu0 0.0
    %3386 = vmatpush2.msra.mxu0 0.0
    %3387 = vmatprep.subr.mxu0 0.0
    %3388 = vmatpush2.msra.mxu0 0.0
    %3389 = vmatprep.subr.mxu0 0.0
    %3390 = vmatpush2.msra.mxu0 0.0
    %3391 = vmatprep.subr.mxu0 0.0
    %3392 = vmatpush2.msra.mxu0 0.0
    %3393 = vmatprep.subr.mxu0 0.0
    %3394 = vmatpush2.msra.mxu0 0.0
    %3395 = vmatprep.subr.mxu0 0.0
    %3396 = vmatpush2.msra.mxu0 0.0
    %3397 = vmatprep.subr.mxu0 0.0
    %3398 = vmatpush2.msra.mxu0 0.0
    %3399 = vmatprep.subr.mxu0 0.0
    %3400 = vmatpush2.msra.mxu0 0.0
    %3401 = vmatprep.subr.mxu0 0.0
    %3402 = vmatpush2.msra.mxu0 0.0
    %3403 = vmatprep.subr.mxu0 0.0
    %3404 = vmatpush2.msra.mxu0 0.0
    %3405 = vmatprep.subr.mxu0 0.0
    %3406 = vmatpush2.msra.mxu0 0.0
    %3407 = vmatprep.subr.mxu0 0.0
    %3408 = vmatpush2.msra.mxu0 0.0
    %3409 = vmatprep.subr.mxu0 0.0
    %3410 = vmatpush2.msra.mxu0 0.0
    %3411 = vmatprep.subr.mxu0 0.0
    %3412 = vmatpush2.msra.mxu0 0.0
    %3413 = vmatprep.subr.mxu0 0.0
    %3414 = vmatpush2.msra.mxu0 0.0
    %3415 = vmatprep.mubr.f32.mxu0 0.0
    %3416 = vmatmul.mubr.f32.gmra.mxu0 %v3349
    %v3417 = vpop.f32.mrf.mxu0
    %v3418 = vadd.f32 0.0, %v3417
    %v3419 = vpop.f32.mrf.mxu0
    %3420 = vdwg.mxu0
    %v3421 = vld [vmem:[%s1 + $0x4a0] sm:$0xff]
    %v3422 = vld [vmem:[%s1 + $0x4b0] sm:$0xff]
    %v3423 = vld [vmem:[%s1 + $0x4c0] sm:$0xff]
    %v3424 = vld [vmem:[%s1 + $0x4d0] sm:$0xff]
    %v3425 = vld [vmem:[%s1 + $0x4e0] ss:$0 sm:$0xff]
    %v3427 = vsel %vm61, %v3418, 0
    %3429 = vmatprep.subr.mxu0 0.0
    %3430 = vmatpush1.msra.mxu0 0.0
    %3431 = vmatprep.subr.mxu0 0.0
    %3432 = vmatpush1.msra.mxu0 0.0
    %3433 = vmatprep.subr.mxu0 0.0
    %3434 = vmatpush1.msra.mxu0 0.0
    %3435 = vmatprep.subr.mxu0 0.0
    %3436 = vmatpush1.msra.mxu0 0.0
    %3437 = vmatprep.subr.mxu0 0.0
    %3438 = vmatpush1.msra.mxu0 0.0
    %3439 = vmatprep.subr.mxu0 0.0
    %3440 = vmatpush1.msra.mxu0 0.0
    %3441 = vmatprep.subr.mxu0 0.0
    %3442 = vmatpush1.msra.mxu0 0.0
    %3443 = vmatprep.subr.mxu0 0.0
    %3444 = vmatpush1.msra.mxu0 0.0
    %3445 = vmatprep.subr.mxu0 0.0
    %3446 = vmatpush1.msra.mxu0 0.0
    %3447 = vmatprep.subr.mxu0 0.0
    %3448 = vmatpush1.msra.mxu0 0.0
    %3449 = vmatprep.subr.mxu0 0.0
    %3450 = vmatpush1.msra.mxu0 0.0
    %3451 = vmatprep.subr.mxu0 0.0
    %3452 = vmatpush1.msra.mxu0 0.0
    %3453 = vmatprep.subr.mxu0 0.0
    %3454 = vmatpush1.msra.mxu0 %v3424
    %3455 = vmatprep.subr.mxu0 0.0
    %3456 = vmatpush1.msra.mxu0 %v3423
    %3457 = vmatprep.subr.mxu0 0.0
    %3458 = vmatpush1.msra.mxu0 %v3422
    %3459 = vmatprep.subr.mxu0 0.0
    %3460 = vmatpush1.msra.mxu0 %v3421
    %3461 = vmatprep.subr.mxu0 0.0
    %3462 = vmatpush2.msra.mxu0 0.0
    %3463 = vmatprep.subr.mxu0 0.0
    %3464 = vmatpush2.msra.mxu0 0.0
    %3465 = vmatprep.subr.mxu0 0.0
    %3466 = vmatpush2.msra.mxu0 0.0
    %3467 = vmatprep.subr.mxu0 0.0
    %3468 = vmatpush2.msra.mxu0 0.0
    %3469 = vmatprep.subr.mxu0 0.0
    %3470 = vmatpush2.msra.mxu0 0.0
    %3471 = vmatprep.subr.mxu0 0.0
    %3472 = vmatpush2.msra.mxu0 0.0
    %3473 = vmatprep.subr.mxu0 0.0
    %3474 = vmatpush2.msra.mxu0 0.0
    %3475 = vmatprep.subr.mxu0 0.0
    %3476 = vmatpush2.msra.mxu0 0.0
    %3477 = vmatprep.subr.mxu0 0.0
    %3478 = vmatpush2.msra.mxu0 0.0
    %3479 = vmatprep.subr.mxu0 0.0
    %3480 = vmatpush2.msra.mxu0 0.0
    %3481 = vmatprep.subr.mxu0 0.0
    %3482 = vmatpush2.msra.mxu0 0.0
    %3483 = vmatprep.subr.mxu0 0.0
    %3484 = vmatpush2.msra.mxu0 0.0
    %3485 = vmatprep.subr.mxu0 0.0
    %3486 = vmatpush2.msra.mxu0 0.0
    %3487 = vmatprep.subr.mxu0 0.0
    %3488 = vmatpush2.msra.mxu0 0.0
    %3489 = vmatprep.subr.mxu0 0.0
    %3490 = vmatpush2.msra.mxu0 0.0
    %3491 = vmatprep.subr.mxu0 0.0
    %3492 = vmatpush2.msra.mxu0 0.0
    %3493 = vmatprep.mubr.f32.mxu0 0.0
    %3494 = vmatmul.mubr.f32.gmra.mxu0 %v3427
    %v3495 = vpop.f32.mrf.mxu0
    %v3496 = vadd.f32 %v3425, %v3495
    %v3497 = vpop.f32.mrf.mxu0
    %3498 = vdwg.mxu0
    %vm3499 = vcmask 25600
    %3500 = vst.msk [vmem:[#allocation2] sm:$0x3] %vm3499, %v3496
    // Predicated region
    $region10: #{forward.1} parent=1 // pred_check
      _
    $region11: #{forward.1} parent=1 // pred_check_branch
      %3502 = sbr.rel (0) target = $region13
    $region12: #{forward.1} parent=1 // pred_region
      %s3504 = ssub.s32 32, 32
      %3505 = vsyncadd [#allocation3], %s3504
      %s3507 = sshll.u32 [#allocation2], 4
      %s3508 = int_to_ptr.vmem [resolvable:$true] %s3507
      %3510 = dma.vmem_to_hbm [thread:$0]  %s3508, 32, %s2, [#allocation3]
    $region13: #{forward.1} parent=1 // pred_fallthru
      _
    // Predicated region
    $region14: #{forward.1} parent=1 // pred_check
      _
    $region15: #{forward.1} parent=1 // pred_check_branch
      %3512 = sbr.rel (0) target = $region17
    $region16: #{forward.1} parent=1 // pred_region
      %3513 = dma.done [#allocation3], 32
    $region17: #{forward.1} parent=1 // pred_fallthru
      _
    %3514 = vsyncpa [#allocation3], 1

</llo_original>
